<compile_context>
chip_gen: v7x
topology: tpu7x:2x2x1
jax: 0.10.0
libtpu: 0.0.40
codegen_flags: <defaults>
</compile_context>

<pallas_src>
import math

import jax
import jax.numpy as jnp
from jax.experimental import pallas as pl
from jax.experimental.pallas import tpu as pltpu


# ----------------------------- Pallas kernel ------------------------------- #

def make_fourier_kernel(hidden_blocks):
    """Kernel body for a FourierNet with `hidden_blocks` hidden blocks.

    Ref order: coords_t, k2, phase, <flat params>, out.
    Flat params (weights (out, in), biases (out, 1)):
      block 0       : W0sc (H, 2LD), b0, W01, b01
      blocks 1..B-1 : Wh (H,H), Wsc (H, 2LD), b, W1, b1
      final block   : Wfh, Wfsc, bf0, Wf1, bf1, Wf2, bf2
    """

    def kernel(*refs):
        x_ref, k2_ref, phase_ref = refs[0], refs[1], refs[2]
        out_ref = refs[-1]
        p = refs[3:-1]

        x = x_ref[...]                                               # (D_pad, TN)
        # Fused FFM: rows 0..LD-1 -> sin(coefs[l]*x_d); rows LD..2LD-1 -> +pi/2 -> cos.
        arg = jnp.dot(k2_ref[...], x, preferred_element_type=jnp.float32)   # (2LD, TN)
        sc = jnp.sin(arg + phase_ref[...])                           # single transcendental

        def mm(w_ref, a):
            return jnp.dot(w_ref[...], a, preferred_element_type=jnp.float32)

        idx = 0

        def take(n):
            nonlocal idx
            chunk = p[idx:idx + n]
            idx += n
            return chunk

        # ---- hidden block 0: first layer consumes ffm = [sin | cos] = sc ----
        w0sc, b0, w01, b01 = take(4)
        h = jnp.maximum(mm(w0sc, sc) + b0[...], 0.0)
        h = jnp.maximum(mm(w01, h) + b01[...], 0.0)

        # ---- hidden blocks 1..B-1: first layer consumes [h | sc] (skip folded) ----
        for _ in range(hidden_blocks - 1):
            wh, wsc, bb, w1, b1 = take(5)
            h = jnp.maximum(mm(wh, h) + mm(wsc, sc) + bb[...], 0.0)
            h = jnp.maximum(mm(w1, h) + b1[...], 0.0)

        # ---- final block: [h | sc] -> H -> H/2 -> out ----
        wfh, wfsc, bf0, wf1, bf1, wf2, bf2 = take(7)
        h = jnp.maximum(mm(wfh, h) + mm(wfsc, sc) + bf0[...], 0.0)
        h = jnp.maximum(mm(wf1, h) + bf1[...], 0.0)
        out_ref[...] = mm(wf2, h) + bf2[...]                         # (out, TN), lane-dense

    return kernel


# ------------------------------ Host wrapper -------------------------------- #

def fourier_net_forward(coords, k2, phase, flat_params, hidden_blocks, *, tile_n=512):
    """coords: (N, D) f32.  k2: (2LD, D_pad) stacked kron matrix.  phase: (2LD, 1).

    Returns (N, out_features).
    """
    N, D = coords.shape
    d_pad = k2.shape[1]
    out_features = flat_params[-1].shape[0]          # final bias is (out_features, 1)

    # Samples on the lane axis; pad the (tiny) feature axis to a full sublane tile.
    coords_t = jnp.concatenate(
        [coords.T.astype(jnp.float32),
         jnp.zeros((d_pad - D, N), jnp.float32)], axis=0)            # (D_pad, N)

    n_tiles = pl.cdiv(N, tile_n)                     # ragged last block handled by Pallas

    def full_spec(arr):
        return pl.BlockSpec(arr.shape, lambda i: (0, 0))

    in_specs = ([pl.BlockSpec((d_pad, tile_n), lambda i: (0, i)),
                 full_spec(k2), full_spec(phase)]
                + [full_spec(w) for w in flat_params])

    out_t = pl.pallas_call(
        make_fourier_kernel(hidden_blocks),
        out_shape=jax.ShapeDtypeStruct((out_features, N), jnp.float32),
        grid_spec=pl.GridSpec(
            grid=(n_tiles,),
            in_specs=in_specs,
            out_specs=pl.BlockSpec((out_features, tile_n), lambda i: (0, i)),
        ),
        compiler_params=pltpu.CompilerParams(
            dimension_semantics=("parallel",),       # row tiles independent -> v7x megacore
        ),
    )(coords_t, k2, phase, *flat_params)

    return out_t.T                                   # (N, out_features)


# --------------------------- Parameter construction ------------------------- #

def init_linear(key, in_f, out_f):
    """PyTorch-style nn.Linear init; returns W (out, in) and b (out,)."""
    kw, kb = jax.random.split(key)
    bound = 1.0 / math.sqrt(in_f)
    w = jax.random.uniform(kw, (out_f, in_f), jnp.float32, -bound, bound)
    b = jax.random.uniform(kb, (out_f,), jnp.float32, -bound, bound)
    return w, b


def build_ffm(in_features, L):
    """Host-side FFM constants.

    kmat  : (D, L*D) = kron(coefs, I_D)            -- used by the pure-JAX reference.
    k2    : (2*L*D, D_pad) = [kmat^T; kmat^T], zero-padded columns  -- kernel operand.
    phase : (2*L*D, 1) = [0 ... 0, pi/2 ... pi/2]^T  (sin rows, then cos rows).
    """
    D = in_features
    coefs = jnp.arange(1, L + 1, dtype=jnp.float32) * (math.pi * 0.5)    # (L,)
    kmat = jnp.kron(coefs, jnp.eye(D, dtype=jnp.float32))                # (D, L*D)
    LD = L * D
    d_pad = max(8, -(-D // 8) * 8)
    k2 = jnp.zeros((2 * LD, d_pad), jnp.float32)
    k2 = k2.at[:LD, :D].set(kmat.T)
    k2 = k2.at[LD:, :D].set(kmat.T)
    phase = jnp.concatenate([jnp.zeros((LD, 1), jnp.float32),
                             jnp.full((LD, 1), math.pi / 2.0, jnp.float32)], axis=0)
    return kmat, k2, phase


def build_fourier_net(key, in_features, hidden_features, hidden_blocks, out_features, L=10):
    D, H = in_features, hidden_features
    exp = 2 * D * L

    dims = [(exp, H), (H, H)]
    for _ in range(hidden_blocks - 1):
        dims += [(H + exp, H), (H, H)]
    dims += [(H + exp, H), (H, H // 2), (H // 2, out_features)]

    keys = jax.random.split(key, len(dims))
    raw = [init_linear(k, i, o) for k, (i, o) in zip(keys, dims)]
    return raw


def pack_params(raw, in_features, hidden_features, hidden_blocks, L):
    """Split skip-layer weights into (Wh, Wsc) so the kernel never concatenates on the
    lane axis; the [sin | cos] half stays as ONE (H, 2LD) matrix (single K~40 matmul)."""
    D, H = in_features, hidden_features
    E = 2 * L * D
    col = lambda b: b[:, None]                       # (out,) -> (out, 1)

    flat, li = [], 0
    w, b = raw[li]; li += 1                          # block0 fc0: input = [sin | cos]
    flat += [w, col(b)]
    w, b = raw[li]; li += 1                          # block0 fc1
    flat += [w, col(b)]
    for _ in range(hidden_blocks - 1):
        w, b = raw[li]; li += 1                      # block fc0: input = [h | sin | cos]
        flat += [w[:, :H], w[:, H:H + E], col(b)]
        w, b = raw[li]; li += 1                      # block fc1
        flat += [w, col(b)]
    w, b = raw[li]; li += 1                          # final fc0: input = [h | sin | cos]
    flat += [w[:, :H], w[:, H:H + E], col(b)]
    w, b = raw[li]; li += 1                          # final fc1
    flat += [w, col(b)]
    w, b = raw[li]; li += 1                          # final fc2
    flat += [w, col(b)]
    return [jnp.asarray(a, jnp.float32) for a in flat]


# ------------------------------ Pure-JAX reference --------------------------- #

def reference_forward(coords, kmat, raw, hidden_blocks):
    arg = coords @ kmat
    ffm = jnp.concatenate([jnp.sin(arg), jnp.cos(arg)], axis=1)
    h = ffm
    li = 0
    for _ in range(hidden_blocks):
        w, b = raw[li]; li += 1
        h = jnp.maximum(h @ w.T + b, 0.0)
        w, b = raw[li]; li += 1
        h = jnp.maximum(h @ w.T + b, 0.0)
        h = jnp.concatenate([h, ffm], axis=1)
    w, b = raw[li]; li += 1
    h = jnp.maximum(h @ w.T + b, 0.0)
    w, b = raw[li]; li += 1
    h = jnp.maximum(h @ w.T + b, 0.0)
    w, b = raw[li]; li += 1
    return h @ w.T + b


# ----------------------------------- main ----------------------------------- #

if __name__ == "__main__":
    in_features = 2        # 2-D coordinates
    hidden_features = 32
    hidden_blocks = 2
    out_features = 1
    L = 10
    N = 1000               # intentionally ragged: Pallas masks the last 512-wide block
    tile_n = 512           # grid = 2 "parallel" steps -> both v7x TCs get work

    root = jax.random.PRNGKey(0)
    k_params, k_coords = jax.random.split(root)

    kmat, k2, phase = build_ffm(in_features, L)
    raw_params = build_fourier_net(k_params, in_features, hidden_features,
                                   hidden_blocks, out_features, L=L)
    flat_params = pack_params(raw_params, in_features, hidden_features, hidden_blocks, L)
    coords = jax.random.uniform(k_coords, (N, in_features), jnp.float32, -1.0, 1.0)

    out = fourier_net_forward(coords, k2, phase, flat_params, hidden_blocks, tile_n=tile_n)
    out = jax.block_until_ready(out)

    ref = reference_forward(coords, kmat, raw_params, hidden_blocks)
    assert out.shape == (N, out_features)
    err = float(jnp.max(jnp.abs(out - ref)))
    assert err < 1e-4, f"mismatch vs pure-JAX reference: {err}"

    print("KERNEL_OK")
</pallas_src>

<mosaic_0001>
module attributes {stable_mosaic.version = 11 : i64} {
  func.func @kernel(%arg0: i32, %arg1: memref<8x512xf32, #tpu.memory_space<vmem>>, %arg2: memref<40x8xf32, #tpu.memory_space<vmem>>, %arg3: memref<40x1xf32, #tpu.memory_space<vmem>>, %arg4: memref<32x40xf32, #tpu.memory_space<vmem>>, %arg5: memref<32x1xf32, #tpu.memory_space<vmem>>, %arg6: memref<32x32xf32, #tpu.memory_space<vmem>>, %arg7: memref<32x1xf32, #tpu.memory_space<vmem>>, %arg8: memref<32x32xf32, #tpu.memory_space<vmem>>, %arg9: memref<32x40xf32, #tpu.memory_space<vmem>>, %arg10: memref<32x1xf32, #tpu.memory_space<vmem>>, %arg11: memref<32x32xf32, #tpu.memory_space<vmem>>, %arg12: memref<32x1xf32, #tpu.memory_space<vmem>>, %arg13: memref<32x32xf32, #tpu.memory_space<vmem>>, %arg14: memref<32x40xf32, #tpu.memory_space<vmem>>, %arg15: memref<32x1xf32, #tpu.memory_space<vmem>>, %arg16: memref<16x32xf32, #tpu.memory_space<vmem>>, %arg17: memref<16x1xf32, #tpu.memory_space<vmem>>, %arg18: memref<1x16xf32, #tpu.memory_space<vmem>>, %arg19: memref<1x1xf32, #tpu.memory_space<vmem>>, %arg20: memref<1x512xf32, #tpu.memory_space<vmem>>) attributes {dimension_semantics = [#tpu.dimension_semantics<parallel>], iteration_bounds = array<i64: 2>, scalar_prefetch = 0 : i64, scratch_operands = 0 : i64, tpu.core_type = #tpu.core_type<tc>, window_params = [{transform_indices = @transform_0, window_bounds = array<i64: 8, 512>}, {pipeline_mode = #tpu.pipeline_mode<synchronous>, transform_indices = @transform_1, window_bounds = array<i64: 40, 8>}, {pipeline_mode = #tpu.pipeline_mode<synchronous>, transform_indices = @transform_2, window_bounds = array<i64: 40, 1>}, {pipeline_mode = #tpu.pipeline_mode<synchronous>, transform_indices = @transform_3, window_bounds = array<i64: 32, 40>}, {pipeline_mode = #tpu.pipeline_mode<synchronous>, transform_indices = @transform_4, window_bounds = array<i64: 32, 1>}, {pipeline_mode = #tpu.pipeline_mode<synchronous>, transform_indices = @transform_5, window_bounds = array<i64: 32, 32>}, {pipeline_mode = #tpu.pipeline_mode<synchronous>, transform_indices = @transform_6, window_bounds = array<i64: 32, 1>}, {pipeline_mode = #tpu.pipeline_mode<synchronous>, transform_indices = @transform_7, window_bounds = array<i64: 32, 32>}, {pipeline_mode = #tpu.pipeline_mode<synchronous>, transform_indices = @transform_8, window_bounds = array<i64: 32, 40>}, {pipeline_mode = #tpu.pipeline_mode<synchronous>, transform_indices = @transform_9, window_bounds = array<i64: 32, 1>}, {pipeline_mode = #tpu.pipeline_mode<synchronous>, transform_indices = @transform_10, window_bounds = array<i64: 32, 32>}, {pipeline_mode = #tpu.pipeline_mode<synchronous>, transform_indices = @transform_11, window_bounds = array<i64: 32, 1>}, {pipeline_mode = #tpu.pipeline_mode<synchronous>, transform_indices = @transform_12, window_bounds = array<i64: 32, 32>}, {pipeline_mode = #tpu.pipeline_mode<synchronous>, transform_indices = @transform_13, window_bounds = array<i64: 32, 40>}, {pipeline_mode = #tpu.pipeline_mode<synchronous>, transform_indices = @transform_14, window_bounds = array<i64: 32, 1>}, {pipeline_mode = #tpu.pipeline_mode<synchronous>, transform_indices = @transform_15, window_bounds = array<i64: 16, 32>}, {pipeline_mode = #tpu.pipeline_mode<synchronous>, transform_indices = @transform_16, window_bounds = array<i64: 16, 1>}, {pipeline_mode = #tpu.pipeline_mode<synchronous>, transform_indices = @transform_17, window_bounds = array<i64: 1, 16>}, {pipeline_mode = #tpu.pipeline_mode<synchronous>, transform_indices = @transform_18, window_bounds = array<i64: 1, 1>}, {transform_indices = @transform_19, window_bounds = array<i64: 1, 512>}]} {
    %c0 = arith.constant 0 : index
    %c0_0 = arith.constant 0 : index
    %0 = vector.load %arg1[%c0, %c0_0] : memref<8x512xf32, #tpu.memory_space<vmem>>, vector<8x512xf32>
    %c0_1 = arith.constant 0 : index
    %c0_2 = arith.constant 0 : index
    %1 = vector.load %arg2[%c0_1, %c0_2] : memref<40x8xf32, #tpu.memory_space<vmem>>, vector<40x8xf32>
    %cst = arith.constant dense<0.000000e+00> : vector<40x512xf32>
    %2 = tpu.matmul %1, %0, %cst {dimension_numbers = #tpu.dot_dimension_numbers<[1], [0], [0], [1], [0, 0, 1, 1], [], []>} : vector<40x8xf32>, vector<8x512xf32>, vector<40x512xf32> -> vector<40x512xf32>
    %c0_3 = arith.constant 0 : index
    %c0_4 = arith.constant 0 : index
    %3 = vector.load %arg3[%c0_3, %c0_4] : memref<40x1xf32, #tpu.memory_space<vmem>>, vector<40x1xf32>
    %4 = vector.broadcast %3 : vector<40x1xf32> to vector<40x512xf32>
    %5 = arith.addf %2, %4 : vector<40x512xf32>
    %6 = math.sin %5 : vector<40x512xf32>
    %c0_5 = arith.constant 0 : index
    %c0_6 = arith.constant 0 : index
    %7 = vector.load %arg4[%c0_5, %c0_6] : memref<32x40xf32, #tpu.memory_space<vmem>>, vector<32x40xf32>
    %cst_7 = arith.constant dense<0.000000e+00> : vector<32x512xf32>
    %8 = tpu.matmul %7, %6, %cst_7 {dimension_numbers = #tpu.dot_dimension_numbers<[1], [0], [0], [1], [0, 0, 1, 1], [], []>} : vector<32x40xf32>, vector<40x512xf32>, vector<32x512xf32> -> vector<32x512xf32>
    %c0_8 = arith.constant 0 : index
    %c0_9 = arith.constant 0 : index
    %9 = vector.load %arg5[%c0_8, %c0_9] : memref<32x1xf32, #tpu.memory_space<vmem>>, vector<32x1xf32>
    %10 = vector.broadcast %9 : vector<32x1xf32> to vector<32x512xf32>
    %11 = arith.addf %8, %10 : vector<32x512xf32>
    %cst_10 = arith.constant 0.000000e+00 : f32
    %12 = vector.broadcast %cst_10 : f32 to vector<32x512xf32>
    %13 = arith.maximumf %11, %12 : vector<32x512xf32>
    %c0_11 = arith.constant 0 : index
    %c0_12 = arith.constant 0 : index
    %14 = vector.load %arg6[%c0_11, %c0_12] : memref<32x32xf32, #tpu.memory_space<vmem>>, vector<32x32xf32>
    %cst_13 = arith.constant dense<0.000000e+00> : vector<32x512xf32>
    %15 = tpu.matmul %14, %13, %cst_13 {dimension_numbers = #tpu.dot_dimension_numbers<[1], [0], [0], [1], [0, 0, 1, 1], [], []>} : vector<32x32xf32>, vector<32x512xf32>, vector<32x512xf32> -> vector<32x512xf32>
    %c0_14 = arith.constant 0 : index
    %c0_15 = arith.constant 0 : index
    %16 = vector.load %arg7[%c0_14, %c0_15] : memref<32x1xf32, #tpu.memory_space<vmem>>, vector<32x1xf32>
    %17 = vector.broadcast %16 : vector<32x1xf32> to vector<32x512xf32>
    %18 = arith.addf %15, %17 : vector<32x512xf32>
    %cst_16 = arith.constant 0.000000e+00 : f32
    %19 = vector.broadcast %cst_16 : f32 to vector<32x512xf32>
    %20 = arith.maximumf %18, %19 : vector<32x512xf32>
    %c0_17 = arith.constant 0 : index
    %c0_18 = arith.constant 0 : index
    %21 = vector.load %arg8[%c0_17, %c0_18] : memref<32x32xf32, #tpu.memory_space<vmem>>, vector<32x32xf32>
    %cst_19 = arith.constant dense<0.000000e+00> : vector<32x512xf32>
    %22 = tpu.matmul %21, %20, %cst_19 {dimension_numbers = #tpu.dot_dimension_numbers<[1], [0], [0], [1], [0, 0, 1, 1], [], []>} : vector<32x32xf32>, vector<32x512xf32>, vector<32x512xf32> -> vector<32x512xf32>
    %c0_20 = arith.constant 0 : index
    %c0_21 = arith.constant 0 : index
    %23 = vector.load %arg9[%c0_20, %c0_21] : memref<32x40xf32, #tpu.memory_space<vmem>>, vector<32x40xf32>
    %cst_22 = arith.constant dense<0.000000e+00> : vector<32x512xf32>
    %24 = tpu.matmul %23, %6, %cst_22 {dimension_numbers = #tpu.dot_dimension_numbers<[1], [0], [0], [1], [0, 0, 1, 1], [], []>} : vector<32x40xf32>, vector<40x512xf32>, vector<32x512xf32> -> vector<32x512xf32>
    %25 = arith.addf %22, %24 : vector<32x512xf32>
    %c0_23 = arith.constant 0 : index
    %c0_24 = arith.constant 0 : index
    %26 = vector.load %arg10[%c0_23, %c0_24] : memref<32x1xf32, #tpu.memory_space<vmem>>, vector<32x1xf32>
    %27 = vector.broadcast %26 : vector<32x1xf32> to vector<32x512xf32>
    %28 = arith.addf %25, %27 : vector<32x512xf32>
    %cst_25 = arith.constant 0.000000e+00 : f32
    %29 = vector.broadcast %cst_25 : f32 to vector<32x512xf32>
    %30 = arith.maximumf %28, %29 : vector<32x512xf32>
    %c0_26 = arith.constant 0 : index
    %c0_27 = arith.constant 0 : index
    %31 = vector.load %arg11[%c0_26, %c0_27] : memref<32x32xf32, #tpu.memory_space<vmem>>, vector<32x32xf32>
    %cst_28 = arith.constant dense<0.000000e+00> : vector<32x512xf32>
    %32 = tpu.matmul %31, %30, %cst_28 {dimension_numbers = #tpu.dot_dimension_numbers<[1], [0], [0], [1], [0, 0, 1, 1], [], []>} : vector<32x32xf32>, vector<32x512xf32>, vector<32x512xf32> -> vector<32x512xf32>
    %c0_29 = arith.constant 0 : index
    %c0_30 = arith.constant 0 : index
    %33 = vector.load %arg12[%c0_29, %c0_30] : memref<32x1xf32, #tpu.memory_space<vmem>>, vector<32x1xf32>
    %34 = vector.broadcast %33 : vector<32x1xf32> to vector<32x512xf32>
    %35 = arith.addf %32, %34 : vector<32x512xf32>
    %cst_31 = arith.constant 0.000000e+00 : f32
    %36 = vector.broadcast %cst_31 : f32 to vector<32x512xf32>
    %37 = arith.maximumf %35, %36 : vector<32x512xf32>
    %c0_32 = arith.constant 0 : index
    %c0_33 = arith.constant 0 : index
    %38 = vector.load %arg13[%c0_32, %c0_33] : memref<32x32xf32, #tpu.memory_space<vmem>>, vector<32x32xf32>
    %cst_34 = arith.constant dense<0.000000e+00> : vector<32x512xf32>
    %39 = tpu.matmul %38, %37, %cst_34 {dimension_numbers = #tpu.dot_dimension_numbers<[1], [0], [0], [1], [0, 0, 1, 1], [], []>} : vector<32x32xf32>, vector<32x512xf32>, vector<32x512xf32> -> vector<32x512xf32>
    %c0_35 = arith.constant 0 : index
    %c0_36 = arith.constant 0 : index
    %40 = vector.load %arg14[%c0_35, %c0_36] : memref<32x40xf32, #tpu.memory_space<vmem>>, vector<32x40xf32>
    %cst_37 = arith.constant dense<0.000000e+00> : vector<32x512xf32>
    %41 = tpu.matmul %40, %6, %cst_37 {dimension_numbers = #tpu.dot_dimension_numbers<[1], [0], [0], [1], [0, 0, 1, 1], [], []>} : vector<32x40xf32>, vector<40x512xf32>, vector<32x512xf32> -> vector<32x512xf32>
    %42 = arith.addf %39, %41 : vector<32x512xf32>
    %c0_38 = arith.constant 0 : index
    %c0_39 = arith.constant 0 : index
    %43 = vector.load %arg15[%c0_38, %c0_39] : memref<32x1xf32, #tpu.memory_space<vmem>>, vector<32x1xf32>
    %44 = vector.broadcast %43 : vector<32x1xf32> to vector<32x512xf32>
    %45 = arith.addf %42, %44 : vector<32x512xf32>
    %cst_40 = arith.constant 0.000000e+00 : f32
    %46 = vector.broadcast %cst_40 : f32 to vector<32x512xf32>
    %47 = arith.maximumf %45, %46 : vector<32x512xf32>
    %c0_41 = arith.constant 0 : index
    %c0_42 = arith.constant 0 : index
    %48 = vector.load %arg16[%c0_41, %c0_42] : memref<16x32xf32, #tpu.memory_space<vmem>>, vector<16x32xf32>
    %cst_43 = arith.constant dense<0.000000e+00> : vector<16x512xf32>
    %49 = tpu.matmul %48, %47, %cst_43 {dimension_numbers = #tpu.dot_dimension_numbers<[1], [0], [0], [1], [0, 0, 1, 1], [], []>} : vector<16x32xf32>, vector<32x512xf32>, vector<16x512xf32> -> vector<16x512xf32>
    %c0_44 = arith.constant 0 : index
    %c0_45 = arith.constant 0 : index
    %50 = vector.load %arg17[%c0_44, %c0_45] : memref<16x1xf32, #tpu.memory_space<vmem>>, vector<16x1xf32>
    %51 = vector.broadcast %50 : vector<16x1xf32> to vector<16x512xf32>
    %52 = arith.addf %49, %51 : vector<16x512xf32>
    %cst_46 = arith.constant 0.000000e+00 : f32
    %53 = vector.broadcast %cst_46 : f32 to vector<16x512xf32>
    %54 = arith.maximumf %52, %53 : vector<16x512xf32>
    %c0_47 = arith.constant 0 : index
    %c0_48 = arith.constant 0 : index
    %55 = vector.load %arg18[%c0_47, %c0_48] : memref<1x16xf32, #tpu.memory_space<vmem>>, vector<1x16xf32>
    %cst_49 = arith.constant dense<0.000000e+00> : vector<1x512xf32>
    %56 = tpu.matmul %55, %54, %cst_49 {dimension_numbers = #tpu.dot_dimension_numbers<[1], [0], [0], [1], [0, 0, 1, 1], [], []>} : vector<1x16xf32>, vector<16x512xf32>, vector<1x512xf32> -> vector<1x512xf32>
    %c0_50 = arith.constant 0 : index
    %c0_51 = arith.constant 0 : index
    %57 = vector.load %arg19[%c0_50, %c0_51] : memref<1x1xf32, #tpu.memory_space<vmem>>, vector<1x1xf32>
    %58 = vector.broadcast %57 : vector<1x1xf32> to vector<1x512xf32>
    %59 = arith.addf %56, %58 : vector<1x512xf32>
    %c0_52 = arith.constant 0 : index
    %c0_53 = arith.constant 0 : index
    %60 = vector.load %arg20[%c0_52, %c0_53] : memref<1x512xf32, #tpu.memory_space<vmem>>, vector<1x512xf32>
    tpu.vector_store %arg20[%c0_52, %c0_53], %59 {strides = array<i32>} : memref<1x512xf32, #tpu.memory_space<vmem>>, vector<1x512xf32>,
    return
  }
  func.func @transform_0(%arg0: i32) -> (i32, i32) {
    %c0_i32 = arith.constant 0 : i32
    %c0_i32_0 = arith.constant 0 : i32
    return %c0_i32, %arg0 : i32, i32
  }
  func.func @transform_1(%arg0: i32) -> (i32, i32) {
    %c0_i32 = arith.constant 0 : i32
    %c0_i32_0 = arith.constant 0 : i32
    %c0_i32_1 = arith.constant 0 : i32
    return %c0_i32, %c0_i32_0 : i32, i32
  }
  func.func @transform_2(%arg0: i32) -> (i32, i32) {
    %c0_i32 = arith.constant 0 : i32
    %c0_i32_0 = arith.constant 0 : i32
    %c0_i32_1 = arith.constant 0 : i32
    return %c0_i32, %c0_i32_0 : i32, i32
  }
  func.func @transform_3(%arg0: i32) -> (i32, i32) {
    %c0_i32 = arith.constant 0 : i32
    %c0_i32_0 = arith.constant 0 : i32
    %c0_i32_1 = arith.constant 0 : i32
    return %c0_i32, %c0_i32_0 : i32, i32
  }
  func.func @transform_4(%arg0: i32) -> (i32, i32) {
    %c0_i32 = arith.constant 0 : i32
    %c0_i32_0 = arith.constant 0 : i32
    %c0_i32_1 = arith.constant 0 : i32
    return %c0_i32, %c0_i32_0 : i32, i32
  }
  func.func @transform_5(%arg0: i32) -> (i32, i32) {
    %c0_i32 = arith.constant 0 : i32
    %c0_i32_0 = arith.constant 0 : i32
    %c0_i32_1 = arith.constant 0 : i32
    return %c0_i32, %c0_i32_0 : i32, i32
  }
  func.func @transform_6(%arg0: i32) -> (i32, i32) {
    %c0_i32 = arith.constant 0 : i32
    %c0_i32_0 = arith.constant 0 : i32
    %c0_i32_1 = arith.constant 0 : i32
    return %c0_i32, %c0_i32_0 : i32, i32
  }
  func.func @transform_7(%arg0: i32) -> (i32, i32) {
    %c0_i32 = arith.constant 0 : i32
    %c0_i32_0 = arith.constant 0 : i32
    %c0_i32_1 = arith.constant 0 : i32
    return %c0_i32, %c0_i32_0 : i32, i32
  }
  func.func @transform_8(%arg0: i32) -> (i32, i32) {
    %c0_i32 = arith.constant 0 : i32
    %c0_i32_0 = arith.constant 0 : i32
    %c0_i32_1 = arith.constant 0 : i32
    return %c0_i32, %c0_i32_0 : i32, i32
  }
  func.func @transform_9(%arg0: i32) -> (i32, i32) {
    %c0_i32 = arith.constant 0 : i32
    %c0_i32_0 = arith.constant 0 : i32
    %c0_i32_1 = arith.constant 0 : i32
    return %c0_i32, %c0_i32_0 : i32, i32
  }
  func.func @transform_10(%arg0: i32) -> (i32, i32) {
    %c0_i32 = arith.constant 0 : i32
    %c0_i32_0 = arith.constant 0 : i32
    %c0_i32_1 = arith.constant 0 : i32
    return %c0_i32, %c0_i32_0 : i32, i32
  }
  func.func @transform_11(%arg0: i32) -> (i32, i32) {
    %c0_i32 = arith.constant 0 : i32
    %c0_i32_0 = arith.constant 0 : i32
    %c0_i32_1 = arith.constant 0 : i32
    return %c0_i32, %c0_i32_0 : i32, i32
  }
  func.func @transform_12(%arg0: i32) -> (i32, i32) {
    %c0_i32 = arith.constant 0 : i32
    %c0_i32_0 = arith.constant 0 : i32
    %c0_i32_1 = arith.constant 0 : i32
    return %c0_i32, %c0_i32_0 : i32, i32
  }
  func.func @transform_13(%arg0: i32) -> (i32, i32) {
    %c0_i32 = arith.constant 0 : i32
    %c0_i32_0 = arith.constant 0 : i32
    %c0_i32_1 = arith.constant 0 : i32
    return %c0_i32, %c0_i32_0 : i32, i32
  }
  func.func @transform_14(%arg0: i32) -> (i32, i32) {
    %c0_i32 = arith.constant 0 : i32
    %c0_i32_0 = arith.constant 0 : i32
    %c0_i32_1 = arith.constant 0 : i32
    return %c0_i32, %c0_i32_0 : i32, i32
  }
  func.func @transform_15(%arg0: i32) -> (i32, i32) {
    %c0_i32 = arith.constant 0 : i32
    %c0_i32_0 = arith.constant 0 : i32
    %c0_i32_1 = arith.constant 0 : i32
    return %c0_i32, %c0_i32_0 : i32, i32
  }
  func.func @transform_16(%arg0: i32) -> (i32, i32) {
    %c0_i32 = arith.constant 0 : i32
    %c0_i32_0 = arith.constant 0 : i32
    %c0_i32_1 = arith.constant 0 : i32
    return %c0_i32, %c0_i32_0 : i32, i32
  }
  func.func @transform_17(%arg0: i32) -> (i32, i32) {
    %c0_i32 = arith.constant 0 : i32
    %c0_i32_0 = arith.constant 0 : i32
    %c0_i32_1 = arith.constant 0 : i32
    return %c0_i32, %c0_i32_0 : i32, i32
  }
  func.func @transform_18(%arg0: i32) -> (i32, i32) {
    %c0_i32 = arith.constant 0 : i32
    %c0_i32_0 = arith.constant 0 : i32
    %c0_i32_1 = arith.constant 0 : i32
    return %c0_i32, %c0_i32_0 : i32, i32
  }
  func.func @transform_19(%arg0: i32) -> (i32, i32) {
    %c0_i32 = arith.constant 0 : i32
    %c0_i32_0 = arith.constant 0 : i32
    return %c0_i32, %arg0 : i32, i32
  }
}

</mosaic_0001>

<llo_original>
// kernel: tpu_custom_call.1
$region0: #{tpu_custom_call.1}
  #allocation0 [shape = 'u32[]', space=smem, size = 0x4, offset = 0x4, fixed_abs, tag = 'smem constant byte address 0x4 - core index']
  #allocation1 [shape = 'u32[144,128]{1,0:T(1,128)}', space=vmem, size = 0x12000, scoped, tag = 'internal scratch']
  #allocation2 [shape = 'f32[1,1]{1,0:T(1,128)S(1)}', space=vmem, size = 0x200, scoped, tag = 'scoped memory for tpu_custom_call.1']
  %s0 = inlined_call_operand.vmem [shape: f32[8,1000], index: 0, kind: input, shape index: {}]
  %s1 = inlined_call_operand.vmem [shape: f32[40,8], index: 1, kind: input, shape index: {}]
  %s2 = inlined_call_operand.vmem [shape: f32[40,1], index: 2, kind: input, shape index: {}]
  %s3 = inlined_call_operand.vmem [shape: f32[32,40], index: 3, kind: input, shape index: {}]
  %s4 = inlined_call_operand.vmem [shape: f32[32,1], index: 4, kind: input, shape index: {}]
  %s5 = inlined_call_operand.vmem [shape: f32[32,32], index: 5, kind: input, shape index: {}]
  %s6 = inlined_call_operand.vmem [shape: f32[32,1], index: 6, kind: input, shape index: {}]
  %s7 = inlined_call_operand.vmem [shape: f32[32,32], index: 7, kind: input, shape index: {}]
  %s8 = inlined_call_operand.vmem [shape: f32[32,40], index: 8, kind: input, shape index: {}]
  %s9 = inlined_call_operand.vmem [shape: f32[32,1], index: 9, kind: input, shape index: {}]
  %s10 = inlined_call_operand.vmem [shape: f32[32,32], index: 10, kind: input, shape index: {}]
  %s11 = inlined_call_operand.vmem [shape: f32[32,1], index: 11, kind: input, shape index: {}]
  %s12 = inlined_call_operand.vmem [shape: f32[32,32], index: 12, kind: input, shape index: {}]
  %s13 = inlined_call_operand.vmem [shape: f32[32,40], index: 13, kind: input, shape index: {}]
  %s14 = inlined_call_operand.vmem [shape: f32[32,1], index: 14, kind: input, shape index: {}]
  %s15 = inlined_call_operand.vmem [shape: f32[16,32], index: 15, kind: input, shape index: {}]
  %s16 = inlined_call_operand.vmem [shape: f32[16,1], index: 16, kind: input, shape index: {}]
  %s17 = inlined_call_operand.vmem [shape: f32[1,16], index: 17, kind: input, shape index: {}]
  %s18 = inlined_call_operand.<no memory space> [shape: f32[1,1], index: 18, kind: input, shape index: {}]
  %s19 = inlined_call_operand.hbm [shape: f32[1,1000], index: 19, kind: output, shape index: {}]
  %s20 = sld [smem:[#allocation0]]
  $region109: #{tpu_custom_call.1} parent=0
    _
  %s22 = ssub.s32 1, %s20
  %s23 = scalar_select 0, %s22, %s20
  %v24 = vstv %s18
  %25 = vst [vmem:[#allocation2] sm:$0x1] %v24
  $region1: #{tpu_custom_call.1} parent=0
    #allocation3 [shape = 'u8[4096]{0}', space=vmem, size = 0x1000, scoped, tag = 'output window, operand 0']
    #allocation4 [shape = 's32[2]{0}', space=sflag, size = 0x8, scoped, tag = 'scoped memory for tpu_custom_call.1']
    %26 = vsyncpa [#allocation4], 0
    %s27 = scalar_lea.sflag [#allocation4], 1
    %28 = vsyncpa %s27, 0
    loop: start=0, step=1, limit=4
    $region2: #{tpu_custom_call.1} parent=1 // loop_pre_header
      _
    $region3: #{tpu_custom_call.1} parent=1 // loop_header
      %s30 = sphi 0, %s34
      %p31 = scmp.ge.s32.totalorder %s30, 4
      %s40 = sphi 0, %s42
      %s43 = sphi 0, %s40
      %s44 = sphi 0, %s43
      %s60 = sphi 0, %s44
      %s64 = sphi 0, %s64
      %s66 = sphi 0, %s64
      %s67 = sphi 0, %s66
      %s81 = sphi 0, %s67
      %s85 = sphi 0, %s85
      %s87 = sphi 0, %s85
      %s88 = sphi 0, %s87
      %s102 = sphi 0, %s88
      %s106 = sphi 0, %s106
      %s108 = sphi 0, %s106
      %s109 = sphi 0, %s108
      %s123 = sphi 0, %s109
      %s127 = sphi 0, %s127
      %s129 = sphi 0, %s127
      %s130 = sphi 0, %s129
      %s144 = sphi 0, %s130
      %s148 = sphi 0, %s148
      %s150 = sphi 0, %s148
      %s151 = sphi 0, %s150
      %s165 = sphi 0, %s151
      %s169 = sphi 0, %s169
      %s171 = sphi 0, %s169
      %s172 = sphi 0, %s171
      %s186 = sphi 0, %s172
      %s190 = sphi 0, %s190
      %s192 = sphi 0, %s190
      %s193 = sphi 0, %s192
      %s207 = sphi 0, %s193
      %s211 = sphi 0, %s211
      %s213 = sphi 0, %s211
      %s214 = sphi 0, %s213
      %s228 = sphi 0, %s214
      %s232 = sphi 0, %s232
      %s234 = sphi 0, %s232
      %s235 = sphi 0, %s234
      %s249 = sphi 0, %s235
      %s253 = sphi 0, %s253
      %s255 = sphi 0, %s253
      %s256 = sphi 0, %s255
      %s270 = sphi 0, %s256
      %s274 = sphi 0, %s274
      %s276 = sphi 0, %s274
      %s277 = sphi 0, %s276
      %s291 = sphi 0, %s277
      %s295 = sphi 0, %s295
      %s297 = sphi 0, %s295
      %s298 = sphi 0, %s297
      %s312 = sphi 0, %s298
      %s316 = sphi 0, %s316
      %s318 = sphi 0, %s316
      %s319 = sphi 0, %s318
      %s333 = sphi 0, %s319
      %s337 = sphi 0, %s337
      %s339 = sphi 0, %s337
      %s340 = sphi 0, %s339
      %s354 = sphi 0, %s340
      %s358 = sphi 0, %s358
      %s360 = sphi 0, %s358
      %s361 = sphi 0, %s360
      %s375 = sphi 0, %s361
      %s379 = sphi 0, %s379
      %s381 = sphi 0, %s379
      %s382 = sphi 0, %s381
      %s396 = sphi 0, %s382
      %s400 = sphi 0, %s400
      %s402 = sphi 0, %s400
      %s403 = sphi 0, %s402
      %s417 = sphi 0, %s403
      %s421 = sphi 0, %s421
      %s423 = sphi 0, %s421
      %s424 = sphi 0, %s423
      %s438 = sphi 0, %s424
      %s444 = sphi 0, %s446
      %s447 = sphi 0, %s444
      %s448 = sphi 0, %s447
      %s464 = sphi 0, %s448
    $region4: #{tpu_custom_call.1} parent=1 // loop_header_branch
      %33 = sbr.rel (%p31) target = $region8
    $region5: #{tpu_custom_call.1} parent=1 // loop_body
      %s35 = ssub.s32 %s30, 1
      %s36 = ssub.s32 %s30, 2
      %s37 = sadd.s32 %s30, 1
      %s38 = ssub.s32 %s30, %s37
      %p39 = scmp.eq.s32.totalorder %s38, 0
      %s41 = sadd.s32 %s40, 1
      %s42 = scalar_select %p39, %s40, %s41
      %p45 = pneg %p39
      %p46 = scmp.eq.s32.totalorder %s30, 1
      %p47 = por %p45, %p46
      %p48 = scmp.ne.s32.totalorder %s40, %s43
      %p49 = scmp.eq.s32.totalorder %s30, 0
      %p50 = por %p48, %p49
      %p51 = scmp.ne.s32.totalorder %s40, %s43
      %p52 = scmp.eq.s32.totalorder %s35, 1
      %p53 = por %p51, %p52
      %p54 = scmp.ne.s32.totalorder %s43, %s44
      %p55 = scmp.eq.s32.totalorder %s35, 0
      %p56 = por %p54, %p55
      %p57 = scmp.ne.s32.totalorder %s43, %s44
      %p58 = scmp.eq.s32.totalorder %s36, 1
      %p59 = por %p57, %p58
      %p61 = scmp.ne.s32.totalorder %s44, %s60
      %p62 = scmp.eq.s32.totalorder %s36, 0
      %p63 = por %p61, %p62
      %s65 = sadd.s32 %s64, 1
      %p68 = scmp.eq.s32.totalorder %s30, 1
      %p69 = scmp.ne.s32.totalorder %s64, %s66
      %p70 = scmp.eq.s32.totalorder %s30, 0
      %p71 = por %p69, %p70
      %p72 = scmp.ne.s32.totalorder %s64, %s66
      %p73 = scmp.eq.s32.totalorder %s35, 1
      %p74 = por %p72, %p73
      %p75 = scmp.ne.s32.totalorder %s66, %s67
      %p76 = scmp.eq.s32.totalorder %s35, 0
      %p77 = por %p75, %p76
      %p78 = scmp.ne.s32.totalorder %s66, %s67
      %p79 = scmp.eq.s32.totalorder %s36, 1
      %p80 = por %p78, %p79
      %p82 = scmp.ne.s32.totalorder %s67, %s81
      %p83 = scmp.eq.s32.totalorder %s36, 0
      %p84 = por %p82, %p83
      %s86 = sadd.s32 %s85, 1
      %p89 = scmp.eq.s32.totalorder %s30, 1
      %p90 = scmp.ne.s32.totalorder %s85, %s87
      %p91 = scmp.eq.s32.totalorder %s30, 0
      %p92 = por %p90, %p91
      %p93 = scmp.ne.s32.totalorder %s85, %s87
      %p94 = scmp.eq.s32.totalorder %s35, 1
      %p95 = por %p93, %p94
      %p96 = scmp.ne.s32.totalorder %s87, %s88
      %p97 = scmp.eq.s32.totalorder %s35, 0
      %p98 = por %p96, %p97
      %p99 = scmp.ne.s32.totalorder %s87, %s88
      %p100 = scmp.eq.s32.totalorder %s36, 1
      %p101 = por %p99, %p100
      %p103 = scmp.ne.s32.totalorder %s88, %s102
      %p104 = scmp.eq.s32.totalorder %s36, 0
      %p105 = por %p103, %p104
      %s107 = sadd.s32 %s106, 1
      %p110 = scmp.eq.s32.totalorder %s30, 1
      %p111 = scmp.ne.s32.totalorder %s106, %s108
      %p112 = scmp.eq.s32.totalorder %s30, 0
      %p113 = por %p111, %p112
      %p114 = scmp.ne.s32.totalorder %s106, %s108
      %p115 = scmp.eq.s32.totalorder %s35, 1
      %p116 = por %p114, %p115
      %p117 = scmp.ne.s32.totalorder %s108, %s109
      %p118 = scmp.eq.s32.totalorder %s35, 0
      %p119 = por %p117, %p118
      %p120 = scmp.ne.s32.totalorder %s108, %s109
      %p121 = scmp.eq.s32.totalorder %s36, 1
      %p122 = por %p120, %p121
      %p124 = scmp.ne.s32.totalorder %s109, %s123
      %p125 = scmp.eq.s32.totalorder %s36, 0
      %p126 = por %p124, %p125
      %s128 = sadd.s32 %s127, 1
      %p131 = scmp.eq.s32.totalorder %s30, 1
      %p132 = scmp.ne.s32.totalorder %s127, %s129
      %p133 = scmp.eq.s32.totalorder %s30, 0
      %p134 = por %p132, %p133
      %p135 = scmp.ne.s32.totalorder %s127, %s129
      %p136 = scmp.eq.s32.totalorder %s35, 1
      %p137 = por %p135, %p136
      %p138 = scmp.ne.s32.totalorder %s129, %s130
      %p139 = scmp.eq.s32.totalorder %s35, 0
      %p140 = por %p138, %p139
      %p141 = scmp.ne.s32.totalorder %s129, %s130
      %p142 = scmp.eq.s32.totalorder %s36, 1
      %p143 = por %p141, %p142
      %p145 = scmp.ne.s32.totalorder %s130, %s144
      %p146 = scmp.eq.s32.totalorder %s36, 0
      %p147 = por %p145, %p146
      %s149 = sadd.s32 %s148, 1
      %p152 = scmp.eq.s32.totalorder %s30, 1
      %p153 = scmp.ne.s32.totalorder %s148, %s150
      %p154 = scmp.eq.s32.totalorder %s30, 0
      %p155 = por %p153, %p154
      %p156 = scmp.ne.s32.totalorder %s148, %s150
      %p157 = scmp.eq.s32.totalorder %s35, 1
      %p158 = por %p156, %p157
      %p159 = scmp.ne.s32.totalorder %s150, %s151
      %p160 = scmp.eq.s32.totalorder %s35, 0
      %p161 = por %p159, %p160
      %p162 = scmp.ne.s32.totalorder %s150, %s151
      %p163 = scmp.eq.s32.totalorder %s36, 1
      %p164 = por %p162, %p163
      %p166 = scmp.ne.s32.totalorder %s151, %s165
      %p167 = scmp.eq.s32.totalorder %s36, 0
      %p168 = por %p166, %p167
      %s170 = sadd.s32 %s169, 1
      %p173 = scmp.eq.s32.totalorder %s30, 1
      %p174 = scmp.ne.s32.totalorder %s169, %s171
      %p175 = scmp.eq.s32.totalorder %s30, 0
      %p176 = por %p174, %p175
      %p177 = scmp.ne.s32.totalorder %s169, %s171
      %p178 = scmp.eq.s32.totalorder %s35, 1
      %p179 = por %p177, %p178
      %p180 = scmp.ne.s32.totalorder %s171, %s172
      %p181 = scmp.eq.s32.totalorder %s35, 0
      %p182 = por %p180, %p181
      %p183 = scmp.ne.s32.totalorder %s171, %s172
      %p184 = scmp.eq.s32.totalorder %s36, 1
      %p185 = por %p183, %p184
      %p187 = scmp.ne.s32.totalorder %s172, %s186
      %p188 = scmp.eq.s32.totalorder %s36, 0
      %p189 = por %p187, %p188
      %s191 = sadd.s32 %s190, 1
      %p194 = scmp.eq.s32.totalorder %s30, 1
      %p195 = scmp.ne.s32.totalorder %s190, %s192
      %p196 = scmp.eq.s32.totalorder %s30, 0
      %p197 = por %p195, %p196
      %p198 = scmp.ne.s32.totalorder %s190, %s192
      %p199 = scmp.eq.s32.totalorder %s35, 1
      %p200 = por %p198, %p199
      %p201 = scmp.ne.s32.totalorder %s192, %s193
      %p202 = scmp.eq.s32.totalorder %s35, 0
      %p203 = por %p201, %p202
      %p204 = scmp.ne.s32.totalorder %s192, %s193
      %p205 = scmp.eq.s32.totalorder %s36, 1
      %p206 = por %p204, %p205
      %p208 = scmp.ne.s32.totalorder %s193, %s207
      %p209 = scmp.eq.s32.totalorder %s36, 0
      %p210 = por %p208, %p209
      %s212 = sadd.s32 %s211, 1
      %p215 = scmp.eq.s32.totalorder %s30, 1
      %p216 = scmp.ne.s32.totalorder %s211, %s213
      %p217 = scmp.eq.s32.totalorder %s30, 0
      %p218 = por %p216, %p217
      %p219 = scmp.ne.s32.totalorder %s211, %s213
      %p220 = scmp.eq.s32.totalorder %s35, 1
      %p221 = por %p219, %p220
      %p222 = scmp.ne.s32.totalorder %s213, %s214
      %p223 = scmp.eq.s32.totalorder %s35, 0
      %p224 = por %p222, %p223
      %p225 = scmp.ne.s32.totalorder %s213, %s214
      %p226 = scmp.eq.s32.totalorder %s36, 1
      %p227 = por %p225, %p226
      %p229 = scmp.ne.s32.totalorder %s214, %s228
      %p230 = scmp.eq.s32.totalorder %s36, 0
      %p231 = por %p229, %p230
      %s233 = sadd.s32 %s232, 1
      %p236 = scmp.eq.s32.totalorder %s30, 1
      %p237 = scmp.ne.s32.totalorder %s232, %s234
      %p238 = scmp.eq.s32.totalorder %s30, 0
      %p239 = por %p237, %p238
      %p240 = scmp.ne.s32.totalorder %s232, %s234
      %p241 = scmp.eq.s32.totalorder %s35, 1
      %p242 = por %p240, %p241
      %p243 = scmp.ne.s32.totalorder %s234, %s235
      %p244 = scmp.eq.s32.totalorder %s35, 0
      %p245 = por %p243, %p244
      %p246 = scmp.ne.s32.totalorder %s234, %s235
      %p247 = scmp.eq.s32.totalorder %s36, 1
      %p248 = por %p246, %p247
      %p250 = scmp.ne.s32.totalorder %s235, %s249
      %p251 = scmp.eq.s32.totalorder %s36, 0
      %p252 = por %p250, %p251
      %s254 = sadd.s32 %s253, 1
      %p257 = scmp.eq.s32.totalorder %s30, 1
      %p258 = scmp.ne.s32.totalorder %s253, %s255
      %p259 = scmp.eq.s32.totalorder %s30, 0
      %p260 = por %p258, %p259
      %p261 = scmp.ne.s32.totalorder %s253, %s255
      %p262 = scmp.eq.s32.totalorder %s35, 1
      %p263 = por %p261, %p262
      %p264 = scmp.ne.s32.totalorder %s255, %s256
      %p265 = scmp.eq.s32.totalorder %s35, 0
      %p266 = por %p264, %p265
      %p267 = scmp.ne.s32.totalorder %s255, %s256
      %p268 = scmp.eq.s32.totalorder %s36, 1
      %p269 = por %p267, %p268
      %p271 = scmp.ne.s32.totalorder %s256, %s270
      %p272 = scmp.eq.s32.totalorder %s36, 0
      %p273 = por %p271, %p272
      %s275 = sadd.s32 %s274, 1
      %p278 = scmp.eq.s32.totalorder %s30, 1
      %p279 = scmp.ne.s32.totalorder %s274, %s276
      %p280 = scmp.eq.s32.totalorder %s30, 0
      %p281 = por %p279, %p280
      %p282 = scmp.ne.s32.totalorder %s274, %s276
      %p283 = scmp.eq.s32.totalorder %s35, 1
      %p284 = por %p282, %p283
      %p285 = scmp.ne.s32.totalorder %s276, %s277
      %p286 = scmp.eq.s32.totalorder %s35, 0
      %p287 = por %p285, %p286
      %p288 = scmp.ne.s32.totalorder %s276, %s277
      %p289 = scmp.eq.s32.totalorder %s36, 1
      %p290 = por %p288, %p289
      %p292 = scmp.ne.s32.totalorder %s277, %s291
      %p293 = scmp.eq.s32.totalorder %s36, 0
      %p294 = por %p292, %p293
      %s296 = sadd.s32 %s295, 1
      %p299 = scmp.eq.s32.totalorder %s30, 1
      %p300 = scmp.ne.s32.totalorder %s295, %s297
      %p301 = scmp.eq.s32.totalorder %s30, 0
      %p302 = por %p300, %p301
      %p303 = scmp.ne.s32.totalorder %s295, %s297
      %p304 = scmp.eq.s32.totalorder %s35, 1
      %p305 = por %p303, %p304
      %p306 = scmp.ne.s32.totalorder %s297, %s298
      %p307 = scmp.eq.s32.totalorder %s35, 0
      %p308 = por %p306, %p307
      %p309 = scmp.ne.s32.totalorder %s297, %s298
      %p310 = scmp.eq.s32.totalorder %s36, 1
      %p311 = por %p309, %p310
      %p313 = scmp.ne.s32.totalorder %s298, %s312
      %p314 = scmp.eq.s32.totalorder %s36, 0
      %p315 = por %p313, %p314
      %s317 = sadd.s32 %s316, 1
      %p320 = scmp.eq.s32.totalorder %s30, 1
      %p321 = scmp.ne.s32.totalorder %s316, %s318
      %p322 = scmp.eq.s32.totalorder %s30, 0
      %p323 = por %p321, %p322
      %p324 = scmp.ne.s32.totalorder %s316, %s318
      %p325 = scmp.eq.s32.totalorder %s35, 1
      %p326 = por %p324, %p325
      %p327 = scmp.ne.s32.totalorder %s318, %s319
      %p328 = scmp.eq.s32.totalorder %s35, 0
      %p329 = por %p327, %p328
      %p330 = scmp.ne.s32.totalorder %s318, %s319
      %p331 = scmp.eq.s32.totalorder %s36, 1
      %p332 = por %p330, %p331
      %p334 = scmp.ne.s32.totalorder %s319, %s333
      %p335 = scmp.eq.s32.totalorder %s36, 0
      %p336 = por %p334, %p335
      %s338 = sadd.s32 %s337, 1
      %p341 = scmp.eq.s32.totalorder %s30, 1
      %p342 = scmp.ne.s32.totalorder %s337, %s339
      %p343 = scmp.eq.s32.totalorder %s30, 0
      %p344 = por %p342, %p343
      %p345 = scmp.ne.s32.totalorder %s337, %s339
      %p346 = scmp.eq.s32.totalorder %s35, 1
      %p347 = por %p345, %p346
      %p348 = scmp.ne.s32.totalorder %s339, %s340
      %p349 = scmp.eq.s32.totalorder %s35, 0
      %p350 = por %p348, %p349
      %p351 = scmp.ne.s32.totalorder %s339, %s340
      %p352 = scmp.eq.s32.totalorder %s36, 1
      %p353 = por %p351, %p352
      %p355 = scmp.ne.s32.totalorder %s340, %s354
      %p356 = scmp.eq.s32.totalorder %s36, 0
      %p357 = por %p355, %p356
      %s359 = sadd.s32 %s358, 1
      %p362 = scmp.eq.s32.totalorder %s30, 1
      %p363 = scmp.ne.s32.totalorder %s358, %s360
      %p364 = scmp.eq.s32.totalorder %s30, 0
      %p365 = por %p363, %p364
      %p366 = scmp.ne.s32.totalorder %s358, %s360
      %p367 = scmp.eq.s32.totalorder %s35, 1
      %p368 = por %p366, %p367
      %p369 = scmp.ne.s32.totalorder %s360, %s361
      %p370 = scmp.eq.s32.totalorder %s35, 0
      %p371 = por %p369, %p370
      %p372 = scmp.ne.s32.totalorder %s360, %s361
      %p373 = scmp.eq.s32.totalorder %s36, 1
      %p374 = por %p372, %p373
      %p376 = scmp.ne.s32.totalorder %s361, %s375
      %p377 = scmp.eq.s32.totalorder %s36, 0
      %p378 = por %p376, %p377
      %s380 = sadd.s32 %s379, 1
      %p383 = scmp.eq.s32.totalorder %s30, 1
      %p384 = scmp.ne.s32.totalorder %s379, %s381
      %p385 = scmp.eq.s32.totalorder %s30, 0
      %p386 = por %p384, %p385
      %p387 = scmp.ne.s32.totalorder %s379, %s381
      %p388 = scmp.eq.s32.totalorder %s35, 1
      %p389 = por %p387, %p388
      %p390 = scmp.ne.s32.totalorder %s381, %s382
      %p391 = scmp.eq.s32.totalorder %s35, 0
      %p392 = por %p390, %p391
      %p393 = scmp.ne.s32.totalorder %s381, %s382
      %p394 = scmp.eq.s32.totalorder %s36, 1
      %p395 = por %p393, %p394
      %p397 = scmp.ne.s32.totalorder %s382, %s396
      %p398 = scmp.eq.s32.totalorder %s36, 0
      %p399 = por %p397, %p398
      %s401 = sadd.s32 %s400, 1
      %p404 = scmp.eq.s32.totalorder %s30, 1
      %p405 = scmp.ne.s32.totalorder %s400, %s402
      %p406 = scmp.eq.s32.totalorder %s30, 0
      %p407 = por %p405, %p406
      %p408 = scmp.ne.s32.totalorder %s400, %s402
      %p409 = scmp.eq.s32.totalorder %s35, 1
      %p410 = por %p408, %p409
      %p411 = scmp.ne.s32.totalorder %s402, %s403
      %p412 = scmp.eq.s32.totalorder %s35, 0
      %p413 = por %p411, %p412
      %p414 = scmp.ne.s32.totalorder %s402, %s403
      %p415 = scmp.eq.s32.totalorder %s36, 1
      %p416 = por %p414, %p415
      %p418 = scmp.ne.s32.totalorder %s403, %s417
      %p419 = scmp.eq.s32.totalorder %s36, 0
      %p420 = por %p418, %p419
      %s422 = sadd.s32 %s421, 1
      %p425 = scmp.eq.s32.totalorder %s30, 1
      %p426 = scmp.ne.s32.totalorder %s421, %s423
      %p427 = scmp.eq.s32.totalorder %s30, 0
      %p428 = por %p426, %p427
      %p429 = scmp.ne.s32.totalorder %s421, %s423
      %p430 = scmp.eq.s32.totalorder %s35, 1
      %p431 = por %p429, %p430
      %p432 = scmp.ne.s32.totalorder %s423, %s424
      %p433 = scmp.eq.s32.totalorder %s35, 0
      %p434 = por %p432, %p433
      %p435 = scmp.ne.s32.totalorder %s423, %s424
      %p436 = scmp.eq.s32.totalorder %s36, 1
      %p437 = por %p435, %p436
      %p439 = scmp.ne.s32.totalorder %s424, %s438
      %p440 = scmp.eq.s32.totalorder %s36, 0
      %p441 = por %p439, %p440
      %s442 = ssub.s32 %s30, %s37
      %p443 = scmp.eq.s32.totalorder %s442, 0
      %s445 = sadd.s32 %s444, 1
      %s446 = scalar_select %p443, %s444, %s445
      %p449 = pneg %p443
      %p450 = scmp.eq.s32.totalorder %s30, 1
      %p451 = por %p449, %p450
      %p452 = scmp.ne.s32.totalorder %s444, %s447
      %p453 = scmp.eq.s32.totalorder %s30, 0
      %p454 = por %p452, %p453
      %p455 = scmp.ne.s32.totalorder %s444, %s447
      %p456 = scmp.eq.s32.totalorder %s35, 1
      %p457 = por %p455, %p456
      %p458 = scmp.ne.s32.totalorder %s447, %s448
      %p459 = scmp.eq.s32.totalorder %s35, 0
      %p460 = por %p458, %p459
      %p461 = scmp.ne.s32.totalorder %s447, %s448
      %p462 = scmp.eq.s32.totalorder %s36, 1
      %p463 = por %p461, %p462
      %p465 = scmp.ne.s32.totalorder %s448, %s464
      %p466 = scmp.eq.s32.totalorder %s36, 0
      %p467 = por %p465, %p466
      %p468 = scmp.le.s32.totalorder 1, %s30
      %p469 = scmp.lt.s32.totalorder %s30, 3
      %p470 = pnand %p468, %p469
      %p471 = pneg %p470
      // Predicated region
      $region9: #{tpu_custom_call.1} parent=5 // pred_check
        _
      $region10: #{tpu_custom_call.1} parent=5 // pred_check_branch
        %473 = sbr.rel (%p470) target = $region12
      $region11: #{tpu_custom_call.1} parent=5 // pred_region
        %s474 = ssub.s32 %s30, 1
        // Predicated region
        $region13: #{tpu_custom_call.1} parent=11 // pred_check
          %p475 = pneg %p77
        $region14: #{tpu_custom_call.1} parent=11 // pred_check_branch
          %477 = sbr.rel (%p475) target = $region16
        $region15: #{tpu_custom_call.1} parent=11 // pred_region
          _
        $region16: #{tpu_custom_call.1} parent=11 // pred_fallthru
          _
        // Predicated region
        $region17: #{tpu_custom_call.1} parent=11 // pred_check
          %p478 = pneg %p98
        $region18: #{tpu_custom_call.1} parent=11 // pred_check_branch
          %480 = sbr.rel (%p478) target = $region20
        $region19: #{tpu_custom_call.1} parent=11 // pred_region
          _
        $region20: #{tpu_custom_call.1} parent=11 // pred_fallthru
          _
        // Predicated region
        $region21: #{tpu_custom_call.1} parent=11 // pred_check
          %p481 = pneg %p119
        $region22: #{tpu_custom_call.1} parent=11 // pred_check_branch
          %483 = sbr.rel (%p481) target = $region24
        $region23: #{tpu_custom_call.1} parent=11 // pred_region
          _
        $region24: #{tpu_custom_call.1} parent=11 // pred_fallthru
          _
        // Predicated region
        $region25: #{tpu_custom_call.1} parent=11 // pred_check
          %p484 = pneg %p140
        $region26: #{tpu_custom_call.1} parent=11 // pred_check_branch
          %486 = sbr.rel (%p484) target = $region28
        $region27: #{tpu_custom_call.1} parent=11 // pred_region
          _
        $region28: #{tpu_custom_call.1} parent=11 // pred_fallthru
          _
        // Predicated region
        $region29: #{tpu_custom_call.1} parent=11 // pred_check
          %p487 = pneg %p161
        $region30: #{tpu_custom_call.1} parent=11 // pred_check_branch
          %489 = sbr.rel (%p487) target = $region32
        $region31: #{tpu_custom_call.1} parent=11 // pred_region
          _
        $region32: #{tpu_custom_call.1} parent=11 // pred_fallthru
          _
        // Predicated region
        $region33: #{tpu_custom_call.1} parent=11 // pred_check
          %p490 = pneg %p182
        $region34: #{tpu_custom_call.1} parent=11 // pred_check_branch
          %492 = sbr.rel (%p490) target = $region36
        $region35: #{tpu_custom_call.1} parent=11 // pred_region
          _
        $region36: #{tpu_custom_call.1} parent=11 // pred_fallthru
          _
        // Predicated region
        $region37: #{tpu_custom_call.1} parent=11 // pred_check
          %p493 = pneg %p203
        $region38: #{tpu_custom_call.1} parent=11 // pred_check_branch
          %495 = sbr.rel (%p493) target = $region40
        $region39: #{tpu_custom_call.1} parent=11 // pred_region
          _
        $region40: #{tpu_custom_call.1} parent=11 // pred_fallthru
          _
        // Predicated region
        $region41: #{tpu_custom_call.1} parent=11 // pred_check
          %p496 = pneg %p224
        $region42: #{tpu_custom_call.1} parent=11 // pred_check_branch
          %498 = sbr.rel (%p496) target = $region44
        $region43: #{tpu_custom_call.1} parent=11 // pred_region
          _
        $region44: #{tpu_custom_call.1} parent=11 // pred_fallthru
          _
        // Predicated region
        $region45: #{tpu_custom_call.1} parent=11 // pred_check
          %p499 = pneg %p245
        $region46: #{tpu_custom_call.1} parent=11 // pred_check_branch
          %501 = sbr.rel (%p499) target = $region48
        $region47: #{tpu_custom_call.1} parent=11 // pred_region
          _
        $region48: #{tpu_custom_call.1} parent=11 // pred_fallthru
          _
        // Predicated region
        $region49: #{tpu_custom_call.1} parent=11 // pred_check
          %p502 = pneg %p266
        $region50: #{tpu_custom_call.1} parent=11 // pred_check_branch
          %504 = sbr.rel (%p502) target = $region52
        $region51: #{tpu_custom_call.1} parent=11 // pred_region
          _
        $region52: #{tpu_custom_call.1} parent=11 // pred_fallthru
          _
        // Predicated region
        $region53: #{tpu_custom_call.1} parent=11 // pred_check
          %p505 = pneg %p287
        $region54: #{tpu_custom_call.1} parent=11 // pred_check_branch
          %507 = sbr.rel (%p505) target = $region56
        $region55: #{tpu_custom_call.1} parent=11 // pred_region
          _
        $region56: #{tpu_custom_call.1} parent=11 // pred_fallthru
          _
        // Predicated region
        $region57: #{tpu_custom_call.1} parent=11 // pred_check
          %p508 = pneg %p308
        $region58: #{tpu_custom_call.1} parent=11 // pred_check_branch
          %510 = sbr.rel (%p508) target = $region60
        $region59: #{tpu_custom_call.1} parent=11 // pred_region
          _
        $region60: #{tpu_custom_call.1} parent=11 // pred_fallthru
          _
        // Predicated region
        $region61: #{tpu_custom_call.1} parent=11 // pred_check
          %p511 = pneg %p329
        $region62: #{tpu_custom_call.1} parent=11 // pred_check_branch
          %513 = sbr.rel (%p511) target = $region64
        $region63: #{tpu_custom_call.1} parent=11 // pred_region
          _
        $region64: #{tpu_custom_call.1} parent=11 // pred_fallthru
          _
        // Predicated region
        $region65: #{tpu_custom_call.1} parent=11 // pred_check
          %p514 = pneg %p350
        $region66: #{tpu_custom_call.1} parent=11 // pred_check_branch
          %516 = sbr.rel (%p514) target = $region68
        $region67: #{tpu_custom_call.1} parent=11 // pred_region
          _
        $region68: #{tpu_custom_call.1} parent=11 // pred_fallthru
          _
        // Predicated region
        $region69: #{tpu_custom_call.1} parent=11 // pred_check
          %p517 = pneg %p371
        $region70: #{tpu_custom_call.1} parent=11 // pred_check_branch
          %519 = sbr.rel (%p517) target = $region72
        $region71: #{tpu_custom_call.1} parent=11 // pred_region
          _
        $region72: #{tpu_custom_call.1} parent=11 // pred_fallthru
          _
        // Predicated region
        $region73: #{tpu_custom_call.1} parent=11 // pred_check
          %p520 = pneg %p392
        $region74: #{tpu_custom_call.1} parent=11 // pred_check_branch
          %522 = sbr.rel (%p520) target = $region76
        $region75: #{tpu_custom_call.1} parent=11 // pred_region
          _
        $region76: #{tpu_custom_call.1} parent=11 // pred_fallthru
          _
        // Predicated region
        $region77: #{tpu_custom_call.1} parent=11 // pred_check
          %p523 = pneg %p413
        $region78: #{tpu_custom_call.1} parent=11 // pred_check_branch
          %525 = sbr.rel (%p523) target = $region80
        $region79: #{tpu_custom_call.1} parent=11 // pred_region
          _
        $region80: #{tpu_custom_call.1} parent=11 // pred_fallthru
          _
        // Predicated region
        $region81: #{tpu_custom_call.1} parent=11 // pred_check
          %p526 = pneg %p434
        $region82: #{tpu_custom_call.1} parent=11 // pred_check_branch
          %528 = sbr.rel (%p526) target = $region84
        $region83: #{tpu_custom_call.1} parent=11 // pred_region
          _
        $region84: #{tpu_custom_call.1} parent=11 // pred_fallthru
          _
      $region12: #{tpu_custom_call.1} parent=5 // pred_fallthru
        _
      %p529 = scmp.lt.s32.totalorder %s30, 2
      // Predicated region
      $region85: #{tpu_custom_call.1} parent=5 // pred_check
        %p530 = pneg %p529
      $region86: #{tpu_custom_call.1} parent=5 // pred_check_branch
        %532 = sbr.rel (%p530) target = $region88
      $region87: #{tpu_custom_call.1} parent=5 // pred_region
        // Predicated region
        $region89: #{tpu_custom_call.1} parent=87 // pred_check
          %p533 = pneg %p50
        $region90: #{tpu_custom_call.1} parent=87 // pred_check_branch
          %535 = sbr.rel (%p533) target = $region92
        $region91: #{tpu_custom_call.1} parent=87 // pred_region
          %s536 = smul.u32 4, %s30
          %p537 = scmp.lt.s32.totalorder %s536, 7
          %s538 = scalar_select %p537, %s536, 7
          %s539 = smul.addr %s538, 8
          %s540 = scalar_lea.vmem %s0, %s539
          %s541 = smul.u32 4, %s30
        $region92: #{tpu_custom_call.1} parent=87 // pred_fallthru
          _
      $region88: #{tpu_custom_call.1} parent=5 // pred_fallthru
        _
      %p542 = scmp.le.s32.totalorder 1, %s30
      %p543 = scmp.lt.s32.totalorder %s30, 3
      %p544 = pnand %p542, %p543
      %p545 = pneg %p544
      // Predicated region
      $region93: #{tpu_custom_call.1} parent=5 // pred_check
        _
      $region94: #{tpu_custom_call.1} parent=5 // pred_check_branch
        %547 = sbr.rel (%p544) target = $region96
      $region95: #{tpu_custom_call.1} parent=5 // pred_region
        %s548 = ssub.s32 %s30, 1
        %s549 = smul.u32 4, %s35
        %p550 = scmp.lt.s32.totalorder %s549, 7
        %s551 = scalar_select %p550, %s549, 7
        %s552 = smul.addr %s551, 8
        %s553 = scalar_lea.vmem %s0, %s552
        %p554 = pneg %p56
        %p555 = pneg %p53
        %p556 = pneg %p77
        %p557 = pneg %p74
        %p558 = pneg %p98
        %p559 = pneg %p95
        %p560 = pneg %p119
        %p561 = pneg %p116
        %p562 = pneg %p140
        %p563 = pneg %p137
        %p564 = pneg %p161
        %p565 = pneg %p158
        %p566 = pneg %p182
        %p567 = pneg %p179
        %p568 = pneg %p203
        %p569 = pneg %p200
        %p570 = pneg %p224
        %p571 = pneg %p221
        %p572 = pneg %p245
        %p573 = pneg %p242
        %p574 = pneg %p266
        %p575 = pneg %p263
        %p576 = pneg %p287
        %p577 = pneg %p284
        %p578 = pneg %p308
        %p579 = pneg %p305
        %p580 = pneg %p329
        %p581 = pneg %p326
        %p582 = pneg %p350
        %p583 = pneg %p347
        %p584 = pneg %p371
        %p585 = pneg %p368
        %p586 = pneg %p392
        %p587 = pneg %p389
        %p588 = pneg %p413
        %p589 = pneg %p410
        %p590 = pneg %p434
        %p591 = pneg %p431
        %p592 = pneg %p460
        %p593 = pneg %p457
        %s594 = sand.u32 %s447, 1
        %s595 = scalar_lea.sflag [#allocation4], %s594
        %s596 = sand.u32 %s447, 1
        %s597 = smul.addr %s596, 4
        %s598 = scalar_lea.vmem [#allocation3], %s597
        %s599 = smul.u32 4, %s35
        %p600 = scmp.lt.s32.totalorder %s599, 7
        %s601 = scalar_select %p600, %s599, 7
        %s602 = smul.addr %s601, 8
        %s603 = scalar_lea.vmem %s0, %s602
        %s604 = smul.u32 4, %s35
        %s605 = smul.u32 4, %s35
        %v606 = vld [vmem:[%s603] sm:$0xff]
        %v607 = vld [vmem:[%s603 + $0x8] sm:$0xff]
        %v608 = vld [vmem:[%s603 + $0x10] sm:$0xff]
        %v609 = vld [vmem:[%s603 + $0x18] sm:$0xff]
        %v610 = vld [vmem:[%s1] sm:$0xff]
        %v611 = vld [vmem:[%s1 + $0x8] sm:$0xff]
        %v612 = vld [vmem:[%s1 + $0x10] sm:$0xff]
        %v613 = vld [vmem:[%s1 + $0x18] sm:$0xff]
        %v614 = vld [vmem:[%s1 + $0x20] sm:$0xff]
        %v615 = vld [vmem:[%s2] sm:$0xff]
        %v616 = vld [vmem:[%s2 + $0x8] sm:$0xff]
        %v617 = vld [vmem:[%s2 + $0x10] sm:$0xff]
        %v618 = vld [vmem:[%s2 + $0x18] sm:$0xff]
        %v619 = vld [vmem:[%s2 + $0x20] sm:$0xff]
        %621 = vset.pattern.permute.xlu0 0
        %622 = vperm.xlu0 %621, %v615
        %v623 = vpop.permute.xlu0 %622
        %626 = vset.pattern.permute.xlu0 0
        %627 = vperm.xlu0 %626, %v616
        %v628 = vpop.permute.xlu0 %627
        %631 = vset.pattern.permute.xlu0 0
        %632 = vperm.xlu0 %631, %v617
        %v633 = vpop.permute.xlu0 %632
        %636 = vset.pattern.permute.xlu0 0
        %637 = vperm.xlu0 %636, %v618
        %v638 = vpop.permute.xlu0 %637
        %641 = vset.pattern.permute.xlu0 0
        %642 = vperm.xlu0 %641, %v619
        %v643 = vpop.permute.xlu0 %642
        %vm645 = vcmask 64512
        %v647 = vsel %vm645, %v610, 0
        %v650 = vsel %vm645, %v611, 0
        %v653 = vsel %vm645, %v612, 0
        %v656 = vsel %vm645, %v613, 0
        %v659 = vsel %vm645, %v614, 0
        %661 = vmatprep.subr.mxu0 %v607
        %662 = vmatpush1.msra.mxu0 %v606
        %663 = vmatprep.subr.mxu0 0.0
        %664 = vmatpush1.msra.mxu0 0.0
        %665 = vmatprep.subr.mxu0 0.0
        %666 = vmatpush1.msra.mxu0 0.0
        %667 = vmatprep.subr.mxu0 0.0
        %668 = vmatpush1.msra.mxu0 0.0
        %669 = vmatprep.subr.mxu0 0.0
        %670 = vmatpush1.msra.mxu0 0.0
        %671 = vmatprep.subr.mxu0 0.0
        %672 = vmatpush1.msra.mxu0 0.0
        %673 = vmatprep.subr.mxu0 0.0
        %674 = vmatpush1.msra.mxu0 0.0
        %675 = vmatprep.subr.mxu0 0.0
        %676 = vmatpush1.msra.mxu0 0.0
        %677 = vmatprep.subr.mxu0 0.0
        %678 = vmatpush1.msra.mxu0 0.0
        %679 = vmatprep.subr.mxu0 0.0
        %680 = vmatpush1.msra.mxu0 0.0
        %681 = vmatprep.subr.mxu0 0.0
        %682 = vmatpush1.msra.mxu0 0.0
        %683 = vmatprep.subr.mxu0 0.0
        %684 = vmatpush1.msra.mxu0 0.0
        %685 = vmatprep.subr.mxu0 0.0
        %686 = vmatpush1.msra.mxu0 0.0
        %687 = vmatprep.subr.mxu0 0.0
        %688 = vmatpush1.msra.mxu0 0.0
        %689 = vmatprep.subr.mxu0 0.0
        %690 = vmatpush1.msra.mxu0 0.0
        %691 = vmatprep.subr.mxu0 0.0
        %692 = vmatpush1.msra.mxu0 0.0
        %693 = vmatprep.subr.mxu0 0.0
        %694 = vmatpush1.msra.mxu0 0.0
        %695 = vmatprep.subr.mxu0 0.0
        %696 = vmatpush1.msra.mxu0 0.0
        %697 = vmatprep.subr.mxu0 0.0
        %698 = vmatpush1.msra.mxu0 0.0
        %699 = vmatprep.subr.mxu0 0.0
        %700 = vmatpush1.msra.mxu0 0.0
        %701 = vmatprep.subr.mxu0 0.0
        %702 = vmatpush1.msra.mxu0 0.0
        %703 = vmatprep.subr.mxu0 0.0
        %704 = vmatpush1.msra.mxu0 0.0
        %705 = vmatprep.subr.mxu0 0.0
        %706 = vmatpush1.msra.mxu0 0.0
        %707 = vmatprep.subr.mxu0 0.0
        %708 = vmatpush1.msra.mxu0 0.0
        %709 = vmatprep.subr.mxu0 0.0
        %710 = vmatpush1.msra.mxu0 0.0
        %711 = vmatprep.subr.mxu0 0.0
        %712 = vmatpush1.msra.mxu0 0.0
        %713 = vmatprep.subr.mxu0 0.0
        %714 = vmatpush1.msra.mxu0 0.0
        %715 = vmatprep.subr.mxu0 0.0
        %716 = vmatpush1.msra.mxu0 0.0
        %717 = vmatprep.subr.mxu0 0.0
        %718 = vmatpush1.msra.mxu0 0.0
        %719 = vmatprep.subr.mxu0 0.0
        %720 = vmatpush1.msra.mxu0 0.0
        %721 = vmatprep.subr.mxu0 0.0
        %722 = vmatpush1.msra.mxu0 0.0
        %723 = vmatprep.subr.mxu0 0.0
        %724 = vmatpush1.msra.mxu0 0.0
        %725 = vmatprep.mubr.f32.mxu0 0.0
        %726 = vmatmul.mubr.f32.gmra.mrb[0].mxu0 %v647
        %v727 = vpop.f32.mrb[0].mxu0
        %v728 = vadd.f32 %v623, %v727
        %v729 = vpop.f32.mrb[0].mxu0
        %v730 = vadd.f32 %v623, %v729
        %731 = vmatprep.mubr.f32.mxu0 0.0
        %732 = vmatmul.mubr.f32.gmra.mrb[0].mxu0 %v650
        %v733 = vpop.f32.mrb[0].mxu0
        %v734 = vadd.f32 %v628, %v733
        %v735 = vpop.f32.mrb[0].mxu0
        %v736 = vadd.f32 %v628, %v735
        %737 = vmatprep.mubr.f32.mxu0 0.0
        %738 = vmatmul.mubr.f32.gmra.mrb[0].mxu0 %v653
        %v739 = vpop.f32.mrb[0].mxu0
        %v740 = vadd.f32 %v633, %v739
        %v741 = vpop.f32.mrb[0].mxu0
        %v742 = vadd.f32 %v633, %v741
        %743 = vmatprep.mubr.f32.mxu0 0.0
        %744 = vmatmul.mubr.f32.gmra.mrb[0].mxu0 %v656
        %v745 = vpop.f32.mrb[0].mxu0
        %v746 = vadd.f32 %v638, %v745
        %v747 = vpop.f32.mrb[0].mxu0
        %v748 = vadd.f32 %v638, %v747
        %749 = vmatprep.mubr.f32.mxu0 0.0
        %750 = vmatmul.mubr.f32.gmra.mrb[0].mxu0 %v659
        %v751 = vpop.f32.mrb[0].mxu0
        %v752 = vadd.f32 %v643, %v751
        %v753 = vpop.f32.mrb[0].mxu0
        %v754 = vadd.f32 %v643, %v753
        %755 = vdwg.mxu0
        %756 = vmatprep.subr.mxu0 %v609
        %757 = vmatpush1.msra.mxu0 %v608
        %758 = vmatprep.subr.mxu0 0.0
        %759 = vmatpush1.msra.mxu0 0.0
        %760 = vmatprep.subr.mxu0 0.0
        %761 = vmatpush1.msra.mxu0 0.0
        %762 = vmatprep.subr.mxu0 0.0
        %763 = vmatpush1.msra.mxu0 0.0
        %764 = vmatprep.subr.mxu0 0.0
        %765 = vmatpush1.msra.mxu0 0.0
        %766 = vmatprep.subr.mxu0 0.0
        %767 = vmatpush1.msra.mxu0 0.0
        %768 = vmatprep.subr.mxu0 0.0
        %769 = vmatpush1.msra.mxu0 0.0
        %770 = vmatprep.subr.mxu0 0.0
        %771 = vmatpush1.msra.mxu0 0.0
        %772 = vmatprep.subr.mxu0 0.0
        %773 = vmatpush1.msra.mxu0 0.0
        %774 = vmatprep.subr.mxu0 0.0
        %775 = vmatpush1.msra.mxu0 0.0
        %776 = vmatprep.subr.mxu0 0.0
        %777 = vmatpush1.msra.mxu0 0.0
        %778 = vmatprep.subr.mxu0 0.0
        %779 = vmatpush1.msra.mxu0 0.0
        %780 = vmatprep.subr.mxu0 0.0
        %781 = vmatpush1.msra.mxu0 0.0
        %782 = vmatprep.subr.mxu0 0.0
        %783 = vmatpush1.msra.mxu0 0.0
        %784 = vmatprep.subr.mxu0 0.0
        %785 = vmatpush1.msra.mxu0 0.0
        %786 = vmatprep.subr.mxu0 0.0
        %787 = vmatpush1.msra.mxu0 0.0
        %788 = vmatprep.subr.mxu0 0.0
        %789 = vmatpush1.msra.mxu0 0.0
        %790 = vmatprep.subr.mxu0 0.0
        %791 = vmatpush1.msra.mxu0 0.0
        %792 = vmatprep.subr.mxu0 0.0
        %793 = vmatpush1.msra.mxu0 0.0
        %794 = vmatprep.subr.mxu0 0.0
        %795 = vmatpush1.msra.mxu0 0.0
        %796 = vmatprep.subr.mxu0 0.0
        %797 = vmatpush1.msra.mxu0 0.0
        %798 = vmatprep.subr.mxu0 0.0
        %799 = vmatpush1.msra.mxu0 0.0
        %800 = vmatprep.subr.mxu0 0.0
        %801 = vmatpush1.msra.mxu0 0.0
        %802 = vmatprep.subr.mxu0 0.0
        %803 = vmatpush1.msra.mxu0 0.0
        %804 = vmatprep.subr.mxu0 0.0
        %805 = vmatpush1.msra.mxu0 0.0
        %806 = vmatprep.subr.mxu0 0.0
        %807 = vmatpush1.msra.mxu0 0.0
        %808 = vmatprep.subr.mxu0 0.0
        %809 = vmatpush1.msra.mxu0 0.0
        %810 = vmatprep.subr.mxu0 0.0
        %811 = vmatpush1.msra.mxu0 0.0
        %812 = vmatprep.subr.mxu0 0.0
        %813 = vmatpush1.msra.mxu0 0.0
        %814 = vmatprep.subr.mxu0 0.0
        %815 = vmatpush1.msra.mxu0 0.0
        %816 = vmatprep.subr.mxu0 0.0
        %817 = vmatpush1.msra.mxu0 0.0
        %818 = vmatprep.subr.mxu0 0.0
        %819 = vmatpush1.msra.mxu0 0.0
        %820 = vmatprep.mubr.f32.mxu0 0.0
        %821 = vmatmul.mubr.f32.gmra.mrb[0].mxu0 %v647
        %v822 = vpop.f32.mrb[0].mxu0
        %v823 = vadd.f32 %v623, %v822
        %v824 = vpop.f32.mrb[0].mxu0
        %v825 = vadd.f32 %v623, %v824
        %826 = vmatprep.mubr.f32.mxu0 0.0
        %827 = vmatmul.mubr.f32.gmra.mrb[0].mxu0 %v650
        %v828 = vpop.f32.mrb[0].mxu0
        %v829 = vadd.f32 %v628, %v828
        %v830 = vpop.f32.mrb[0].mxu0
        %v831 = vadd.f32 %v628, %v830
        %832 = vmatprep.mubr.f32.mxu0 0.0
        %833 = vmatmul.mubr.f32.gmra.mrb[0].mxu0 %v653
        %v834 = vpop.f32.mrb[0].mxu0
        %v835 = vadd.f32 %v633, %v834
        %v836 = vpop.f32.mrb[0].mxu0
        %v837 = vadd.f32 %v633, %v836
        %838 = vmatprep.mubr.f32.mxu0 0.0
        %839 = vmatmul.mubr.f32.gmra.mrb[0].mxu0 %v656
        %v840 = vpop.f32.mrb[0].mxu0
        %v841 = vadd.f32 %v638, %v840
        %v842 = vpop.f32.mrb[0].mxu0
        %v843 = vadd.f32 %v638, %v842
        %844 = vmatprep.mubr.f32.mxu0 0.0
        %845 = vmatmul.mubr.f32.gmra.mrb[0].mxu0 %v659
        %v846 = vpop.f32.mrb[0].mxu0
        %v847 = vadd.f32 %v643, %v846
        %v848 = vpop.f32.mrb[0].mxu0
        %v849 = vadd.f32 %v643, %v848
        %850 = vdwg.mxu0
        %v851 = vand.u32 2147483647, %v728
        %vm852 = vcmp.le.f32.partialorder %v851, 0.7853982
        %vm853 = vcmp.lt.s32.totalorder %v728, 0
        %v854 = vand.u32 %v728, 2139095040
        %v855 = vshrl.u32 %v854, 23
        %v856 = vsub.s32 %v855, 127
        %v857 = vand.u32 2147483647, %v728
        %v858 = vand.u32 %v857, 8388607
        %v859 = vor.u32 %v858, 8388608
        %v860 = vsub.s32 0, %v859
        %v861 = vadd.s32 %v856, 1
        %vm862 = vcmp.gt.s32.totalorder %v861, 0
        %v863 = vsel %vm862, %v861, 0
        %v864 = vshrl.u32 %v863, 5
        %v865 = vand.u32 %v863, 31
        %v866 = vsub.s32 32, %v865
        %v867 = vshrl.u32 683565275, %v866
        %v868 = vshll.u32 683565275, %v865
        %v869 = vshrl.u32 2475754826, %v866
        %v870 = vor.u32 %v868, %v869
        %v871 = vshll.u32 2475754826, %v865
        %v872 = vshrl.u32 2131351028, %v866
        %v873 = vor.u32 %v871, %v872
        %v874 = vshll.u32 2131351028, %v865
        %v875 = vshrl.u32 2102212464, %v866
        %v876 = vor.u32 %v874, %v875
        %v877 = vshll.u32 2102212464, %v865
        %v878 = vshrl.u32 920167782, %v866
        %v879 = vor.u32 %v877, %v878
        %v880 = vshll.u32 920167782, %v865
        %v881 = vshrl.u32 1326507024, %v866
        %v882 = vor.u32 %v880, %v881
        %vm883 = vcmp.lt.s32.totalorder %v864, 1
        %vm884 = vcmp.lt.s32.totalorder %v864, 2
        %vm885 = vcmp.lt.s32.totalorder %v864, 3
        %vm886 = vcmp.lt.s32.totalorder %v864, 4
        %v887 = vsel %vm883, %v867, %v870
        %v888 = vsel %vm886, %v876, 2102212464
        %v889 = vsel %vm885, %v873, %v888
        %v890 = vsel %vm884, %v887, %v889
        %v891 = vsel %vm883, %v870, %v873
        %v892 = vsel %vm886, %v879, 920167782
        %v893 = vsel %vm885, %v876, %v892
        %v894 = vsel %vm884, %v891, %v893
        %v895 = vsel %vm883, %v873, %v876
        %v896 = vsel %vm886, %v882, 1326507024
        %v897 = vsel %vm885, %v879, %v896
        %v898 = vsel %vm884, %v895, %v897
        %v899 = vshll.u32 %v859, 8
        %v900 = vmul.u32.u64.compose %v899, %v898
        %v901 = vextract.low.u32 %v900
        %v902 = vextract.high.u32 %v900
        %v903 = vmul.u32.u64.compose %v899, %v894
        %v904 = vextract.low.u32 %v903
        %v905 = vextract.high.u32 %v903
        %v906 = vmul.u32 %v899, %v890
        %v907 = vadd.s32 %v902, %v904
        %vm908 = vc.u32 %v902, %v904
        %v909 = vadd.s32 %v905, 1
        %v910 = vsel %vm908, %v909, %v905
        %v911 = vadd.s32 %v906, %v910
        %v912 = vadd.s32 %v911, 536870912
        %v913 = vshrl.u32 %v912, 30
        %v914 = vshll.u32 %v913, 30
        %v915 = vsub.s32 %v911, %v914
        %vm916 = vcmp.lt.s32.totalorder %v915, 0
        %v917 = vsub.s32 0, %v915
        %v918 = vsel %vm916, %v917, %v915
        %v919 = vclz %v918
        %v920 = vsub.s32 %v919, 2
        %vm921 = vcmp.gt.s32.totalorder 0, %v920
        %v922 = vsel %vm921, 0, %v920
        %v923 = vsub.s32 32, %v922
        %v924 = vshll.u32 %v915, %v922
        %v925 = vshrl.u32 %v907, %v923
        %v926 = vor.u32 %v924, %v925
        %v927 = vsub.s32 4294967266, %v922
        %v928 = vadd.s32 %v927, 127
        %v929 = vshll.u32 %v928, 23
        %v930 = vor.u32 4788187, %v929
        %v931 = vand.u32 2147483647, %v930
        %v933 = vcvt.s32.f32 %v926
        %v934 = vmul.f32 %v933, %v931
        %v935 = vxor.u32 %v934, 2147483648
        %v936 = vsel %vm853, %v935, %v934
        %v937 = vsub.s32 4, %v913
        %v938 = vsel %vm853, %v937, %v913
        %v939 = vsel %vm852, %v728, %v936
        %v940 = vsel %vm852, 0, %v938
        %v941 = vcosq.f32.pop %v939
        %v942 = vsinq.f32.pop %v939
        %vm943 = vweird.f32 %v728
        %v944 = vadd.s32 %v940, 3
        %v945 = vand.u32 %v944, 3
        %vm946 = vcmp.lt.s32.totalorder %v945, 2
        %vm947 = vcmp.eq.s32.totalorder %v945, 0
        %v948 = vxor.u32 %v942, 2147483648
        %v949 = vsel %vm947, %v941, %v948
        %vm950 = vcmp.eq.s32.totalorder %v945, 2
        %v951 = vxor.u32 %v941, 2147483648
        %v952 = vsel %vm950, %v951, %v942
        %v953 = vsel %vm946, %v949, %v952
        %v954 = vsel %vm943, nan, %v953
        %v955 = vand.u32 2147483647, %v730
        %vm956 = vcmp.le.f32.partialorder %v955, 0.7853982
        %vm957 = vcmp.lt.s32.totalorder %v730, 0
        %v958 = vand.u32 %v730, 2139095040
        %v959 = vshrl.u32 %v958, 23
        %v960 = vsub.s32 %v959, 127
        %v961 = vand.u32 2147483647, %v730
        %v962 = vand.u32 %v961, 8388607
        %v963 = vor.u32 %v962, 8388608
        %v964 = vsub.s32 0, %v963
        %v965 = vadd.s32 %v960, 1
        %vm966 = vcmp.gt.s32.totalorder %v965, 0
        %v967 = vsel %vm966, %v965, 0
        %v968 = vshrl.u32 %v967, 5
        %v969 = vand.u32 %v967, 31
        %v970 = vsub.s32 32, %v969
        %v971 = vshrl.u32 683565275, %v970
        %v972 = vshll.u32 683565275, %v969
        %v973 = vshrl.u32 2475754826, %v970
        %v974 = vor.u32 %v972, %v973
        %v975 = vshll.u32 2475754826, %v969
        %v976 = vshrl.u32 2131351028, %v970
        %v977 = vor.u32 %v975, %v976
        %v978 = vshll.u32 2131351028, %v969
        %v979 = vshrl.u32 2102212464, %v970
        %v980 = vor.u32 %v978, %v979
        %v981 = vshll.u32 2102212464, %v969
        %v982 = vshrl.u32 920167782, %v970
        %v983 = vor.u32 %v981, %v982
        %v984 = vshll.u32 920167782, %v969
        %v985 = vshrl.u32 1326507024, %v970
        %v986 = vor.u32 %v984, %v985
        %vm987 = vcmp.lt.s32.totalorder %v968, 1
        %vm988 = vcmp.lt.s32.totalorder %v968, 2
        %vm989 = vcmp.lt.s32.totalorder %v968, 3
        %vm990 = vcmp.lt.s32.totalorder %v968, 4
        %v991 = vsel %vm987, %v971, %v974
        %v992 = vsel %vm990, %v980, 2102212464
        %v993 = vsel %vm989, %v977, %v992
        %v994 = vsel %vm988, %v991, %v993
        %v995 = vsel %vm987, %v974, %v977
        %v996 = vsel %vm990, %v983, 920167782
        %v997 = vsel %vm989, %v980, %v996
        %v998 = vsel %vm988, %v995, %v997
        %v999 = vsel %vm987, %v977, %v980
        %v1000 = vsel %vm990, %v986, 1326507024
        %v1001 = vsel %vm989, %v983, %v1000
        %v1002 = vsel %vm988, %v999, %v1001
        %v1003 = vshll.u32 %v963, 8
        %v1004 = vmul.u32.u64.compose %v1003, %v1002
        %v1005 = vextract.low.u32 %v1004
        %v1006 = vextract.high.u32 %v1004
        %v1007 = vmul.u32.u64.compose %v1003, %v998
        %v1008 = vextract.low.u32 %v1007
        %v1009 = vextract.high.u32 %v1007
        %v1010 = vmul.u32 %v1003, %v994
        %v1011 = vadd.s32 %v1006, %v1008
        %vm1012 = vc.u32 %v1006, %v1008
        %v1013 = vadd.s32 %v1009, 1
        %v1014 = vsel %vm1012, %v1013, %v1009
        %v1015 = vadd.s32 %v1010, %v1014
        %v1016 = vadd.s32 %v1015, 536870912
        %v1017 = vshrl.u32 %v1016, 30
        %v1018 = vshll.u32 %v1017, 30
        %v1019 = vsub.s32 %v1015, %v1018
        %vm1020 = vcmp.lt.s32.totalorder %v1019, 0
        %v1021 = vsub.s32 0, %v1019
        %v1022 = vsel %vm1020, %v1021, %v1019
        %v1023 = vclz %v1022
        %v1024 = vsub.s32 %v1023, 2
        %vm1025 = vcmp.gt.s32.totalorder 0, %v1024
        %v1026 = vsel %vm1025, 0, %v1024
        %v1027 = vsub.s32 32, %v1026
        %v1028 = vshll.u32 %v1019, %v1026
        %v1029 = vshrl.u32 %v1011, %v1027
        %v1030 = vor.u32 %v1028, %v1029
        %v1031 = vsub.s32 4294967266, %v1026
        %v1032 = vadd.s32 %v1031, 127
        %v1033 = vshll.u32 %v1032, 23
        %v1034 = vor.u32 4788187, %v1033
        %v1035 = vand.u32 2147483647, %v1034
        %v1037 = vcvt.s32.f32 %v1030
        %v1038 = vmul.f32 %v1037, %v1035
        %v1039 = vxor.u32 %v1038, 2147483648
        %v1040 = vsel %vm957, %v1039, %v1038
        %v1041 = vsub.s32 4, %v1017
        %v1042 = vsel %vm957, %v1041, %v1017
        %v1043 = vsel %vm956, %v730, %v1040
        %v1044 = vsel %vm956, 0, %v1042
        %v1045 = vcosq.f32.pop %v1043
        %v1046 = vsinq.f32.pop %v1043
        %vm1047 = vweird.f32 %v730
        %v1048 = vadd.s32 %v1044, 3
        %v1049 = vand.u32 %v1048, 3
        %vm1050 = vcmp.lt.s32.totalorder %v1049, 2
        %vm1051 = vcmp.eq.s32.totalorder %v1049, 0
        %v1052 = vxor.u32 %v1046, 2147483648
        %v1053 = vsel %vm1051, %v1045, %v1052
        %vm1054 = vcmp.eq.s32.totalorder %v1049, 2
        %v1055 = vxor.u32 %v1045, 2147483648
        %v1056 = vsel %vm1054, %v1055, %v1046
        %v1057 = vsel %vm1050, %v1053, %v1056
        %v1058 = vsel %vm1047, nan, %v1057
        %v1059 = vand.u32 2147483647, %v823
        %vm1060 = vcmp.le.f32.partialorder %v1059, 0.7853982
        %vm1061 = vcmp.lt.s32.totalorder %v823, 0
        %v1062 = vand.u32 %v823, 2139095040
        %v1063 = vshrl.u32 %v1062, 23
        %v1064 = vsub.s32 %v1063, 127
        %v1065 = vand.u32 2147483647, %v823
        %v1066 = vand.u32 %v1065, 8388607
        %v1067 = vor.u32 %v1066, 8388608
        %v1068 = vsub.s32 0, %v1067
        %v1069 = vadd.s32 %v1064, 1
        %vm1070 = vcmp.gt.s32.totalorder %v1069, 0
        %v1071 = vsel %vm1070, %v1069, 0
        %v1072 = vshrl.u32 %v1071, 5
        %v1073 = vand.u32 %v1071, 31
        %v1074 = vsub.s32 32, %v1073
        %v1075 = vshrl.u32 683565275, %v1074
        %v1076 = vshll.u32 683565275, %v1073
        %v1077 = vshrl.u32 2475754826, %v1074
        %v1078 = vor.u32 %v1076, %v1077
        %v1079 = vshll.u32 2475754826, %v1073
        %v1080 = vshrl.u32 2131351028, %v1074
        %v1081 = vor.u32 %v1079, %v1080
        %v1082 = vshll.u32 2131351028, %v1073
        %v1083 = vshrl.u32 2102212464, %v1074
        %v1084 = vor.u32 %v1082, %v1083
        %v1085 = vshll.u32 2102212464, %v1073
        %v1086 = vshrl.u32 920167782, %v1074
        %v1087 = vor.u32 %v1085, %v1086
        %v1088 = vshll.u32 920167782, %v1073
        %v1089 = vshrl.u32 1326507024, %v1074
        %v1090 = vor.u32 %v1088, %v1089
        %vm1091 = vcmp.lt.s32.totalorder %v1072, 1
        %vm1092 = vcmp.lt.s32.totalorder %v1072, 2
        %vm1093 = vcmp.lt.s32.totalorder %v1072, 3
        %vm1094 = vcmp.lt.s32.totalorder %v1072, 4
        %v1095 = vsel %vm1091, %v1075, %v1078
        %v1096 = vsel %vm1094, %v1084, 2102212464
        %v1097 = vsel %vm1093, %v1081, %v1096
        %v1098 = vsel %vm1092, %v1095, %v1097
        %v1099 = vsel %vm1091, %v1078, %v1081
        %v1100 = vsel %vm1094, %v1087, 920167782
        %v1101 = vsel %vm1093, %v1084, %v1100
        %v1102 = vsel %vm1092, %v1099, %v1101
        %v1103 = vsel %vm1091, %v1081, %v1084
        %v1104 = vsel %vm1094, %v1090, 1326507024
        %v1105 = vsel %vm1093, %v1087, %v1104
        %v1106 = vsel %vm1092, %v1103, %v1105
        %v1107 = vshll.u32 %v1067, 8
        %v1108 = vmul.u32.u64.compose %v1107, %v1106
        %v1109 = vextract.low.u32 %v1108
        %v1110 = vextract.high.u32 %v1108
        %v1111 = vmul.u32.u64.compose %v1107, %v1102
        %v1112 = vextract.low.u32 %v1111
        %v1113 = vextract.high.u32 %v1111
        %v1114 = vmul.u32 %v1107, %v1098
        %v1115 = vadd.s32 %v1110, %v1112
        %vm1116 = vc.u32 %v1110, %v1112
        %v1117 = vadd.s32 %v1113, 1
        %v1118 = vsel %vm1116, %v1117, %v1113
        %v1119 = vadd.s32 %v1114, %v1118
        %v1120 = vadd.s32 %v1119, 536870912
        %v1121 = vshrl.u32 %v1120, 30
        %v1122 = vshll.u32 %v1121, 30
        %v1123 = vsub.s32 %v1119, %v1122
        %vm1124 = vcmp.lt.s32.totalorder %v1123, 0
        %v1125 = vsub.s32 0, %v1123
        %v1126 = vsel %vm1124, %v1125, %v1123
        %v1127 = vclz %v1126
        %v1128 = vsub.s32 %v1127, 2
        %vm1129 = vcmp.gt.s32.totalorder 0, %v1128
        %v1130 = vsel %vm1129, 0, %v1128
        %v1131 = vsub.s32 32, %v1130
        %v1132 = vshll.u32 %v1123, %v1130
        %v1133 = vshrl.u32 %v1115, %v1131
        %v1134 = vor.u32 %v1132, %v1133
        %v1135 = vsub.s32 4294967266, %v1130
        %v1136 = vadd.s32 %v1135, 127
        %v1137 = vshll.u32 %v1136, 23
        %v1138 = vor.u32 4788187, %v1137
        %v1139 = vand.u32 2147483647, %v1138
        %v1141 = vcvt.s32.f32 %v1134
        %v1142 = vmul.f32 %v1141, %v1139
        %v1143 = vxor.u32 %v1142, 2147483648
        %v1144 = vsel %vm1061, %v1143, %v1142
        %v1145 = vsub.s32 4, %v1121
        %v1146 = vsel %vm1061, %v1145, %v1121
        %v1147 = vsel %vm1060, %v823, %v1144
        %v1148 = vsel %vm1060, 0, %v1146
        %v1149 = vcosq.f32.pop %v1147
        %v1150 = vsinq.f32.pop %v1147
        %vm1151 = vweird.f32 %v823
        %v1152 = vadd.s32 %v1148, 3
        %v1153 = vand.u32 %v1152, 3
        %vm1154 = vcmp.lt.s32.totalorder %v1153, 2
        %vm1155 = vcmp.eq.s32.totalorder %v1153, 0
        %v1156 = vxor.u32 %v1150, 2147483648
        %v1157 = vsel %vm1155, %v1149, %v1156
        %vm1158 = vcmp.eq.s32.totalorder %v1153, 2
        %v1159 = vxor.u32 %v1149, 2147483648
        %v1160 = vsel %vm1158, %v1159, %v1150
        %v1161 = vsel %vm1154, %v1157, %v1160
        %v1162 = vsel %vm1151, nan, %v1161
        %v1163 = vand.u32 2147483647, %v825
        %vm1164 = vcmp.le.f32.partialorder %v1163, 0.7853982
        %vm1165 = vcmp.lt.s32.totalorder %v825, 0
        %v1166 = vand.u32 %v825, 2139095040
        %v1167 = vshrl.u32 %v1166, 23
        %v1168 = vsub.s32 %v1167, 127
        %v1169 = vand.u32 2147483647, %v825
        %v1170 = vand.u32 %v1169, 8388607
        %v1171 = vor.u32 %v1170, 8388608
        %v1172 = vsub.s32 0, %v1171
        %v1173 = vadd.s32 %v1168, 1
        %vm1174 = vcmp.gt.s32.totalorder %v1173, 0
        %v1175 = vsel %vm1174, %v1173, 0
        %v1176 = vshrl.u32 %v1175, 5
        %v1177 = vand.u32 %v1175, 31
        %v1178 = vsub.s32 32, %v1177
        %v1179 = vshrl.u32 683565275, %v1178
        %v1180 = vshll.u32 683565275, %v1177
        %v1181 = vshrl.u32 2475754826, %v1178
        %v1182 = vor.u32 %v1180, %v1181
        %v1183 = vshll.u32 2475754826, %v1177
        %v1184 = vshrl.u32 2131351028, %v1178
        %v1185 = vor.u32 %v1183, %v1184
        %v1186 = vshll.u32 2131351028, %v1177
        %v1187 = vshrl.u32 2102212464, %v1178
        %v1188 = vor.u32 %v1186, %v1187
        %v1189 = vshll.u32 2102212464, %v1177
        %v1190 = vshrl.u32 920167782, %v1178
        %v1191 = vor.u32 %v1189, %v1190
        %v1192 = vshll.u32 920167782, %v1177
        %v1193 = vshrl.u32 1326507024, %v1178
        %v1194 = vor.u32 %v1192, %v1193
        %vm1195 = vcmp.lt.s32.totalorder %v1176, 1
        %vm1196 = vcmp.lt.s32.totalorder %v1176, 2
        %vm1197 = vcmp.lt.s32.totalorder %v1176, 3
        %vm1198 = vcmp.lt.s32.totalorder %v1176, 4
        %v1199 = vsel %vm1195, %v1179, %v1182
        %v1200 = vsel %vm1198, %v1188, 2102212464
        %v1201 = vsel %vm1197, %v1185, %v1200
        %v1202 = vsel %vm1196, %v1199, %v1201
        %v1203 = vsel %vm1195, %v1182, %v1185
        %v1204 = vsel %vm1198, %v1191, 920167782
        %v1205 = vsel %vm1197, %v1188, %v1204
        %v1206 = vsel %vm1196, %v1203, %v1205
        %v1207 = vsel %vm1195, %v1185, %v1188
        %v1208 = vsel %vm1198, %v1194, 1326507024
        %v1209 = vsel %vm1197, %v1191, %v1208
        %v1210 = vsel %vm1196, %v1207, %v1209
        %v1211 = vshll.u32 %v1171, 8
        %v1212 = vmul.u32.u64.compose %v1211, %v1210
        %v1213 = vextract.low.u32 %v1212
        %v1214 = vextract.high.u32 %v1212
        %v1215 = vmul.u32.u64.compose %v1211, %v1206
        %v1216 = vextract.low.u32 %v1215
        %v1217 = vextract.high.u32 %v1215
        %v1218 = vmul.u32 %v1211, %v1202
        %v1219 = vadd.s32 %v1214, %v1216
        %vm1220 = vc.u32 %v1214, %v1216
        %v1221 = vadd.s32 %v1217, 1
        %v1222 = vsel %vm1220, %v1221, %v1217
        %v1223 = vadd.s32 %v1218, %v1222
        %v1224 = vadd.s32 %v1223, 536870912
        %v1225 = vshrl.u32 %v1224, 30
        %v1226 = vshll.u32 %v1225, 30
        %v1227 = vsub.s32 %v1223, %v1226
        %vm1228 = vcmp.lt.s32.totalorder %v1227, 0
        %v1229 = vsub.s32 0, %v1227
        %v1230 = vsel %vm1228, %v1229, %v1227
        %v1231 = vclz %v1230
        %v1232 = vsub.s32 %v1231, 2
        %vm1233 = vcmp.gt.s32.totalorder 0, %v1232
        %v1234 = vsel %vm1233, 0, %v1232
        %v1235 = vsub.s32 32, %v1234
        %v1236 = vshll.u32 %v1227, %v1234
        %v1237 = vshrl.u32 %v1219, %v1235
        %v1238 = vor.u32 %v1236, %v1237
        %v1239 = vsub.s32 4294967266, %v1234
        %v1240 = vadd.s32 %v1239, 127
        %v1241 = vshll.u32 %v1240, 23
        %v1242 = vor.u32 4788187, %v1241
        %v1243 = vand.u32 2147483647, %v1242
        %v1245 = vcvt.s32.f32 %v1238
        %v1246 = vmul.f32 %v1245, %v1243
        %v1247 = vxor.u32 %v1246, 2147483648
        %v1248 = vsel %vm1165, %v1247, %v1246
        %v1249 = vsub.s32 4, %v1225
        %v1250 = vsel %vm1165, %v1249, %v1225
        %v1251 = vsel %vm1164, %v825, %v1248
        %v1252 = vsel %vm1164, 0, %v1250
        %v1253 = vcosq.f32.pop %v1251
        %v1254 = vsinq.f32.pop %v1251
        %vm1255 = vweird.f32 %v825
        %v1256 = vadd.s32 %v1252, 3
        %v1257 = vand.u32 %v1256, 3
        %vm1258 = vcmp.lt.s32.totalorder %v1257, 2
        %vm1259 = vcmp.eq.s32.totalorder %v1257, 0
        %v1260 = vxor.u32 %v1254, 2147483648
        %v1261 = vsel %vm1259, %v1253, %v1260
        %vm1262 = vcmp.eq.s32.totalorder %v1257, 2
        %v1263 = vxor.u32 %v1253, 2147483648
        %v1264 = vsel %vm1262, %v1263, %v1254
        %v1265 = vsel %vm1258, %v1261, %v1264
        %v1266 = vsel %vm1255, nan, %v1265
        %v1267 = vand.u32 2147483647, %v734
        %vm1268 = vcmp.le.f32.partialorder %v1267, 0.7853982
        %vm1269 = vcmp.lt.s32.totalorder %v734, 0
        %v1270 = vand.u32 %v734, 2139095040
        %v1271 = vshrl.u32 %v1270, 23
        %v1272 = vsub.s32 %v1271, 127
        %v1273 = vand.u32 2147483647, %v734
        %v1274 = vand.u32 %v1273, 8388607
        %v1275 = vor.u32 %v1274, 8388608
        %v1276 = vsub.s32 0, %v1275
        %v1277 = vadd.s32 %v1272, 1
        %vm1278 = vcmp.gt.s32.totalorder %v1277, 0
        %v1279 = vsel %vm1278, %v1277, 0
        %v1280 = vshrl.u32 %v1279, 5
        %v1281 = vand.u32 %v1279, 31
        %v1282 = vsub.s32 32, %v1281
        %v1283 = vshrl.u32 683565275, %v1282
        %v1284 = vshll.u32 683565275, %v1281
        %v1285 = vshrl.u32 2475754826, %v1282
        %v1286 = vor.u32 %v1284, %v1285
        %v1287 = vshll.u32 2475754826, %v1281
        %v1288 = vshrl.u32 2131351028, %v1282
        %v1289 = vor.u32 %v1287, %v1288
        %v1290 = vshll.u32 2131351028, %v1281
        %v1291 = vshrl.u32 2102212464, %v1282
        %v1292 = vor.u32 %v1290, %v1291
        %v1293 = vshll.u32 2102212464, %v1281
        %v1294 = vshrl.u32 920167782, %v1282
        %v1295 = vor.u32 %v1293, %v1294
        %v1296 = vshll.u32 920167782, %v1281
        %v1297 = vshrl.u32 1326507024, %v1282
        %v1298 = vor.u32 %v1296, %v1297
        %vm1299 = vcmp.lt.s32.totalorder %v1280, 1
        %vm1300 = vcmp.lt.s32.totalorder %v1280, 2
        %vm1301 = vcmp.lt.s32.totalorder %v1280, 3
        %vm1302 = vcmp.lt.s32.totalorder %v1280, 4
        %v1303 = vsel %vm1299, %v1283, %v1286
        %v1304 = vsel %vm1302, %v1292, 2102212464
        %v1305 = vsel %vm1301, %v1289, %v1304
        %v1306 = vsel %vm1300, %v1303, %v1305
        %v1307 = vsel %vm1299, %v1286, %v1289
        %v1308 = vsel %vm1302, %v1295, 920167782
        %v1309 = vsel %vm1301, %v1292, %v1308
        %v1310 = vsel %vm1300, %v1307, %v1309
        %v1311 = vsel %vm1299, %v1289, %v1292
        %v1312 = vsel %vm1302, %v1298, 1326507024
        %v1313 = vsel %vm1301, %v1295, %v1312
        %v1314 = vsel %vm1300, %v1311, %v1313
        %v1315 = vshll.u32 %v1275, 8
        %v1316 = vmul.u32.u64.compose %v1315, %v1314
        %v1317 = vextract.low.u32 %v1316
        %v1318 = vextract.high.u32 %v1316
        %v1319 = vmul.u32.u64.compose %v1315, %v1310
        %v1320 = vextract.low.u32 %v1319
        %v1321 = vextract.high.u32 %v1319
        %v1322 = vmul.u32 %v1315, %v1306
        %v1323 = vadd.s32 %v1318, %v1320
        %vm1324 = vc.u32 %v1318, %v1320
        %v1325 = vadd.s32 %v1321, 1
        %v1326 = vsel %vm1324, %v1325, %v1321
        %v1327 = vadd.s32 %v1322, %v1326
        %v1328 = vadd.s32 %v1327, 536870912
        %v1329 = vshrl.u32 %v1328, 30
        %v1330 = vshll.u32 %v1329, 30
        %v1331 = vsub.s32 %v1327, %v1330
        %vm1332 = vcmp.lt.s32.totalorder %v1331, 0
        %v1333 = vsub.s32 0, %v1331
        %v1334 = vsel %vm1332, %v1333, %v1331
        %v1335 = vclz %v1334
        %v1336 = vsub.s32 %v1335, 2
        %vm1337 = vcmp.gt.s32.totalorder 0, %v1336
        %v1338 = vsel %vm1337, 0, %v1336
        %v1339 = vsub.s32 32, %v1338
        %v1340 = vshll.u32 %v1331, %v1338
        %v1341 = vshrl.u32 %v1323, %v1339
        %v1342 = vor.u32 %v1340, %v1341
        %v1343 = vsub.s32 4294967266, %v1338
        %v1344 = vadd.s32 %v1343, 127
        %v1345 = vshll.u32 %v1344, 23
        %v1346 = vor.u32 4788187, %v1345
        %v1347 = vand.u32 2147483647, %v1346
        %v1349 = vcvt.s32.f32 %v1342
        %v1350 = vmul.f32 %v1349, %v1347
        %v1351 = vxor.u32 %v1350, 2147483648
        %v1352 = vsel %vm1269, %v1351, %v1350
        %v1353 = vsub.s32 4, %v1329
        %v1354 = vsel %vm1269, %v1353, %v1329
        %v1355 = vsel %vm1268, %v734, %v1352
        %v1356 = vsel %vm1268, 0, %v1354
        %v1357 = vcosq.f32.pop %v1355
        %v1358 = vsinq.f32.pop %v1355
        %vm1359 = vweird.f32 %v734
        %v1360 = vadd.s32 %v1356, 3
        %v1361 = vand.u32 %v1360, 3
        %vm1362 = vcmp.lt.s32.totalorder %v1361, 2
        %vm1363 = vcmp.eq.s32.totalorder %v1361, 0
        %v1364 = vxor.u32 %v1358, 2147483648
        %v1365 = vsel %vm1363, %v1357, %v1364
        %vm1366 = vcmp.eq.s32.totalorder %v1361, 2
        %v1367 = vxor.u32 %v1357, 2147483648
        %v1368 = vsel %vm1366, %v1367, %v1358
        %v1369 = vsel %vm1362, %v1365, %v1368
        %v1370 = vsel %vm1359, nan, %v1369
        %v1371 = vand.u32 2147483647, %v736
        %vm1372 = vcmp.le.f32.partialorder %v1371, 0.7853982
        %vm1373 = vcmp.lt.s32.totalorder %v736, 0
        %v1374 = vand.u32 %v736, 2139095040
        %v1375 = vshrl.u32 %v1374, 23
        %v1376 = vsub.s32 %v1375, 127
        %v1377 = vand.u32 2147483647, %v736
        %v1378 = vand.u32 %v1377, 8388607
        %v1379 = vor.u32 %v1378, 8388608
        %v1380 = vsub.s32 0, %v1379
        %v1381 = vadd.s32 %v1376, 1
        %vm1382 = vcmp.gt.s32.totalorder %v1381, 0
        %v1383 = vsel %vm1382, %v1381, 0
        %v1384 = vshrl.u32 %v1383, 5
        %v1385 = vand.u32 %v1383, 31
        %v1386 = vsub.s32 32, %v1385
        %v1387 = vshrl.u32 683565275, %v1386
        %v1388 = vshll.u32 683565275, %v1385
        %v1389 = vshrl.u32 2475754826, %v1386
        %v1390 = vor.u32 %v1388, %v1389
        %v1391 = vshll.u32 2475754826, %v1385
        %v1392 = vshrl.u32 2131351028, %v1386
        %v1393 = vor.u32 %v1391, %v1392
        %v1394 = vshll.u32 2131351028, %v1385
        %v1395 = vshrl.u32 2102212464, %v1386
        %v1396 = vor.u32 %v1394, %v1395
        %v1397 = vshll.u32 2102212464, %v1385
        %v1398 = vshrl.u32 920167782, %v1386
        %v1399 = vor.u32 %v1397, %v1398
        %v1400 = vshll.u32 920167782, %v1385
        %v1401 = vshrl.u32 1326507024, %v1386
        %v1402 = vor.u32 %v1400, %v1401
        %vm1403 = vcmp.lt.s32.totalorder %v1384, 1
        %vm1404 = vcmp.lt.s32.totalorder %v1384, 2
        %vm1405 = vcmp.lt.s32.totalorder %v1384, 3
        %vm1406 = vcmp.lt.s32.totalorder %v1384, 4
        %v1407 = vsel %vm1403, %v1387, %v1390
        %v1408 = vsel %vm1406, %v1396, 2102212464
        %v1409 = vsel %vm1405, %v1393, %v1408
        %v1410 = vsel %vm1404, %v1407, %v1409
        %v1411 = vsel %vm1403, %v1390, %v1393
        %v1412 = vsel %vm1406, %v1399, 920167782
        %v1413 = vsel %vm1405, %v1396, %v1412
        %v1414 = vsel %vm1404, %v1411, %v1413
        %v1415 = vsel %vm1403, %v1393, %v1396
        %v1416 = vsel %vm1406, %v1402, 1326507024
        %v1417 = vsel %vm1405, %v1399, %v1416
        %v1418 = vsel %vm1404, %v1415, %v1417
        %v1419 = vshll.u32 %v1379, 8
        %v1420 = vmul.u32.u64.compose %v1419, %v1418
        %v1421 = vextract.low.u32 %v1420
        %v1422 = vextract.high.u32 %v1420
        %v1423 = vmul.u32.u64.compose %v1419, %v1414
        %v1424 = vextract.low.u32 %v1423
        %v1425 = vextract.high.u32 %v1423
        %v1426 = vmul.u32 %v1419, %v1410
        %v1427 = vadd.s32 %v1422, %v1424
        %vm1428 = vc.u32 %v1422, %v1424
        %v1429 = vadd.s32 %v1425, 1
        %v1430 = vsel %vm1428, %v1429, %v1425
        %v1431 = vadd.s32 %v1426, %v1430
        %v1432 = vadd.s32 %v1431, 536870912
        %v1433 = vshrl.u32 %v1432, 30
        %v1434 = vshll.u32 %v1433, 30
        %v1435 = vsub.s32 %v1431, %v1434
        %vm1436 = vcmp.lt.s32.totalorder %v1435, 0
        %v1437 = vsub.s32 0, %v1435
        %v1438 = vsel %vm1436, %v1437, %v1435
        %v1439 = vclz %v1438
        %v1440 = vsub.s32 %v1439, 2
        %vm1441 = vcmp.gt.s32.totalorder 0, %v1440
        %v1442 = vsel %vm1441, 0, %v1440
        %v1443 = vsub.s32 32, %v1442
        %v1444 = vshll.u32 %v1435, %v1442
        %v1445 = vshrl.u32 %v1427, %v1443
        %v1446 = vor.u32 %v1444, %v1445
        %v1447 = vsub.s32 4294967266, %v1442
        %v1448 = vadd.s32 %v1447, 127
        %v1449 = vshll.u32 %v1448, 23
        %v1450 = vor.u32 4788187, %v1449
        %v1451 = vand.u32 2147483647, %v1450
        %v1453 = vcvt.s32.f32 %v1446
        %v1454 = vmul.f32 %v1453, %v1451
        %v1455 = vxor.u32 %v1454, 2147483648
        %v1456 = vsel %vm1373, %v1455, %v1454
        %v1457 = vsub.s32 4, %v1433
        %v1458 = vsel %vm1373, %v1457, %v1433
        %v1459 = vsel %vm1372, %v736, %v1456
        %v1460 = vsel %vm1372, 0, %v1458
        %v1461 = vcosq.f32.pop %v1459
        %v1462 = vsinq.f32.pop %v1459
        %vm1463 = vweird.f32 %v736
        %v1464 = vadd.s32 %v1460, 3
        %v1465 = vand.u32 %v1464, 3
        %vm1466 = vcmp.lt.s32.totalorder %v1465, 2
        %vm1467 = vcmp.eq.s32.totalorder %v1465, 0
        %v1468 = vxor.u32 %v1462, 2147483648
        %v1469 = vsel %vm1467, %v1461, %v1468
        %vm1470 = vcmp.eq.s32.totalorder %v1465, 2
        %v1471 = vxor.u32 %v1461, 2147483648
        %v1472 = vsel %vm1470, %v1471, %v1462
        %v1473 = vsel %vm1466, %v1469, %v1472
        %v1474 = vsel %vm1463, nan, %v1473
        %v1475 = vand.u32 2147483647, %v829
        %vm1476 = vcmp.le.f32.partialorder %v1475, 0.7853982
        %vm1477 = vcmp.lt.s32.totalorder %v829, 0
        %v1478 = vand.u32 %v829, 2139095040
        %v1479 = vshrl.u32 %v1478, 23
        %v1480 = vsub.s32 %v1479, 127
        %v1481 = vand.u32 2147483647, %v829
        %v1482 = vand.u32 %v1481, 8388607
        %v1483 = vor.u32 %v1482, 8388608
        %v1484 = vsub.s32 0, %v1483
        %v1485 = vadd.s32 %v1480, 1
        %vm1486 = vcmp.gt.s32.totalorder %v1485, 0
        %v1487 = vsel %vm1486, %v1485, 0
        %v1488 = vshrl.u32 %v1487, 5
        %v1489 = vand.u32 %v1487, 31
        %v1490 = vsub.s32 32, %v1489
        %v1491 = vshrl.u32 683565275, %v1490
        %v1492 = vshll.u32 683565275, %v1489
        %v1493 = vshrl.u32 2475754826, %v1490
        %v1494 = vor.u32 %v1492, %v1493
        %v1495 = vshll.u32 2475754826, %v1489
        %v1496 = vshrl.u32 2131351028, %v1490
        %v1497 = vor.u32 %v1495, %v1496
        %v1498 = vshll.u32 2131351028, %v1489
        %v1499 = vshrl.u32 2102212464, %v1490
        %v1500 = vor.u32 %v1498, %v1499
        %v1501 = vshll.u32 2102212464, %v1489
        %v1502 = vshrl.u32 920167782, %v1490
        %v1503 = vor.u32 %v1501, %v1502
        %v1504 = vshll.u32 920167782, %v1489
        %v1505 = vshrl.u32 1326507024, %v1490
        %v1506 = vor.u32 %v1504, %v1505
        %vm1507 = vcmp.lt.s32.totalorder %v1488, 1
        %vm1508 = vcmp.lt.s32.totalorder %v1488, 2
        %vm1509 = vcmp.lt.s32.totalorder %v1488, 3
        %vm1510 = vcmp.lt.s32.totalorder %v1488, 4
        %v1511 = vsel %vm1507, %v1491, %v1494
        %v1512 = vsel %vm1510, %v1500, 2102212464
        %v1513 = vsel %vm1509, %v1497, %v1512
        %v1514 = vsel %vm1508, %v1511, %v1513
        %v1515 = vsel %vm1507, %v1494, %v1497
        %v1516 = vsel %vm1510, %v1503, 920167782
        %v1517 = vsel %vm1509, %v1500, %v1516
        %v1518 = vsel %vm1508, %v1515, %v1517
        %v1519 = vsel %vm1507, %v1497, %v1500
        %v1520 = vsel %vm1510, %v1506, 1326507024
        %v1521 = vsel %vm1509, %v1503, %v1520
        %v1522 = vsel %vm1508, %v1519, %v1521
        %v1523 = vshll.u32 %v1483, 8
        %v1524 = vmul.u32.u64.compose %v1523, %v1522
        %v1525 = vextract.low.u32 %v1524
        %v1526 = vextract.high.u32 %v1524
        %v1527 = vmul.u32.u64.compose %v1523, %v1518
        %v1528 = vextract.low.u32 %v1527
        %v1529 = vextract.high.u32 %v1527
        %v1530 = vmul.u32 %v1523, %v1514
        %v1531 = vadd.s32 %v1526, %v1528
        %vm1532 = vc.u32 %v1526, %v1528
        %v1533 = vadd.s32 %v1529, 1
        %v1534 = vsel %vm1532, %v1533, %v1529
        %v1535 = vadd.s32 %v1530, %v1534
        %v1536 = vadd.s32 %v1535, 536870912
        %v1537 = vshrl.u32 %v1536, 30
        %v1538 = vshll.u32 %v1537, 30
        %v1539 = vsub.s32 %v1535, %v1538
        %vm1540 = vcmp.lt.s32.totalorder %v1539, 0
        %v1541 = vsub.s32 0, %v1539
        %v1542 = vsel %vm1540, %v1541, %v1539
        %v1543 = vclz %v1542
        %v1544 = vsub.s32 %v1543, 2
        %vm1545 = vcmp.gt.s32.totalorder 0, %v1544
        %v1546 = vsel %vm1545, 0, %v1544
        %v1547 = vsub.s32 32, %v1546
        %v1548 = vshll.u32 %v1539, %v1546
        %v1549 = vshrl.u32 %v1531, %v1547
        %v1550 = vor.u32 %v1548, %v1549
        %v1551 = vsub.s32 4294967266, %v1546
        %v1552 = vadd.s32 %v1551, 127
        %v1553 = vshll.u32 %v1552, 23
        %v1554 = vor.u32 4788187, %v1553
        %v1555 = vand.u32 2147483647, %v1554
        %v1557 = vcvt.s32.f32 %v1550
        %v1558 = vmul.f32 %v1557, %v1555
        %v1559 = vxor.u32 %v1558, 2147483648
        %v1560 = vsel %vm1477, %v1559, %v1558
        %v1561 = vsub.s32 4, %v1537
        %v1562 = vsel %vm1477, %v1561, %v1537
        %v1563 = vsel %vm1476, %v829, %v1560
        %v1564 = vsel %vm1476, 0, %v1562
        %v1565 = vcosq.f32.pop %v1563
        %v1566 = vsinq.f32.pop %v1563
        %vm1567 = vweird.f32 %v829
        %v1568 = vadd.s32 %v1564, 3
        %v1569 = vand.u32 %v1568, 3
        %vm1570 = vcmp.lt.s32.totalorder %v1569, 2
        %vm1571 = vcmp.eq.s32.totalorder %v1569, 0
        %v1572 = vxor.u32 %v1566, 2147483648
        %v1573 = vsel %vm1571, %v1565, %v1572
        %vm1574 = vcmp.eq.s32.totalorder %v1569, 2
        %v1575 = vxor.u32 %v1565, 2147483648
        %v1576 = vsel %vm1574, %v1575, %v1566
        %v1577 = vsel %vm1570, %v1573, %v1576
        %v1578 = vsel %vm1567, nan, %v1577
        %v1579 = vand.u32 2147483647, %v831
        %vm1580 = vcmp.le.f32.partialorder %v1579, 0.7853982
        %vm1581 = vcmp.lt.s32.totalorder %v831, 0
        %v1582 = vand.u32 %v831, 2139095040
        %v1583 = vshrl.u32 %v1582, 23
        %v1584 = vsub.s32 %v1583, 127
        %v1585 = vand.u32 2147483647, %v831
        %v1586 = vand.u32 %v1585, 8388607
        %v1587 = vor.u32 %v1586, 8388608
        %v1588 = vsub.s32 0, %v1587
        %v1589 = vadd.s32 %v1584, 1
        %vm1590 = vcmp.gt.s32.totalorder %v1589, 0
        %v1591 = vsel %vm1590, %v1589, 0
        %v1592 = vshrl.u32 %v1591, 5
        %v1593 = vand.u32 %v1591, 31
        %v1594 = vsub.s32 32, %v1593
        %v1595 = vshrl.u32 683565275, %v1594
        %v1596 = vshll.u32 683565275, %v1593
        %v1597 = vshrl.u32 2475754826, %v1594
        %v1598 = vor.u32 %v1596, %v1597
        %v1599 = vshll.u32 2475754826, %v1593
        %v1600 = vshrl.u32 2131351028, %v1594
        %v1601 = vor.u32 %v1599, %v1600
        %v1602 = vshll.u32 2131351028, %v1593
        %v1603 = vshrl.u32 2102212464, %v1594
        %v1604 = vor.u32 %v1602, %v1603
        %v1605 = vshll.u32 2102212464, %v1593
        %v1606 = vshrl.u32 920167782, %v1594
        %v1607 = vor.u32 %v1605, %v1606
        %v1608 = vshll.u32 920167782, %v1593
        %v1609 = vshrl.u32 1326507024, %v1594
        %v1610 = vor.u32 %v1608, %v1609
        %vm1611 = vcmp.lt.s32.totalorder %v1592, 1
        %vm1612 = vcmp.lt.s32.totalorder %v1592, 2
        %vm1613 = vcmp.lt.s32.totalorder %v1592, 3
        %vm1614 = vcmp.lt.s32.totalorder %v1592, 4
        %v1615 = vsel %vm1611, %v1595, %v1598
        %v1616 = vsel %vm1614, %v1604, 2102212464
        %v1617 = vsel %vm1613, %v1601, %v1616
        %v1618 = vsel %vm1612, %v1615, %v1617
        %v1619 = vsel %vm1611, %v1598, %v1601
        %v1620 = vsel %vm1614, %v1607, 920167782
        %v1621 = vsel %vm1613, %v1604, %v1620
        %v1622 = vsel %vm1612, %v1619, %v1621
        %v1623 = vsel %vm1611, %v1601, %v1604
        %v1624 = vsel %vm1614, %v1610, 1326507024
        %v1625 = vsel %vm1613, %v1607, %v1624
        %v1626 = vsel %vm1612, %v1623, %v1625
        %v1627 = vshll.u32 %v1587, 8
        %v1628 = vmul.u32.u64.compose %v1627, %v1626
        %v1629 = vextract.low.u32 %v1628
        %v1630 = vextract.high.u32 %v1628
        %v1631 = vmul.u32.u64.compose %v1627, %v1622
        %v1632 = vextract.low.u32 %v1631
        %v1633 = vextract.high.u32 %v1631
        %v1634 = vmul.u32 %v1627, %v1618
        %v1635 = vadd.s32 %v1630, %v1632
        %vm1636 = vc.u32 %v1630, %v1632
        %v1637 = vadd.s32 %v1633, 1
        %v1638 = vsel %vm1636, %v1637, %v1633
        %v1639 = vadd.s32 %v1634, %v1638
        %v1640 = vadd.s32 %v1639, 536870912
        %v1641 = vshrl.u32 %v1640, 30
        %v1642 = vshll.u32 %v1641, 30
        %v1643 = vsub.s32 %v1639, %v1642
        %vm1644 = vcmp.lt.s32.totalorder %v1643, 0
        %v1645 = vsub.s32 0, %v1643
        %v1646 = vsel %vm1644, %v1645, %v1643
        %v1647 = vclz %v1646
        %v1648 = vsub.s32 %v1647, 2
        %vm1649 = vcmp.gt.s32.totalorder 0, %v1648
        %v1650 = vsel %vm1649, 0, %v1648
        %v1651 = vsub.s32 32, %v1650
        %v1652 = vshll.u32 %v1643, %v1650
        %v1653 = vshrl.u32 %v1635, %v1651
        %v1654 = vor.u32 %v1652, %v1653
        %v1655 = vsub.s32 4294967266, %v1650
        %v1656 = vadd.s32 %v1655, 127
        %v1657 = vshll.u32 %v1656, 23
        %v1658 = vor.u32 4788187, %v1657
        %v1659 = vand.u32 2147483647, %v1658
        %v1661 = vcvt.s32.f32 %v1654
        %v1662 = vmul.f32 %v1661, %v1659
        %v1663 = vxor.u32 %v1662, 2147483648
        %v1664 = vsel %vm1581, %v1663, %v1662
        %v1665 = vsub.s32 4, %v1641
        %v1666 = vsel %vm1581, %v1665, %v1641
        %v1667 = vsel %vm1580, %v831, %v1664
        %v1668 = vsel %vm1580, 0, %v1666
        %v1669 = vcosq.f32.pop %v1667
        %v1670 = vsinq.f32.pop %v1667
        %vm1671 = vweird.f32 %v831
        %v1672 = vadd.s32 %v1668, 3
        %v1673 = vand.u32 %v1672, 3
        %vm1674 = vcmp.lt.s32.totalorder %v1673, 2
        %vm1675 = vcmp.eq.s32.totalorder %v1673, 0
        %v1676 = vxor.u32 %v1670, 2147483648
        %v1677 = vsel %vm1675, %v1669, %v1676
        %vm1678 = vcmp.eq.s32.totalorder %v1673, 2
        %v1679 = vxor.u32 %v1669, 2147483648
        %v1680 = vsel %vm1678, %v1679, %v1670
        %v1681 = vsel %vm1674, %v1677, %v1680
        %v1682 = vsel %vm1671, nan, %v1681
        %v1683 = vand.u32 2147483647, %v740
        %vm1684 = vcmp.le.f32.partialorder %v1683, 0.7853982
        %vm1685 = vcmp.lt.s32.totalorder %v740, 0
        %v1686 = vand.u32 %v740, 2139095040
        %v1687 = vshrl.u32 %v1686, 23
        %v1688 = vsub.s32 %v1687, 127
        %v1689 = vand.u32 2147483647, %v740
        %v1690 = vand.u32 %v1689, 8388607
        %v1691 = vor.u32 %v1690, 8388608
        %v1692 = vsub.s32 0, %v1691
        %v1693 = vadd.s32 %v1688, 1
        %vm1694 = vcmp.gt.s32.totalorder %v1693, 0
        %v1695 = vsel %vm1694, %v1693, 0
        %v1696 = vshrl.u32 %v1695, 5
        %v1697 = vand.u32 %v1695, 31
        %v1698 = vsub.s32 32, %v1697
        %v1699 = vshrl.u32 683565275, %v1698
        %v1700 = vshll.u32 683565275, %v1697
        %v1701 = vshrl.u32 2475754826, %v1698
        %v1702 = vor.u32 %v1700, %v1701
        %v1703 = vshll.u32 2475754826, %v1697
        %v1704 = vshrl.u32 2131351028, %v1698
        %v1705 = vor.u32 %v1703, %v1704
        %v1706 = vshll.u32 2131351028, %v1697
        %v1707 = vshrl.u32 2102212464, %v1698
        %v1708 = vor.u32 %v1706, %v1707
        %v1709 = vshll.u32 2102212464, %v1697
        %v1710 = vshrl.u32 920167782, %v1698
        %v1711 = vor.u32 %v1709, %v1710
        %v1712 = vshll.u32 920167782, %v1697
        %v1713 = vshrl.u32 1326507024, %v1698
        %v1714 = vor.u32 %v1712, %v1713
        %vm1715 = vcmp.lt.s32.totalorder %v1696, 1
        %vm1716 = vcmp.lt.s32.totalorder %v1696, 2
        %vm1717 = vcmp.lt.s32.totalorder %v1696, 3
        %vm1718 = vcmp.lt.s32.totalorder %v1696, 4
        %v1719 = vsel %vm1715, %v1699, %v1702
        %v1720 = vsel %vm1718, %v1708, 2102212464
        %v1721 = vsel %vm1717, %v1705, %v1720
        %v1722 = vsel %vm1716, %v1719, %v1721
        %v1723 = vsel %vm1715, %v1702, %v1705
        %v1724 = vsel %vm1718, %v1711, 920167782
        %v1725 = vsel %vm1717, %v1708, %v1724
        %v1726 = vsel %vm1716, %v1723, %v1725
        %v1727 = vsel %vm1715, %v1705, %v1708
        %v1728 = vsel %vm1718, %v1714, 1326507024
        %v1729 = vsel %vm1717, %v1711, %v1728
        %v1730 = vsel %vm1716, %v1727, %v1729
        %v1731 = vshll.u32 %v1691, 8
        %v1732 = vmul.u32.u64.compose %v1731, %v1730
        %v1733 = vextract.low.u32 %v1732
        %v1734 = vextract.high.u32 %v1732
        %v1735 = vmul.u32.u64.compose %v1731, %v1726
        %v1736 = vextract.low.u32 %v1735
        %v1737 = vextract.high.u32 %v1735
        %v1738 = vmul.u32 %v1731, %v1722
        %v1739 = vadd.s32 %v1734, %v1736
        %vm1740 = vc.u32 %v1734, %v1736
        %v1741 = vadd.s32 %v1737, 1
        %v1742 = vsel %vm1740, %v1741, %v1737
        %v1743 = vadd.s32 %v1738, %v1742
        %v1744 = vadd.s32 %v1743, 536870912
        %v1745 = vshrl.u32 %v1744, 30
        %v1746 = vshll.u32 %v1745, 30
        %v1747 = vsub.s32 %v1743, %v1746
        %vm1748 = vcmp.lt.s32.totalorder %v1747, 0
        %v1749 = vsub.s32 0, %v1747
        %v1750 = vsel %vm1748, %v1749, %v1747
        %v1751 = vclz %v1750
        %v1752 = vsub.s32 %v1751, 2
        %vm1753 = vcmp.gt.s32.totalorder 0, %v1752
        %v1754 = vsel %vm1753, 0, %v1752
        %v1755 = vsub.s32 32, %v1754
        %v1756 = vshll.u32 %v1747, %v1754
        %v1757 = vshrl.u32 %v1739, %v1755
        %v1758 = vor.u32 %v1756, %v1757
        %v1759 = vsub.s32 4294967266, %v1754
        %v1760 = vadd.s32 %v1759, 127
        %v1761 = vshll.u32 %v1760, 23
        %v1762 = vor.u32 4788187, %v1761
        %v1763 = vand.u32 2147483647, %v1762
        %v1765 = vcvt.s32.f32 %v1758
        %v1766 = vmul.f32 %v1765, %v1763
        %v1767 = vxor.u32 %v1766, 2147483648
        %v1768 = vsel %vm1685, %v1767, %v1766
        %v1769 = vsub.s32 4, %v1745
        %v1770 = vsel %vm1685, %v1769, %v1745
        %v1771 = vsel %vm1684, %v740, %v1768
        %v1772 = vsel %vm1684, 0, %v1770
        %v1773 = vcosq.f32.pop %v1771
        %v1774 = vsinq.f32.pop %v1771
        %vm1775 = vweird.f32 %v740
        %v1776 = vadd.s32 %v1772, 3
        %v1777 = vand.u32 %v1776, 3
        %vm1778 = vcmp.lt.s32.totalorder %v1777, 2
        %vm1779 = vcmp.eq.s32.totalorder %v1777, 0
        %v1780 = vxor.u32 %v1774, 2147483648
        %v1781 = vsel %vm1779, %v1773, %v1780
        %vm1782 = vcmp.eq.s32.totalorder %v1777, 2
        %v1783 = vxor.u32 %v1773, 2147483648
        %v1784 = vsel %vm1782, %v1783, %v1774
        %v1785 = vsel %vm1778, %v1781, %v1784
        %v1786 = vsel %vm1775, nan, %v1785
        %v1787 = vand.u32 2147483647, %v742
        %vm1788 = vcmp.le.f32.partialorder %v1787, 0.7853982
        %vm1789 = vcmp.lt.s32.totalorder %v742, 0
        %v1790 = vand.u32 %v742, 2139095040
        %v1791 = vshrl.u32 %v1790, 23
        %v1792 = vsub.s32 %v1791, 127
        %v1793 = vand.u32 2147483647, %v742
        %v1794 = vand.u32 %v1793, 8388607
        %v1795 = vor.u32 %v1794, 8388608
        %v1796 = vsub.s32 0, %v1795
        %v1797 = vadd.s32 %v1792, 1
        %vm1798 = vcmp.gt.s32.totalorder %v1797, 0
        %v1799 = vsel %vm1798, %v1797, 0
        %v1800 = vshrl.u32 %v1799, 5
        %v1801 = vand.u32 %v1799, 31
        %v1802 = vsub.s32 32, %v1801
        %v1803 = vshrl.u32 683565275, %v1802
        %v1804 = vshll.u32 683565275, %v1801
        %v1805 = vshrl.u32 2475754826, %v1802
        %v1806 = vor.u32 %v1804, %v1805
        %v1807 = vshll.u32 2475754826, %v1801
        %v1808 = vshrl.u32 2131351028, %v1802
        %v1809 = vor.u32 %v1807, %v1808
        %v1810 = vshll.u32 2131351028, %v1801
        %v1811 = vshrl.u32 2102212464, %v1802
        %v1812 = vor.u32 %v1810, %v1811
        %v1813 = vshll.u32 2102212464, %v1801
        %v1814 = vshrl.u32 920167782, %v1802
        %v1815 = vor.u32 %v1813, %v1814
        %v1816 = vshll.u32 920167782, %v1801
        %v1817 = vshrl.u32 1326507024, %v1802
        %v1818 = vor.u32 %v1816, %v1817
        %vm1819 = vcmp.lt.s32.totalorder %v1800, 1
        %vm1820 = vcmp.lt.s32.totalorder %v1800, 2
        %vm1821 = vcmp.lt.s32.totalorder %v1800, 3
        %vm1822 = vcmp.lt.s32.totalorder %v1800, 4
        %v1823 = vsel %vm1819, %v1803, %v1806
        %v1824 = vsel %vm1822, %v1812, 2102212464
        %v1825 = vsel %vm1821, %v1809, %v1824
        %v1826 = vsel %vm1820, %v1823, %v1825
        %v1827 = vsel %vm1819, %v1806, %v1809
        %v1828 = vsel %vm1822, %v1815, 920167782
        %v1829 = vsel %vm1821, %v1812, %v1828
        %v1830 = vsel %vm1820, %v1827, %v1829
        %v1831 = vsel %vm1819, %v1809, %v1812
        %v1832 = vsel %vm1822, %v1818, 1326507024
        %v1833 = vsel %vm1821, %v1815, %v1832
        %v1834 = vsel %vm1820, %v1831, %v1833
        %v1835 = vshll.u32 %v1795, 8
        %v1836 = vmul.u32.u64.compose %v1835, %v1834
        %v1837 = vextract.low.u32 %v1836
        %v1838 = vextract.high.u32 %v1836
        %v1839 = vmul.u32.u64.compose %v1835, %v1830
        %v1840 = vextract.low.u32 %v1839
        %v1841 = vextract.high.u32 %v1839
        %v1842 = vmul.u32 %v1835, %v1826
        %v1843 = vadd.s32 %v1838, %v1840
        %vm1844 = vc.u32 %v1838, %v1840
        %v1845 = vadd.s32 %v1841, 1
        %v1846 = vsel %vm1844, %v1845, %v1841
        %v1847 = vadd.s32 %v1842, %v1846
        %v1848 = vadd.s32 %v1847, 536870912
        %v1849 = vshrl.u32 %v1848, 30
        %v1850 = vshll.u32 %v1849, 30
        %v1851 = vsub.s32 %v1847, %v1850
        %vm1852 = vcmp.lt.s32.totalorder %v1851, 0
        %v1853 = vsub.s32 0, %v1851
        %v1854 = vsel %vm1852, %v1853, %v1851
        %v1855 = vclz %v1854
        %v1856 = vsub.s32 %v1855, 2
        %vm1857 = vcmp.gt.s32.totalorder 0, %v1856
        %v1858 = vsel %vm1857, 0, %v1856
        %v1859 = vsub.s32 32, %v1858
        %v1860 = vshll.u32 %v1851, %v1858
        %v1861 = vshrl.u32 %v1843, %v1859
        %v1862 = vor.u32 %v1860, %v1861
        %v1863 = vsub.s32 4294967266, %v1858
        %v1864 = vadd.s32 %v1863, 127
        %v1865 = vshll.u32 %v1864, 23
        %v1866 = vor.u32 4788187, %v1865
        %v1867 = vand.u32 2147483647, %v1866
        %v1869 = vcvt.s32.f32 %v1862
        %v1870 = vmul.f32 %v1869, %v1867
        %v1871 = vxor.u32 %v1870, 2147483648
        %v1872 = vsel %vm1789, %v1871, %v1870
        %v1873 = vsub.s32 4, %v1849
        %v1874 = vsel %vm1789, %v1873, %v1849
        %v1875 = vsel %vm1788, %v742, %v1872
        %v1876 = vsel %vm1788, 0, %v1874
        %v1877 = vcosq.f32.pop %v1875
        %v1878 = vsinq.f32.pop %v1875
        %vm1879 = vweird.f32 %v742
        %v1880 = vadd.s32 %v1876, 3
        %v1881 = vand.u32 %v1880, 3
        %vm1882 = vcmp.lt.s32.totalorder %v1881, 2
        %vm1883 = vcmp.eq.s32.totalorder %v1881, 0
        %v1884 = vxor.u32 %v1878, 2147483648
        %v1885 = vsel %vm1883, %v1877, %v1884
        %vm1886 = vcmp.eq.s32.totalorder %v1881, 2
        %v1887 = vxor.u32 %v1877, 2147483648
        %v1888 = vsel %vm1886, %v1887, %v1878
        %v1889 = vsel %vm1882, %v1885, %v1888
        %v1890 = vsel %vm1879, nan, %v1889
        %v1891 = vand.u32 2147483647, %v835
        %vm1892 = vcmp.le.f32.partialorder %v1891, 0.7853982
        %vm1893 = vcmp.lt.s32.totalorder %v835, 0
        %v1894 = vand.u32 %v835, 2139095040
        %v1895 = vshrl.u32 %v1894, 23
        %v1896 = vsub.s32 %v1895, 127
        %v1897 = vand.u32 2147483647, %v835
        %v1898 = vand.u32 %v1897, 8388607
        %v1899 = vor.u32 %v1898, 8388608
        %v1900 = vsub.s32 0, %v1899
        %v1901 = vadd.s32 %v1896, 1
        %vm1902 = vcmp.gt.s32.totalorder %v1901, 0
        %v1903 = vsel %vm1902, %v1901, 0
        %v1904 = vshrl.u32 %v1903, 5
        %v1905 = vand.u32 %v1903, 31
        %v1906 = vsub.s32 32, %v1905
        %v1907 = vshrl.u32 683565275, %v1906
        %v1908 = vshll.u32 683565275, %v1905
        %v1909 = vshrl.u32 2475754826, %v1906
        %v1910 = vor.u32 %v1908, %v1909
        %v1911 = vshll.u32 2475754826, %v1905
        %v1912 = vshrl.u32 2131351028, %v1906
        %v1913 = vor.u32 %v1911, %v1912
        %v1914 = vshll.u32 2131351028, %v1905
        %v1915 = vshrl.u32 2102212464, %v1906
        %v1916 = vor.u32 %v1914, %v1915
        %v1917 = vshll.u32 2102212464, %v1905
        %v1918 = vshrl.u32 920167782, %v1906
        %v1919 = vor.u32 %v1917, %v1918
        %v1920 = vshll.u32 920167782, %v1905
        %v1921 = vshrl.u32 1326507024, %v1906
        %v1922 = vor.u32 %v1920, %v1921
        %vm1923 = vcmp.lt.s32.totalorder %v1904, 1
        %vm1924 = vcmp.lt.s32.totalorder %v1904, 2
        %vm1925 = vcmp.lt.s32.totalorder %v1904, 3
        %vm1926 = vcmp.lt.s32.totalorder %v1904, 4
        %v1927 = vsel %vm1923, %v1907, %v1910
        %v1928 = vsel %vm1926, %v1916, 2102212464
        %v1929 = vsel %vm1925, %v1913, %v1928
        %v1930 = vsel %vm1924, %v1927, %v1929
        %v1931 = vsel %vm1923, %v1910, %v1913
        %v1932 = vsel %vm1926, %v1919, 920167782
        %v1933 = vsel %vm1925, %v1916, %v1932
        %v1934 = vsel %vm1924, %v1931, %v1933
        %v1935 = vsel %vm1923, %v1913, %v1916
        %v1936 = vsel %vm1926, %v1922, 1326507024
        %v1937 = vsel %vm1925, %v1919, %v1936
        %v1938 = vsel %vm1924, %v1935, %v1937
        %v1939 = vshll.u32 %v1899, 8
        %v1940 = vmul.u32.u64.compose %v1939, %v1938
        %v1941 = vextract.low.u32 %v1940
        %v1942 = vextract.high.u32 %v1940
        %v1943 = vmul.u32.u64.compose %v1939, %v1934
        %v1944 = vextract.low.u32 %v1943
        %v1945 = vextract.high.u32 %v1943
        %v1946 = vmul.u32 %v1939, %v1930
        %v1947 = vadd.s32 %v1942, %v1944
        %vm1948 = vc.u32 %v1942, %v1944
        %v1949 = vadd.s32 %v1945, 1
        %v1950 = vsel %vm1948, %v1949, %v1945
        %v1951 = vadd.s32 %v1946, %v1950
        %v1952 = vadd.s32 %v1951, 536870912
        %v1953 = vshrl.u32 %v1952, 30
        %v1954 = vshll.u32 %v1953, 30
        %v1955 = vsub.s32 %v1951, %v1954
        %vm1956 = vcmp.lt.s32.totalorder %v1955, 0
        %v1957 = vsub.s32 0, %v1955
        %v1958 = vsel %vm1956, %v1957, %v1955
        %v1959 = vclz %v1958
        %v1960 = vsub.s32 %v1959, 2
        %vm1961 = vcmp.gt.s32.totalorder 0, %v1960
        %v1962 = vsel %vm1961, 0, %v1960
        %v1963 = vsub.s32 32, %v1962
        %v1964 = vshll.u32 %v1955, %v1962
        %v1965 = vshrl.u32 %v1947, %v1963
        %v1966 = vor.u32 %v1964, %v1965
        %v1967 = vsub.s32 4294967266, %v1962
        %v1968 = vadd.s32 %v1967, 127
        %v1969 = vshll.u32 %v1968, 23
        %v1970 = vor.u32 4788187, %v1969
        %v1971 = vand.u32 2147483647, %v1970
        %v1973 = vcvt.s32.f32 %v1966
        %v1974 = vmul.f32 %v1973, %v1971
        %v1975 = vxor.u32 %v1974, 2147483648
        %v1976 = vsel %vm1893, %v1975, %v1974
        %v1977 = vsub.s32 4, %v1953
        %v1978 = vsel %vm1893, %v1977, %v1953
        %v1979 = vsel %vm1892, %v835, %v1976
        %v1980 = vsel %vm1892, 0, %v1978
        %v1981 = vcosq.f32.pop %v1979
        %v1982 = vsinq.f32.pop %v1979
        %vm1983 = vweird.f32 %v835
        %v1984 = vadd.s32 %v1980, 3
        %v1985 = vand.u32 %v1984, 3
        %vm1986 = vcmp.lt.s32.totalorder %v1985, 2
        %vm1987 = vcmp.eq.s32.totalorder %v1985, 0
        %v1988 = vxor.u32 %v1982, 2147483648
        %v1989 = vsel %vm1987, %v1981, %v1988
        %vm1990 = vcmp.eq.s32.totalorder %v1985, 2
        %v1991 = vxor.u32 %v1981, 2147483648
        %v1992 = vsel %vm1990, %v1991, %v1982
        %v1993 = vsel %vm1986, %v1989, %v1992
        %v1994 = vsel %vm1983, nan, %v1993
        %v1995 = vand.u32 2147483647, %v837
        %vm1996 = vcmp.le.f32.partialorder %v1995, 0.7853982
        %vm1997 = vcmp.lt.s32.totalorder %v837, 0
        %v1998 = vand.u32 %v837, 2139095040
        %v1999 = vshrl.u32 %v1998, 23
        %v2000 = vsub.s32 %v1999, 127
        %v2001 = vand.u32 2147483647, %v837
        %v2002 = vand.u32 %v2001, 8388607
        %v2003 = vor.u32 %v2002, 8388608
        %v2004 = vsub.s32 0, %v2003
        %v2005 = vadd.s32 %v2000, 1
        %vm2006 = vcmp.gt.s32.totalorder %v2005, 0
        %v2007 = vsel %vm2006, %v2005, 0
        %v2008 = vshrl.u32 %v2007, 5
        %v2009 = vand.u32 %v2007, 31
        %v2010 = vsub.s32 32, %v2009
        %v2011 = vshrl.u32 683565275, %v2010
        %v2012 = vshll.u32 683565275, %v2009
        %v2013 = vshrl.u32 2475754826, %v2010
        %v2014 = vor.u32 %v2012, %v2013
        %v2015 = vshll.u32 2475754826, %v2009
        %v2016 = vshrl.u32 2131351028, %v2010
        %v2017 = vor.u32 %v2015, %v2016
        %v2018 = vshll.u32 2131351028, %v2009
        %v2019 = vshrl.u32 2102212464, %v2010
        %v2020 = vor.u32 %v2018, %v2019
        %v2021 = vshll.u32 2102212464, %v2009
        %v2022 = vshrl.u32 920167782, %v2010
        %v2023 = vor.u32 %v2021, %v2022
        %v2024 = vshll.u32 920167782, %v2009
        %v2025 = vshrl.u32 1326507024, %v2010
        %v2026 = vor.u32 %v2024, %v2025
        %vm2027 = vcmp.lt.s32.totalorder %v2008, 1
        %vm2028 = vcmp.lt.s32.totalorder %v2008, 2
        %vm2029 = vcmp.lt.s32.totalorder %v2008, 3
        %vm2030 = vcmp.lt.s32.totalorder %v2008, 4
        %v2031 = vsel %vm2027, %v2011, %v2014
        %v2032 = vsel %vm2030, %v2020, 2102212464
        %v2033 = vsel %vm2029, %v2017, %v2032
        %v2034 = vsel %vm2028, %v2031, %v2033
        %v2035 = vsel %vm2027, %v2014, %v2017
        %v2036 = vsel %vm2030, %v2023, 920167782
        %v2037 = vsel %vm2029, %v2020, %v2036
        %v2038 = vsel %vm2028, %v2035, %v2037
        %v2039 = vsel %vm2027, %v2017, %v2020
        %v2040 = vsel %vm2030, %v2026, 1326507024
        %v2041 = vsel %vm2029, %v2023, %v2040
        %v2042 = vsel %vm2028, %v2039, %v2041
        %v2043 = vshll.u32 %v2003, 8
        %v2044 = vmul.u32.u64.compose %v2043, %v2042
        %v2045 = vextract.low.u32 %v2044
        %v2046 = vextract.high.u32 %v2044
        %v2047 = vmul.u32.u64.compose %v2043, %v2038
        %v2048 = vextract.low.u32 %v2047
        %v2049 = vextract.high.u32 %v2047
        %v2050 = vmul.u32 %v2043, %v2034
        %v2051 = vadd.s32 %v2046, %v2048
        %vm2052 = vc.u32 %v2046, %v2048
        %v2053 = vadd.s32 %v2049, 1
        %v2054 = vsel %vm2052, %v2053, %v2049
        %v2055 = vadd.s32 %v2050, %v2054
        %v2056 = vadd.s32 %v2055, 536870912
        %v2057 = vshrl.u32 %v2056, 30
        %v2058 = vshll.u32 %v2057, 30
        %v2059 = vsub.s32 %v2055, %v2058
        %vm2060 = vcmp.lt.s32.totalorder %v2059, 0
        %v2061 = vsub.s32 0, %v2059
        %v2062 = vsel %vm2060, %v2061, %v2059
        %v2063 = vclz %v2062
        %v2064 = vsub.s32 %v2063, 2
        %vm2065 = vcmp.gt.s32.totalorder 0, %v2064
        %v2066 = vsel %vm2065, 0, %v2064
        %v2067 = vsub.s32 32, %v2066
        %v2068 = vshll.u32 %v2059, %v2066
        %v2069 = vshrl.u32 %v2051, %v2067
        %v2070 = vor.u32 %v2068, %v2069
        %v2071 = vsub.s32 4294967266, %v2066
        %v2072 = vadd.s32 %v2071, 127
        %v2073 = vshll.u32 %v2072, 23
        %v2074 = vor.u32 4788187, %v2073
        %v2075 = vand.u32 2147483647, %v2074
        %v2077 = vcvt.s32.f32 %v2070
        %v2078 = vmul.f32 %v2077, %v2075
        %v2079 = vxor.u32 %v2078, 2147483648
        %v2080 = vsel %vm1997, %v2079, %v2078
        %v2081 = vsub.s32 4, %v2057
        %v2082 = vsel %vm1997, %v2081, %v2057
        %v2083 = vsel %vm1996, %v837, %v2080
        %v2084 = vsel %vm1996, 0, %v2082
        %v2085 = vcosq.f32.pop %v2083
        %v2086 = vsinq.f32.pop %v2083
        %vm2087 = vweird.f32 %v837
        %v2088 = vadd.s32 %v2084, 3
        %v2089 = vand.u32 %v2088, 3
        %vm2090 = vcmp.lt.s32.totalorder %v2089, 2
        %vm2091 = vcmp.eq.s32.totalorder %v2089, 0
        %v2092 = vxor.u32 %v2086, 2147483648
        %v2093 = vsel %vm2091, %v2085, %v2092
        %vm2094 = vcmp.eq.s32.totalorder %v2089, 2
        %v2095 = vxor.u32 %v2085, 2147483648
        %v2096 = vsel %vm2094, %v2095, %v2086
        %v2097 = vsel %vm2090, %v2093, %v2096
        %v2098 = vsel %vm2087, nan, %v2097
        %v2099 = vand.u32 2147483647, %v746
        %vm2100 = vcmp.le.f32.partialorder %v2099, 0.7853982
        %vm2101 = vcmp.lt.s32.totalorder %v746, 0
        %v2102 = vand.u32 %v746, 2139095040
        %v2103 = vshrl.u32 %v2102, 23
        %v2104 = vsub.s32 %v2103, 127
        %v2105 = vand.u32 2147483647, %v746
        %v2106 = vand.u32 %v2105, 8388607
        %v2107 = vor.u32 %v2106, 8388608
        %v2108 = vsub.s32 0, %v2107
        %v2109 = vadd.s32 %v2104, 1
        %vm2110 = vcmp.gt.s32.totalorder %v2109, 0
        %v2111 = vsel %vm2110, %v2109, 0
        %v2112 = vshrl.u32 %v2111, 5
        %v2113 = vand.u32 %v2111, 31
        %v2114 = vsub.s32 32, %v2113
        %v2115 = vshrl.u32 683565275, %v2114
        %v2116 = vshll.u32 683565275, %v2113
        %v2117 = vshrl.u32 2475754826, %v2114
        %v2118 = vor.u32 %v2116, %v2117
        %v2119 = vshll.u32 2475754826, %v2113
        %v2120 = vshrl.u32 2131351028, %v2114
        %v2121 = vor.u32 %v2119, %v2120
        %v2122 = vshll.u32 2131351028, %v2113
        %v2123 = vshrl.u32 2102212464, %v2114
        %v2124 = vor.u32 %v2122, %v2123
        %v2125 = vshll.u32 2102212464, %v2113
        %v2126 = vshrl.u32 920167782, %v2114
        %v2127 = vor.u32 %v2125, %v2126
        %v2128 = vshll.u32 920167782, %v2113
        %v2129 = vshrl.u32 1326507024, %v2114
        %v2130 = vor.u32 %v2128, %v2129
        %vm2131 = vcmp.lt.s32.totalorder %v2112, 1
        %vm2132 = vcmp.lt.s32.totalorder %v2112, 2
        %vm2133 = vcmp.lt.s32.totalorder %v2112, 3
        %vm2134 = vcmp.lt.s32.totalorder %v2112, 4
        %v2135 = vsel %vm2131, %v2115, %v2118
        %v2136 = vsel %vm2134, %v2124, 2102212464
        %v2137 = vsel %vm2133, %v2121, %v2136
        %v2138 = vsel %vm2132, %v2135, %v2137
        %v2139 = vsel %vm2131, %v2118, %v2121
        %v2140 = vsel %vm2134, %v2127, 920167782
        %v2141 = vsel %vm2133, %v2124, %v2140
        %v2142 = vsel %vm2132, %v2139, %v2141
        %v2143 = vsel %vm2131, %v2121, %v2124
        %v2144 = vsel %vm2134, %v2130, 1326507024
        %v2145 = vsel %vm2133, %v2127, %v2144
        %v2146 = vsel %vm2132, %v2143, %v2145
        %v2147 = vshll.u32 %v2107, 8
        %v2148 = vmul.u32.u64.compose %v2147, %v2146
        %v2149 = vextract.low.u32 %v2148
        %v2150 = vextract.high.u32 %v2148
        %v2151 = vmul.u32.u64.compose %v2147, %v2142
        %v2152 = vextract.low.u32 %v2151
        %v2153 = vextract.high.u32 %v2151
        %v2154 = vmul.u32 %v2147, %v2138
        %v2155 = vadd.s32 %v2150, %v2152
        %vm2156 = vc.u32 %v2150, %v2152
        %v2157 = vadd.s32 %v2153, 1
        %v2158 = vsel %vm2156, %v2157, %v2153
        %v2159 = vadd.s32 %v2154, %v2158
        %v2160 = vadd.s32 %v2159, 536870912
        %v2161 = vshrl.u32 %v2160, 30
        %v2162 = vshll.u32 %v2161, 30
        %v2163 = vsub.s32 %v2159, %v2162
        %vm2164 = vcmp.lt.s32.totalorder %v2163, 0
        %v2165 = vsub.s32 0, %v2163
        %v2166 = vsel %vm2164, %v2165, %v2163
        %v2167 = vclz %v2166
        %v2168 = vsub.s32 %v2167, 2
        %vm2169 = vcmp.gt.s32.totalorder 0, %v2168
        %v2170 = vsel %vm2169, 0, %v2168
        %v2171 = vsub.s32 32, %v2170
        %v2172 = vshll.u32 %v2163, %v2170
        %v2173 = vshrl.u32 %v2155, %v2171
        %v2174 = vor.u32 %v2172, %v2173
        %v2175 = vsub.s32 4294967266, %v2170
        %v2176 = vadd.s32 %v2175, 127
        %v2177 = vshll.u32 %v2176, 23
        %v2178 = vor.u32 4788187, %v2177
        %v2179 = vand.u32 2147483647, %v2178
        %v2181 = vcvt.s32.f32 %v2174
        %v2182 = vmul.f32 %v2181, %v2179
        %v2183 = vxor.u32 %v2182, 2147483648
        %v2184 = vsel %vm2101, %v2183, %v2182
        %v2185 = vsub.s32 4, %v2161
        %v2186 = vsel %vm2101, %v2185, %v2161
        %v2187 = vsel %vm2100, %v746, %v2184
        %v2188 = vsel %vm2100, 0, %v2186
        %v2189 = vcosq.f32.pop %v2187
        %v2190 = vsinq.f32.pop %v2187
        %vm2191 = vweird.f32 %v746
        %v2192 = vadd.s32 %v2188, 3
        %v2193 = vand.u32 %v2192, 3
        %vm2194 = vcmp.lt.s32.totalorder %v2193, 2
        %vm2195 = vcmp.eq.s32.totalorder %v2193, 0
        %v2196 = vxor.u32 %v2190, 2147483648
        %v2197 = vsel %vm2195, %v2189, %v2196
        %vm2198 = vcmp.eq.s32.totalorder %v2193, 2
        %v2199 = vxor.u32 %v2189, 2147483648
        %v2200 = vsel %vm2198, %v2199, %v2190
        %v2201 = vsel %vm2194, %v2197, %v2200
        %v2202 = vsel %vm2191, nan, %v2201
        %v2203 = vand.u32 2147483647, %v748
        %vm2204 = vcmp.le.f32.partialorder %v2203, 0.7853982
        %vm2205 = vcmp.lt.s32.totalorder %v748, 0
        %v2206 = vand.u32 %v748, 2139095040
        %v2207 = vshrl.u32 %v2206, 23
        %v2208 = vsub.s32 %v2207, 127
        %v2209 = vand.u32 2147483647, %v748
        %v2210 = vand.u32 %v2209, 8388607
        %v2211 = vor.u32 %v2210, 8388608
        %v2212 = vsub.s32 0, %v2211
        %v2213 = vadd.s32 %v2208, 1
        %vm2214 = vcmp.gt.s32.totalorder %v2213, 0
        %v2215 = vsel %vm2214, %v2213, 0
        %v2216 = vshrl.u32 %v2215, 5
        %v2217 = vand.u32 %v2215, 31
        %v2218 = vsub.s32 32, %v2217
        %v2219 = vshrl.u32 683565275, %v2218
        %v2220 = vshll.u32 683565275, %v2217
        %v2221 = vshrl.u32 2475754826, %v2218
        %v2222 = vor.u32 %v2220, %v2221
        %v2223 = vshll.u32 2475754826, %v2217
        %v2224 = vshrl.u32 2131351028, %v2218
        %v2225 = vor.u32 %v2223, %v2224
        %v2226 = vshll.u32 2131351028, %v2217
        %v2227 = vshrl.u32 2102212464, %v2218
        %v2228 = vor.u32 %v2226, %v2227
        %v2229 = vshll.u32 2102212464, %v2217
        %v2230 = vshrl.u32 920167782, %v2218
        %v2231 = vor.u32 %v2229, %v2230
        %v2232 = vshll.u32 920167782, %v2217
        %v2233 = vshrl.u32 1326507024, %v2218
        %v2234 = vor.u32 %v2232, %v2233
        %vm2235 = vcmp.lt.s32.totalorder %v2216, 1
        %vm2236 = vcmp.lt.s32.totalorder %v2216, 2
        %vm2237 = vcmp.lt.s32.totalorder %v2216, 3
        %vm2238 = vcmp.lt.s32.totalorder %v2216, 4
        %v2239 = vsel %vm2235, %v2219, %v2222
        %v2240 = vsel %vm2238, %v2228, 2102212464
        %v2241 = vsel %vm2237, %v2225, %v2240
        %v2242 = vsel %vm2236, %v2239, %v2241
        %v2243 = vsel %vm2235, %v2222, %v2225
        %v2244 = vsel %vm2238, %v2231, 920167782
        %v2245 = vsel %vm2237, %v2228, %v2244
        %v2246 = vsel %vm2236, %v2243, %v2245
        %v2247 = vsel %vm2235, %v2225, %v2228
        %v2248 = vsel %vm2238, %v2234, 1326507024
        %v2249 = vsel %vm2237, %v2231, %v2248
        %v2250 = vsel %vm2236, %v2247, %v2249
        %v2251 = vshll.u32 %v2211, 8
        %v2252 = vmul.u32.u64.compose %v2251, %v2250
        %v2253 = vextract.low.u32 %v2252
        %v2254 = vextract.high.u32 %v2252
        %v2255 = vmul.u32.u64.compose %v2251, %v2246
        %v2256 = vextract.low.u32 %v2255
        %v2257 = vextract.high.u32 %v2255
        %v2258 = vmul.u32 %v2251, %v2242
        %v2259 = vadd.s32 %v2254, %v2256
        %vm2260 = vc.u32 %v2254, %v2256
        %v2261 = vadd.s32 %v2257, 1
        %v2262 = vsel %vm2260, %v2261, %v2257
        %v2263 = vadd.s32 %v2258, %v2262
        %v2264 = vadd.s32 %v2263, 536870912
        %v2265 = vshrl.u32 %v2264, 30
        %v2266 = vshll.u32 %v2265, 30
        %v2267 = vsub.s32 %v2263, %v2266
        %vm2268 = vcmp.lt.s32.totalorder %v2267, 0
        %v2269 = vsub.s32 0, %v2267
        %v2270 = vsel %vm2268, %v2269, %v2267
        %v2271 = vclz %v2270
        %v2272 = vsub.s32 %v2271, 2
        %vm2273 = vcmp.gt.s32.totalorder 0, %v2272
        %v2274 = vsel %vm2273, 0, %v2272
        %v2275 = vsub.s32 32, %v2274
        %v2276 = vshll.u32 %v2267, %v2274
        %v2277 = vshrl.u32 %v2259, %v2275
        %v2278 = vor.u32 %v2276, %v2277
        %v2279 = vsub.s32 4294967266, %v2274
        %v2280 = vadd.s32 %v2279, 127
        %v2281 = vshll.u32 %v2280, 23
        %v2282 = vor.u32 4788187, %v2281
        %v2283 = vand.u32 2147483647, %v2282
        %v2285 = vcvt.s32.f32 %v2278
        %v2286 = vmul.f32 %v2285, %v2283
        %v2287 = vxor.u32 %v2286, 2147483648
        %v2288 = vsel %vm2205, %v2287, %v2286
        %v2289 = vsub.s32 4, %v2265
        %v2290 = vsel %vm2205, %v2289, %v2265
        %v2291 = vsel %vm2204, %v748, %v2288
        %v2292 = vsel %vm2204, 0, %v2290
        %v2293 = vcosq.f32.pop %v2291
        %v2294 = vsinq.f32.pop %v2291
        %vm2295 = vweird.f32 %v748
        %v2296 = vadd.s32 %v2292, 3
        %v2297 = vand.u32 %v2296, 3
        %vm2298 = vcmp.lt.s32.totalorder %v2297, 2
        %vm2299 = vcmp.eq.s32.totalorder %v2297, 0
        %v2300 = vxor.u32 %v2294, 2147483648
        %v2301 = vsel %vm2299, %v2293, %v2300
        %vm2302 = vcmp.eq.s32.totalorder %v2297, 2
        %v2303 = vxor.u32 %v2293, 2147483648
        %v2304 = vsel %vm2302, %v2303, %v2294
        %v2305 = vsel %vm2298, %v2301, %v2304
        %v2306 = vsel %vm2295, nan, %v2305
        %v2307 = vand.u32 2147483647, %v841
        %vm2308 = vcmp.le.f32.partialorder %v2307, 0.7853982
        %vm2309 = vcmp.lt.s32.totalorder %v841, 0
        %v2310 = vand.u32 %v841, 2139095040
        %v2311 = vshrl.u32 %v2310, 23
        %v2312 = vsub.s32 %v2311, 127
        %v2313 = vand.u32 2147483647, %v841
        %v2314 = vand.u32 %v2313, 8388607
        %v2315 = vor.u32 %v2314, 8388608
        %v2316 = vsub.s32 0, %v2315
        %v2317 = vadd.s32 %v2312, 1
        %vm2318 = vcmp.gt.s32.totalorder %v2317, 0
        %v2319 = vsel %vm2318, %v2317, 0
        %v2320 = vshrl.u32 %v2319, 5
        %v2321 = vand.u32 %v2319, 31
        %v2322 = vsub.s32 32, %v2321
        %v2323 = vshrl.u32 683565275, %v2322
        %v2324 = vshll.u32 683565275, %v2321
        %v2325 = vshrl.u32 2475754826, %v2322
        %v2326 = vor.u32 %v2324, %v2325
        %v2327 = vshll.u32 2475754826, %v2321
        %v2328 = vshrl.u32 2131351028, %v2322
        %v2329 = vor.u32 %v2327, %v2328
        %v2330 = vshll.u32 2131351028, %v2321
        %v2331 = vshrl.u32 2102212464, %v2322
        %v2332 = vor.u32 %v2330, %v2331
        %v2333 = vshll.u32 2102212464, %v2321
        %v2334 = vshrl.u32 920167782, %v2322
        %v2335 = vor.u32 %v2333, %v2334
        %v2336 = vshll.u32 920167782, %v2321
        %v2337 = vshrl.u32 1326507024, %v2322
        %v2338 = vor.u32 %v2336, %v2337
        %vm2339 = vcmp.lt.s32.totalorder %v2320, 1
        %vm2340 = vcmp.lt.s32.totalorder %v2320, 2
        %vm2341 = vcmp.lt.s32.totalorder %v2320, 3
        %vm2342 = vcmp.lt.s32.totalorder %v2320, 4
        %v2343 = vsel %vm2339, %v2323, %v2326
        %v2344 = vsel %vm2342, %v2332, 2102212464
        %v2345 = vsel %vm2341, %v2329, %v2344
        %v2346 = vsel %vm2340, %v2343, %v2345
        %v2347 = vsel %vm2339, %v2326, %v2329
        %v2348 = vsel %vm2342, %v2335, 920167782
        %v2349 = vsel %vm2341, %v2332, %v2348
        %v2350 = vsel %vm2340, %v2347, %v2349
        %v2351 = vsel %vm2339, %v2329, %v2332
        %v2352 = vsel %vm2342, %v2338, 1326507024
        %v2353 = vsel %vm2341, %v2335, %v2352
        %v2354 = vsel %vm2340, %v2351, %v2353
        %v2355 = vshll.u32 %v2315, 8
        %v2356 = vmul.u32.u64.compose %v2355, %v2354
        %v2357 = vextract.low.u32 %v2356
        %v2358 = vextract.high.u32 %v2356
        %v2359 = vmul.u32.u64.compose %v2355, %v2350
        %v2360 = vextract.low.u32 %v2359
        %v2361 = vextract.high.u32 %v2359
        %v2362 = vmul.u32 %v2355, %v2346
        %v2363 = vadd.s32 %v2358, %v2360
        %vm2364 = vc.u32 %v2358, %v2360
        %v2365 = vadd.s32 %v2361, 1
        %v2366 = vsel %vm2364, %v2365, %v2361
        %v2367 = vadd.s32 %v2362, %v2366
        %v2368 = vadd.s32 %v2367, 536870912
        %v2369 = vshrl.u32 %v2368, 30
        %v2370 = vshll.u32 %v2369, 30
        %v2371 = vsub.s32 %v2367, %v2370
        %vm2372 = vcmp.lt.s32.totalorder %v2371, 0
        %v2373 = vsub.s32 0, %v2371
        %v2374 = vsel %vm2372, %v2373, %v2371
        %v2375 = vclz %v2374
        %v2376 = vsub.s32 %v2375, 2
        %vm2377 = vcmp.gt.s32.totalorder 0, %v2376
        %v2378 = vsel %vm2377, 0, %v2376
        %v2379 = vsub.s32 32, %v2378
        %v2380 = vshll.u32 %v2371, %v2378
        %v2381 = vshrl.u32 %v2363, %v2379
        %v2382 = vor.u32 %v2380, %v2381
        %v2383 = vsub.s32 4294967266, %v2378
        %v2384 = vadd.s32 %v2383, 127
        %v2385 = vshll.u32 %v2384, 23
        %v2386 = vor.u32 4788187, %v2385
        %v2387 = vand.u32 2147483647, %v2386
        %v2389 = vcvt.s32.f32 %v2382
        %v2390 = vmul.f32 %v2389, %v2387
        %v2391 = vxor.u32 %v2390, 2147483648
        %v2392 = vsel %vm2309, %v2391, %v2390
        %v2393 = vsub.s32 4, %v2369
        %v2394 = vsel %vm2309, %v2393, %v2369
        %v2395 = vsel %vm2308, %v841, %v2392
        %v2396 = vsel %vm2308, 0, %v2394
        %v2397 = vcosq.f32.pop %v2395
        %v2398 = vsinq.f32.pop %v2395
        %vm2399 = vweird.f32 %v841
        %v2400 = vadd.s32 %v2396, 3
        %v2401 = vand.u32 %v2400, 3
        %vm2402 = vcmp.lt.s32.totalorder %v2401, 2
        %vm2403 = vcmp.eq.s32.totalorder %v2401, 0
        %v2404 = vxor.u32 %v2398, 2147483648
        %v2405 = vsel %vm2403, %v2397, %v2404
        %vm2406 = vcmp.eq.s32.totalorder %v2401, 2
        %v2407 = vxor.u32 %v2397, 2147483648
        %v2408 = vsel %vm2406, %v2407, %v2398
        %v2409 = vsel %vm2402, %v2405, %v2408
        %v2410 = vsel %vm2399, nan, %v2409
        %v2411 = vand.u32 2147483647, %v843
        %vm2412 = vcmp.le.f32.partialorder %v2411, 0.7853982
        %vm2413 = vcmp.lt.s32.totalorder %v843, 0
        %v2414 = vand.u32 %v843, 2139095040
        %v2415 = vshrl.u32 %v2414, 23
        %v2416 = vsub.s32 %v2415, 127
        %v2417 = vand.u32 2147483647, %v843
        %v2418 = vand.u32 %v2417, 8388607
        %v2419 = vor.u32 %v2418, 8388608
        %v2420 = vsub.s32 0, %v2419
        %v2421 = vadd.s32 %v2416, 1
        %vm2422 = vcmp.gt.s32.totalorder %v2421, 0
        %v2423 = vsel %vm2422, %v2421, 0
        %v2424 = vshrl.u32 %v2423, 5
        %v2425 = vand.u32 %v2423, 31
        %v2426 = vsub.s32 32, %v2425
        %v2427 = vshrl.u32 683565275, %v2426
        %v2428 = vshll.u32 683565275, %v2425
        %v2429 = vshrl.u32 2475754826, %v2426
        %v2430 = vor.u32 %v2428, %v2429
        %v2431 = vshll.u32 2475754826, %v2425
        %v2432 = vshrl.u32 2131351028, %v2426
        %v2433 = vor.u32 %v2431, %v2432
        %v2434 = vshll.u32 2131351028, %v2425
        %v2435 = vshrl.u32 2102212464, %v2426
        %v2436 = vor.u32 %v2434, %v2435
        %v2437 = vshll.u32 2102212464, %v2425
        %v2438 = vshrl.u32 920167782, %v2426
        %v2439 = vor.u32 %v2437, %v2438
        %v2440 = vshll.u32 920167782, %v2425
        %v2441 = vshrl.u32 1326507024, %v2426
        %v2442 = vor.u32 %v2440, %v2441
        %vm2443 = vcmp.lt.s32.totalorder %v2424, 1
        %vm2444 = vcmp.lt.s32.totalorder %v2424, 2
        %vm2445 = vcmp.lt.s32.totalorder %v2424, 3
        %vm2446 = vcmp.lt.s32.totalorder %v2424, 4
        %v2447 = vsel %vm2443, %v2427, %v2430
        %v2448 = vsel %vm2446, %v2436, 2102212464
        %v2449 = vsel %vm2445, %v2433, %v2448
        %v2450 = vsel %vm2444, %v2447, %v2449
        %v2451 = vsel %vm2443, %v2430, %v2433
        %v2452 = vsel %vm2446, %v2439, 920167782
        %v2453 = vsel %vm2445, %v2436, %v2452
        %v2454 = vsel %vm2444, %v2451, %v2453
        %v2455 = vsel %vm2443, %v2433, %v2436
        %v2456 = vsel %vm2446, %v2442, 1326507024
        %v2457 = vsel %vm2445, %v2439, %v2456
        %v2458 = vsel %vm2444, %v2455, %v2457
        %v2459 = vshll.u32 %v2419, 8
        %v2460 = vmul.u32.u64.compose %v2459, %v2458
        %v2461 = vextract.low.u32 %v2460
        %v2462 = vextract.high.u32 %v2460
        %v2463 = vmul.u32.u64.compose %v2459, %v2454
        %v2464 = vextract.low.u32 %v2463
        %v2465 = vextract.high.u32 %v2463
        %v2466 = vmul.u32 %v2459, %v2450
        %v2467 = vadd.s32 %v2462, %v2464
        %vm2468 = vc.u32 %v2462, %v2464
        %v2469 = vadd.s32 %v2465, 1
        %v2470 = vsel %vm2468, %v2469, %v2465
        %v2471 = vadd.s32 %v2466, %v2470
        %v2472 = vadd.s32 %v2471, 536870912
        %v2473 = vshrl.u32 %v2472, 30
        %v2474 = vshll.u32 %v2473, 30
        %v2475 = vsub.s32 %v2471, %v2474
        %vm2476 = vcmp.lt.s32.totalorder %v2475, 0
        %v2477 = vsub.s32 0, %v2475
        %v2478 = vsel %vm2476, %v2477, %v2475
        %v2479 = vclz %v2478
        %v2480 = vsub.s32 %v2479, 2
        %vm2481 = vcmp.gt.s32.totalorder 0, %v2480
        %v2482 = vsel %vm2481, 0, %v2480
        %v2483 = vsub.s32 32, %v2482
        %v2484 = vshll.u32 %v2475, %v2482
        %v2485 = vshrl.u32 %v2467, %v2483
        %v2486 = vor.u32 %v2484, %v2485
        %v2487 = vsub.s32 4294967266, %v2482
        %v2488 = vadd.s32 %v2487, 127
        %v2489 = vshll.u32 %v2488, 23
        %v2490 = vor.u32 4788187, %v2489
        %v2491 = vand.u32 2147483647, %v2490
        %v2493 = vcvt.s32.f32 %v2486
        %v2494 = vmul.f32 %v2493, %v2491
        %v2495 = vxor.u32 %v2494, 2147483648
        %v2496 = vsel %vm2413, %v2495, %v2494
        %v2497 = vsub.s32 4, %v2473
        %v2498 = vsel %vm2413, %v2497, %v2473
        %v2499 = vsel %vm2412, %v843, %v2496
        %v2500 = vsel %vm2412, 0, %v2498
        %v2501 = vcosq.f32.pop %v2499
        %v2502 = vsinq.f32.pop %v2499
        %vm2503 = vweird.f32 %v843
        %v2504 = vadd.s32 %v2500, 3
        %v2505 = vand.u32 %v2504, 3
        %vm2506 = vcmp.lt.s32.totalorder %v2505, 2
        %vm2507 = vcmp.eq.s32.totalorder %v2505, 0
        %v2508 = vxor.u32 %v2502, 2147483648
        %v2509 = vsel %vm2507, %v2501, %v2508
        %vm2510 = vcmp.eq.s32.totalorder %v2505, 2
        %v2511 = vxor.u32 %v2501, 2147483648
        %v2512 = vsel %vm2510, %v2511, %v2502
        %v2513 = vsel %vm2506, %v2509, %v2512
        %v2514 = vsel %vm2503, nan, %v2513
        %v2515 = vand.u32 2147483647, %v752
        %vm2516 = vcmp.le.f32.partialorder %v2515, 0.7853982
        %vm2517 = vcmp.lt.s32.totalorder %v752, 0
        %v2518 = vand.u32 %v752, 2139095040
        %v2519 = vshrl.u32 %v2518, 23
        %v2520 = vsub.s32 %v2519, 127
        %v2521 = vand.u32 2147483647, %v752
        %v2522 = vand.u32 %v2521, 8388607
        %v2523 = vor.u32 %v2522, 8388608
        %v2524 = vsub.s32 0, %v2523
        %v2525 = vadd.s32 %v2520, 1
        %vm2526 = vcmp.gt.s32.totalorder %v2525, 0
        %v2527 = vsel %vm2526, %v2525, 0
        %v2528 = vshrl.u32 %v2527, 5
        %v2529 = vand.u32 %v2527, 31
        %v2530 = vsub.s32 32, %v2529
        %v2531 = vshrl.u32 683565275, %v2530
        %v2532 = vshll.u32 683565275, %v2529
        %v2533 = vshrl.u32 2475754826, %v2530
        %v2534 = vor.u32 %v2532, %v2533
        %v2535 = vshll.u32 2475754826, %v2529
        %v2536 = vshrl.u32 2131351028, %v2530
        %v2537 = vor.u32 %v2535, %v2536
        %v2538 = vshll.u32 2131351028, %v2529
        %v2539 = vshrl.u32 2102212464, %v2530
        %v2540 = vor.u32 %v2538, %v2539
        %v2541 = vshll.u32 2102212464, %v2529
        %v2542 = vshrl.u32 920167782, %v2530
        %v2543 = vor.u32 %v2541, %v2542
        %v2544 = vshll.u32 920167782, %v2529
        %v2545 = vshrl.u32 1326507024, %v2530
        %v2546 = vor.u32 %v2544, %v2545
        %vm2547 = vcmp.lt.s32.totalorder %v2528, 1
        %vm2548 = vcmp.lt.s32.totalorder %v2528, 2
        %vm2549 = vcmp.lt.s32.totalorder %v2528, 3
        %vm2550 = vcmp.lt.s32.totalorder %v2528, 4
        %v2551 = vsel %vm2547, %v2531, %v2534
        %v2552 = vsel %vm2550, %v2540, 2102212464
        %v2553 = vsel %vm2549, %v2537, %v2552
        %v2554 = vsel %vm2548, %v2551, %v2553
        %v2555 = vsel %vm2547, %v2534, %v2537
        %v2556 = vsel %vm2550, %v2543, 920167782
        %v2557 = vsel %vm2549, %v2540, %v2556
        %v2558 = vsel %vm2548, %v2555, %v2557
        %v2559 = vsel %vm2547, %v2537, %v2540
        %v2560 = vsel %vm2550, %v2546, 1326507024
        %v2561 = vsel %vm2549, %v2543, %v2560
        %v2562 = vsel %vm2548, %v2559, %v2561
        %v2563 = vshll.u32 %v2523, 8
        %v2564 = vmul.u32.u64.compose %v2563, %v2562
        %v2565 = vextract.low.u32 %v2564
        %v2566 = vextract.high.u32 %v2564
        %v2567 = vmul.u32.u64.compose %v2563, %v2558
        %v2568 = vextract.low.u32 %v2567
        %v2569 = vextract.high.u32 %v2567
        %v2570 = vmul.u32 %v2563, %v2554
        %v2571 = vadd.s32 %v2566, %v2568
        %vm2572 = vc.u32 %v2566, %v2568
        %v2573 = vadd.s32 %v2569, 1
        %v2574 = vsel %vm2572, %v2573, %v2569
        %v2575 = vadd.s32 %v2570, %v2574
        %v2576 = vadd.s32 %v2575, 536870912
        %v2577 = vshrl.u32 %v2576, 30
        %v2578 = vshll.u32 %v2577, 30
        %v2579 = vsub.s32 %v2575, %v2578
        %vm2580 = vcmp.lt.s32.totalorder %v2579, 0
        %v2581 = vsub.s32 0, %v2579
        %v2582 = vsel %vm2580, %v2581, %v2579
        %v2583 = vclz %v2582
        %v2584 = vsub.s32 %v2583, 2
        %vm2585 = vcmp.gt.s32.totalorder 0, %v2584
        %v2586 = vsel %vm2585, 0, %v2584
        %v2587 = vsub.s32 32, %v2586
        %v2588 = vshll.u32 %v2579, %v2586
        %v2589 = vshrl.u32 %v2571, %v2587
        %v2590 = vor.u32 %v2588, %v2589
        %v2591 = vsub.s32 4294967266, %v2586
        %v2592 = vadd.s32 %v2591, 127
        %v2593 = vshll.u32 %v2592, 23
        %v2594 = vor.u32 4788187, %v2593
        %v2595 = vand.u32 2147483647, %v2594
        %v2597 = vcvt.s32.f32 %v2590
        %v2598 = vmul.f32 %v2597, %v2595
        %v2599 = vxor.u32 %v2598, 2147483648
        %v2600 = vsel %vm2517, %v2599, %v2598
        %v2601 = vsub.s32 4, %v2577
        %v2602 = vsel %vm2517, %v2601, %v2577
        %v2603 = vsel %vm2516, %v752, %v2600
        %v2604 = vsel %vm2516, 0, %v2602
        %v2605 = vcosq.f32.pop %v2603
        %v2606 = vsinq.f32.pop %v2603
        %vm2607 = vweird.f32 %v752
        %v2608 = vadd.s32 %v2604, 3
        %v2609 = vand.u32 %v2608, 3
        %vm2610 = vcmp.lt.s32.totalorder %v2609, 2
        %vm2611 = vcmp.eq.s32.totalorder %v2609, 0
        %v2612 = vxor.u32 %v2606, 2147483648
        %v2613 = vsel %vm2611, %v2605, %v2612
        %vm2614 = vcmp.eq.s32.totalorder %v2609, 2
        %v2615 = vxor.u32 %v2605, 2147483648
        %v2616 = vsel %vm2614, %v2615, %v2606
        %v2617 = vsel %vm2610, %v2613, %v2616
        %v2618 = vsel %vm2607, nan, %v2617
        %v2619 = vand.u32 2147483647, %v754
        %vm2620 = vcmp.le.f32.partialorder %v2619, 0.7853982
        %vm2621 = vcmp.lt.s32.totalorder %v754, 0
        %v2622 = vand.u32 %v754, 2139095040
        %v2623 = vshrl.u32 %v2622, 23
        %v2624 = vsub.s32 %v2623, 127
        %v2625 = vand.u32 2147483647, %v754
        %v2626 = vand.u32 %v2625, 8388607
        %v2627 = vor.u32 %v2626, 8388608
        %v2628 = vsub.s32 0, %v2627
        %v2629 = vadd.s32 %v2624, 1
        %vm2630 = vcmp.gt.s32.totalorder %v2629, 0
        %v2631 = vsel %vm2630, %v2629, 0
        %v2632 = vshrl.u32 %v2631, 5
        %v2633 = vand.u32 %v2631, 31
        %v2634 = vsub.s32 32, %v2633
        %v2635 = vshrl.u32 683565275, %v2634
        %v2636 = vshll.u32 683565275, %v2633
        %v2637 = vshrl.u32 2475754826, %v2634
        %v2638 = vor.u32 %v2636, %v2637
        %v2639 = vshll.u32 2475754826, %v2633
        %v2640 = vshrl.u32 2131351028, %v2634
        %v2641 = vor.u32 %v2639, %v2640
        %v2642 = vshll.u32 2131351028, %v2633
        %v2643 = vshrl.u32 2102212464, %v2634
        %v2644 = vor.u32 %v2642, %v2643
        %v2645 = vshll.u32 2102212464, %v2633
        %v2646 = vshrl.u32 920167782, %v2634
        %v2647 = vor.u32 %v2645, %v2646
        %v2648 = vshll.u32 920167782, %v2633
        %v2649 = vshrl.u32 1326507024, %v2634
        %v2650 = vor.u32 %v2648, %v2649
        %vm2651 = vcmp.lt.s32.totalorder %v2632, 1
        %vm2652 = vcmp.lt.s32.totalorder %v2632, 2
        %vm2653 = vcmp.lt.s32.totalorder %v2632, 3
        %vm2654 = vcmp.lt.s32.totalorder %v2632, 4
        %v2655 = vsel %vm2651, %v2635, %v2638
        %v2656 = vsel %vm2654, %v2644, 2102212464
        %v2657 = vsel %vm2653, %v2641, %v2656
        %v2658 = vsel %vm2652, %v2655, %v2657
        %v2659 = vsel %vm2651, %v2638, %v2641
        %v2660 = vsel %vm2654, %v2647, 920167782
        %v2661 = vsel %vm2653, %v2644, %v2660
        %v2662 = vsel %vm2652, %v2659, %v2661
        %v2663 = vsel %vm2651, %v2641, %v2644
        %v2664 = vsel %vm2654, %v2650, 1326507024
        %v2665 = vsel %vm2653, %v2647, %v2664
        %v2666 = vsel %vm2652, %v2663, %v2665
        %v2667 = vshll.u32 %v2627, 8
        %v2668 = vmul.u32.u64.compose %v2667, %v2666
        %v2669 = vextract.low.u32 %v2668
        %v2670 = vextract.high.u32 %v2668
        %v2671 = vmul.u32.u64.compose %v2667, %v2662
        %v2672 = vextract.low.u32 %v2671
        %v2673 = vextract.high.u32 %v2671
        %v2674 = vmul.u32 %v2667, %v2658
        %v2675 = vadd.s32 %v2670, %v2672
        %vm2676 = vc.u32 %v2670, %v2672
        %v2677 = vadd.s32 %v2673, 1
        %v2678 = vsel %vm2676, %v2677, %v2673
        %v2679 = vadd.s32 %v2674, %v2678
        %v2680 = vadd.s32 %v2679, 536870912
        %v2681 = vshrl.u32 %v2680, 30
        %v2682 = vshll.u32 %v2681, 30
        %v2683 = vsub.s32 %v2679, %v2682
        %vm2684 = vcmp.lt.s32.totalorder %v2683, 0
        %v2685 = vsub.s32 0, %v2683
        %v2686 = vsel %vm2684, %v2685, %v2683
        %v2687 = vclz %v2686
        %v2688 = vsub.s32 %v2687, 2
        %vm2689 = vcmp.gt.s32.totalorder 0, %v2688
        %v2690 = vsel %vm2689, 0, %v2688
        %v2691 = vsub.s32 32, %v2690
        %v2692 = vshll.u32 %v2683, %v2690
        %v2693 = vshrl.u32 %v2675, %v2691
        %v2694 = vor.u32 %v2692, %v2693
        %v2695 = vsub.s32 4294967266, %v2690
        %v2696 = vadd.s32 %v2695, 127
        %v2697 = vshll.u32 %v2696, 23
        %v2698 = vor.u32 4788187, %v2697
        %v2699 = vand.u32 2147483647, %v2698
        %v2701 = vcvt.s32.f32 %v2694
        %v2702 = vmul.f32 %v2701, %v2699
        %v2703 = vxor.u32 %v2702, 2147483648
        %v2704 = vsel %vm2621, %v2703, %v2702
        %v2705 = vsub.s32 4, %v2681
        %v2706 = vsel %vm2621, %v2705, %v2681
        %v2707 = vsel %vm2620, %v754, %v2704
        %v2708 = vsel %vm2620, 0, %v2706
        %v2709 = vcosq.f32.pop %v2707
        %v2710 = vsinq.f32.pop %v2707
        %vm2711 = vweird.f32 %v754
        %v2712 = vadd.s32 %v2708, 3
        %v2713 = vand.u32 %v2712, 3
        %vm2714 = vcmp.lt.s32.totalorder %v2713, 2
        %vm2715 = vcmp.eq.s32.totalorder %v2713, 0
        %v2716 = vxor.u32 %v2710, 2147483648
        %v2717 = vsel %vm2715, %v2709, %v2716
        %vm2718 = vcmp.eq.s32.totalorder %v2713, 2
        %v2719 = vxor.u32 %v2709, 2147483648
        %v2720 = vsel %vm2718, %v2719, %v2710
        %v2721 = vsel %vm2714, %v2717, %v2720
        %v2722 = vsel %vm2711, nan, %v2721
        %v2723 = vand.u32 2147483647, %v847
        %vm2724 = vcmp.le.f32.partialorder %v2723, 0.7853982
        %vm2725 = vcmp.lt.s32.totalorder %v847, 0
        %v2726 = vand.u32 %v847, 2139095040
        %v2727 = vshrl.u32 %v2726, 23
        %v2728 = vsub.s32 %v2727, 127
        %v2729 = vand.u32 2147483647, %v847
        %v2730 = vand.u32 %v2729, 8388607
        %v2731 = vor.u32 %v2730, 8388608
        %v2732 = vsub.s32 0, %v2731
        %v2733 = vadd.s32 %v2728, 1
        %vm2734 = vcmp.gt.s32.totalorder %v2733, 0
        %v2735 = vsel %vm2734, %v2733, 0
        %v2736 = vshrl.u32 %v2735, 5
        %v2737 = vand.u32 %v2735, 31
        %v2738 = vsub.s32 32, %v2737
        %v2739 = vshrl.u32 683565275, %v2738
        %v2740 = vshll.u32 683565275, %v2737
        %v2741 = vshrl.u32 2475754826, %v2738
        %v2742 = vor.u32 %v2740, %v2741
        %v2743 = vshll.u32 2475754826, %v2737
        %v2744 = vshrl.u32 2131351028, %v2738
        %v2745 = vor.u32 %v2743, %v2744
        %v2746 = vshll.u32 2131351028, %v2737
        %v2747 = vshrl.u32 2102212464, %v2738
        %v2748 = vor.u32 %v2746, %v2747
        %v2749 = vshll.u32 2102212464, %v2737
        %v2750 = vshrl.u32 920167782, %v2738
        %v2751 = vor.u32 %v2749, %v2750
        %v2752 = vshll.u32 920167782, %v2737
        %v2753 = vshrl.u32 1326507024, %v2738
        %v2754 = vor.u32 %v2752, %v2753
        %vm2755 = vcmp.lt.s32.totalorder %v2736, 1
        %vm2756 = vcmp.lt.s32.totalorder %v2736, 2
        %vm2757 = vcmp.lt.s32.totalorder %v2736, 3
        %vm2758 = vcmp.lt.s32.totalorder %v2736, 4
        %v2759 = vsel %vm2755, %v2739, %v2742
        %v2760 = vsel %vm2758, %v2748, 2102212464
        %v2761 = vsel %vm2757, %v2745, %v2760
        %v2762 = vsel %vm2756, %v2759, %v2761
        %v2763 = vsel %vm2755, %v2742, %v2745
        %v2764 = vsel %vm2758, %v2751, 920167782
        %v2765 = vsel %vm2757, %v2748, %v2764
        %v2766 = vsel %vm2756, %v2763, %v2765
        %v2767 = vsel %vm2755, %v2745, %v2748
        %v2768 = vsel %vm2758, %v2754, 1326507024
        %v2769 = vsel %vm2757, %v2751, %v2768
        %v2770 = vsel %vm2756, %v2767, %v2769
        %v2771 = vshll.u32 %v2731, 8
        %v2772 = vmul.u32.u64.compose %v2771, %v2770
        %v2773 = vextract.low.u32 %v2772
        %v2774 = vextract.high.u32 %v2772
        %v2775 = vmul.u32.u64.compose %v2771, %v2766
        %v2776 = vextract.low.u32 %v2775
        %v2777 = vextract.high.u32 %v2775
        %v2778 = vmul.u32 %v2771, %v2762
        %v2779 = vadd.s32 %v2774, %v2776
        %vm2780 = vc.u32 %v2774, %v2776
        %v2781 = vadd.s32 %v2777, 1
        %v2782 = vsel %vm2780, %v2781, %v2777
        %v2783 = vadd.s32 %v2778, %v2782
        %v2784 = vadd.s32 %v2783, 536870912
        %v2785 = vshrl.u32 %v2784, 30
        %v2786 = vshll.u32 %v2785, 30
        %v2787 = vsub.s32 %v2783, %v2786
        %vm2788 = vcmp.lt.s32.totalorder %v2787, 0
        %v2789 = vsub.s32 0, %v2787
        %v2790 = vsel %vm2788, %v2789, %v2787
        %v2791 = vclz %v2790
        %v2792 = vsub.s32 %v2791, 2
        %vm2793 = vcmp.gt.s32.totalorder 0, %v2792
        %v2794 = vsel %vm2793, 0, %v2792
        %v2795 = vsub.s32 32, %v2794
        %v2796 = vshll.u32 %v2787, %v2794
        %v2797 = vshrl.u32 %v2779, %v2795
        %v2798 = vor.u32 %v2796, %v2797
        %v2799 = vsub.s32 4294967266, %v2794
        %v2800 = vadd.s32 %v2799, 127
        %v2801 = vshll.u32 %v2800, 23
        %v2802 = vor.u32 4788187, %v2801
        %v2803 = vand.u32 2147483647, %v2802
        %v2805 = vcvt.s32.f32 %v2798
        %v2806 = vmul.f32 %v2805, %v2803
        %v2807 = vxor.u32 %v2806, 2147483648
        %v2808 = vsel %vm2725, %v2807, %v2806
        %v2809 = vsub.s32 4, %v2785
        %v2810 = vsel %vm2725, %v2809, %v2785
        %v2811 = vsel %vm2724, %v847, %v2808
        %v2812 = vsel %vm2724, 0, %v2810
        %v2813 = vcosq.f32.pop %v2811
        %v2814 = vsinq.f32.pop %v2811
        %vm2815 = vweird.f32 %v847
        %v2816 = vadd.s32 %v2812, 3
        %v2817 = vand.u32 %v2816, 3
        %vm2818 = vcmp.lt.s32.totalorder %v2817, 2
        %vm2819 = vcmp.eq.s32.totalorder %v2817, 0
        %v2820 = vxor.u32 %v2814, 2147483648
        %v2821 = vsel %vm2819, %v2813, %v2820
        %vm2822 = vcmp.eq.s32.totalorder %v2817, 2
        %v2823 = vxor.u32 %v2813, 2147483648
        %v2824 = vsel %vm2822, %v2823, %v2814
        %v2825 = vsel %vm2818, %v2821, %v2824
        %v2826 = vsel %vm2815, nan, %v2825
        %v2827 = vand.u32 2147483647, %v849
        %vm2828 = vcmp.le.f32.partialorder %v2827, 0.7853982
        %vm2829 = vcmp.lt.s32.totalorder %v849, 0
        %v2830 = vand.u32 %v849, 2139095040
        %v2831 = vshrl.u32 %v2830, 23
        %v2832 = vsub.s32 %v2831, 127
        %v2833 = vand.u32 2147483647, %v849
        %v2834 = vand.u32 %v2833, 8388607
        %v2835 = vor.u32 %v2834, 8388608
        %v2836 = vsub.s32 0, %v2835
        %v2837 = vadd.s32 %v2832, 1
        %vm2838 = vcmp.gt.s32.totalorder %v2837, 0
        %v2839 = vsel %vm2838, %v2837, 0
        %v2840 = vshrl.u32 %v2839, 5
        %v2841 = vand.u32 %v2839, 31
        %v2842 = vsub.s32 32, %v2841
        %v2843 = vshrl.u32 683565275, %v2842
        %v2844 = vshll.u32 683565275, %v2841
        %v2845 = vshrl.u32 2475754826, %v2842
        %v2846 = vor.u32 %v2844, %v2845
        %v2847 = vshll.u32 2475754826, %v2841
        %v2848 = vshrl.u32 2131351028, %v2842
        %v2849 = vor.u32 %v2847, %v2848
        %v2850 = vshll.u32 2131351028, %v2841
        %v2851 = vshrl.u32 2102212464, %v2842
        %v2852 = vor.u32 %v2850, %v2851
        %v2853 = vshll.u32 2102212464, %v2841
        %v2854 = vshrl.u32 920167782, %v2842
        %v2855 = vor.u32 %v2853, %v2854
        %v2856 = vshll.u32 920167782, %v2841
        %v2857 = vshrl.u32 1326507024, %v2842
        %v2858 = vor.u32 %v2856, %v2857
        %vm2859 = vcmp.lt.s32.totalorder %v2840, 1
        %vm2860 = vcmp.lt.s32.totalorder %v2840, 2
        %vm2861 = vcmp.lt.s32.totalorder %v2840, 3
        %vm2862 = vcmp.lt.s32.totalorder %v2840, 4
        %v2863 = vsel %vm2859, %v2843, %v2846
        %v2864 = vsel %vm2862, %v2852, 2102212464
        %v2865 = vsel %vm2861, %v2849, %v2864
        %v2866 = vsel %vm2860, %v2863, %v2865
        %v2867 = vsel %vm2859, %v2846, %v2849
        %v2868 = vsel %vm2862, %v2855, 920167782
        %v2869 = vsel %vm2861, %v2852, %v2868
        %v2870 = vsel %vm2860, %v2867, %v2869
        %v2871 = vsel %vm2859, %v2849, %v2852
        %v2872 = vsel %vm2862, %v2858, 1326507024
        %v2873 = vsel %vm2861, %v2855, %v2872
        %v2874 = vsel %vm2860, %v2871, %v2873
        %v2875 = vshll.u32 %v2835, 8
        %v2876 = vmul.u32.u64.compose %v2875, %v2874
        %v2877 = vextract.low.u32 %v2876
        %v2878 = vextract.high.u32 %v2876
        %v2879 = vmul.u32.u64.compose %v2875, %v2870
        %v2880 = vextract.low.u32 %v2879
        %v2881 = vextract.high.u32 %v2879
        %v2882 = vmul.u32 %v2875, %v2866
        %v2883 = vadd.s32 %v2878, %v2880
        %vm2884 = vc.u32 %v2878, %v2880
        %v2885 = vadd.s32 %v2881, 1
        %v2886 = vsel %vm2884, %v2885, %v2881
        %v2887 = vadd.s32 %v2882, %v2886
        %v2888 = vadd.s32 %v2887, 536870912
        %v2889 = vshrl.u32 %v2888, 30
        %v2890 = vshll.u32 %v2889, 30
        %v2891 = vsub.s32 %v2887, %v2890
        %vm2892 = vcmp.lt.s32.totalorder %v2891, 0
        %v2893 = vsub.s32 0, %v2891
        %v2894 = vsel %vm2892, %v2893, %v2891
        %v2895 = vclz %v2894
        %v2896 = vsub.s32 %v2895, 2
        %vm2897 = vcmp.gt.s32.totalorder 0, %v2896
        %v2898 = vsel %vm2897, 0, %v2896
        %v2899 = vsub.s32 32, %v2898
        %v2900 = vshll.u32 %v2891, %v2898
        %v2901 = vshrl.u32 %v2883, %v2899
        %v2902 = vor.u32 %v2900, %v2901
        %v2903 = vsub.s32 4294967266, %v2898
        %v2904 = vadd.s32 %v2903, 127
        %v2905 = vshll.u32 %v2904, 23
        %v2906 = vor.u32 4788187, %v2905
        %v2907 = vand.u32 2147483647, %v2906
        %v2909 = vcvt.s32.f32 %v2902
        %v2910 = vmul.f32 %v2909, %v2907
        %v2911 = vxor.u32 %v2910, 2147483648
        %v2912 = vsel %vm2829, %v2911, %v2910
        %v2913 = vsub.s32 4, %v2889
        %v2914 = vsel %vm2829, %v2913, %v2889
        %v2915 = vsel %vm2828, %v849, %v2912
        %v2916 = vsel %vm2828, 0, %v2914
        %v2917 = vcosq.f32.pop %v2915
        %v2918 = vsinq.f32.pop %v2915
        %vm2919 = vweird.f32 %v849
        %v2920 = vadd.s32 %v2916, 3
        %v2921 = vand.u32 %v2920, 3
        %vm2922 = vcmp.lt.s32.totalorder %v2921, 2
        %vm2923 = vcmp.eq.s32.totalorder %v2921, 0
        %v2924 = vxor.u32 %v2918, 2147483648
        %v2925 = vsel %vm2923, %v2917, %v2924
        %vm2926 = vcmp.eq.s32.totalorder %v2921, 2
        %v2927 = vxor.u32 %v2917, 2147483648
        %v2928 = vsel %vm2926, %v2927, %v2918
        %v2929 = vsel %vm2922, %v2925, %v2928
        %v2930 = vsel %vm2919, nan, %v2929
        %v2931 = vld [vmem:[%s3] sm:$0xff]
        %v2932 = vld [vmem:[%s3 + $0x8] sm:$0xff]
        %v2933 = vld [vmem:[%s3 + $0x10] sm:$0xff]
        %v2934 = vld [vmem:[%s3 + $0x18] sm:$0xff]
        %v2935 = vld [vmem:[%s4] sm:$0xff]
        %v2936 = vld [vmem:[%s4 + $0x8] sm:$0xff]
        %v2937 = vld [vmem:[%s4 + $0x10] sm:$0xff]
        %v2938 = vld [vmem:[%s4 + $0x18] sm:$0xff]
        %2940 = vset.pattern.permute.xlu0 0
        %2941 = vperm.xlu0 %2940, %v2935
        %v2942 = vpop.permute.xlu0 %2941
        %2945 = vset.pattern.permute.xlu0 0
        %2946 = vperm.xlu0 %2945, %v2936
        %v2947 = vpop.permute.xlu0 %2946
        %2950 = vset.pattern.permute.xlu0 0
        %2951 = vperm.xlu0 %2950, %v2937
        %v2952 = vpop.permute.xlu0 %2951
        %2955 = vset.pattern.permute.xlu0 0
        %2956 = vperm.xlu0 %2955, %v2938
        %v2957 = vpop.permute.xlu0 %2956
        %vm2959 = vcmask 326656
        %v2961 = vsel %vm2959, %v2931, 0
        %v2964 = vsel %vm2959, %v2932, 0
        %v2967 = vsel %vm2959, %v2933, 0
        %v2970 = vsel %vm2959, %v2934, 0
        %2972 = vmatprep.subr.mxu0 %v1058
        %2973 = vmatpush1.msra.mxu0 %v954
        %2974 = vmatprep.subr.mxu0 %v1474
        %2975 = vmatpush1.msra.mxu0 %v1370
        %2976 = vmatprep.subr.mxu0 %v1890
        %2977 = vmatpush1.msra.mxu0 %v1786
        %2978 = vmatprep.subr.mxu0 %v2306
        %2979 = vmatpush1.msra.mxu0 %v2202
        %2980 = vmatprep.subr.mxu0 %v2722
        %2981 = vmatpush1.msra.mxu0 %v2618
        %2982 = vmatprep.subr.mxu0 0.0
        %2983 = vmatpush1.msra.mxu0 0.0
        %2984 = vmatprep.subr.mxu0 0.0
        %2985 = vmatpush1.msra.mxu0 0.0
        %2986 = vmatprep.subr.mxu0 0.0
        %2987 = vmatpush1.msra.mxu0 0.0
        %2988 = vmatprep.subr.mxu0 0.0
        %2989 = vmatpush1.msra.mxu0 0.0
        %2990 = vmatprep.subr.mxu0 0.0
        %2991 = vmatpush1.msra.mxu0 0.0
        %2992 = vmatprep.subr.mxu0 0.0
        %2993 = vmatpush1.msra.mxu0 0.0
        %2994 = vmatprep.subr.mxu0 0.0
        %2995 = vmatpush1.msra.mxu0 0.0
        %2996 = vmatprep.subr.mxu0 0.0
        %2997 = vmatpush1.msra.mxu0 0.0
        %2998 = vmatprep.subr.mxu0 0.0
        %2999 = vmatpush1.msra.mxu0 0.0
        %3000 = vmatprep.subr.mxu0 0.0
        %3001 = vmatpush1.msra.mxu0 0.0
        %3002 = vmatprep.subr.mxu0 0.0
        %3003 = vmatpush1.msra.mxu0 0.0
        %3004 = vmatprep.subr.mxu0 0.0
        %3005 = vmatpush1.msra.mxu0 0.0
        %3006 = vmatprep.subr.mxu0 0.0
        %3007 = vmatpush1.msra.mxu0 0.0
        %3008 = vmatprep.subr.mxu0 0.0
        %3009 = vmatpush1.msra.mxu0 0.0
        %3010 = vmatprep.subr.mxu0 0.0
        %3011 = vmatpush1.msra.mxu0 0.0
        %3012 = vmatprep.subr.mxu0 0.0
        %3013 = vmatpush1.msra.mxu0 0.0
        %3014 = vmatprep.subr.mxu0 0.0
        %3015 = vmatpush1.msra.mxu0 0.0
        %3016 = vmatprep.subr.mxu0 0.0
        %3017 = vmatpush1.msra.mxu0 0.0
        %3018 = vmatprep.subr.mxu0 0.0
        %3019 = vmatpush1.msra.mxu0 0.0
        %3020 = vmatprep.subr.mxu0 0.0
        %3021 = vmatpush1.msra.mxu0 0.0
        %3022 = vmatprep.subr.mxu0 0.0
        %3023 = vmatpush1.msra.mxu0 0.0
        %3024 = vmatprep.subr.mxu0 0.0
        %3025 = vmatpush1.msra.mxu0 0.0
        %3026 = vmatprep.subr.mxu0 0.0
        %3027 = vmatpush1.msra.mxu0 0.0
        %3028 = vmatprep.subr.mxu0 0.0
        %3029 = vmatpush1.msra.mxu0 0.0
        %3030 = vmatprep.subr.mxu0 0.0
        %3031 = vmatpush1.msra.mxu0 0.0
        %3032 = vmatprep.subr.mxu0 0.0
        %3033 = vmatpush1.msra.mxu0 0.0
        %3034 = vmatprep.subr.mxu0 0.0
        %3035 = vmatpush1.msra.mxu0 0.0
        %3036 = vmatprep.mubr.f32.mxu0 0.0
        %3037 = vmatmul.mubr.f32.gmra.mrb[0].mxu0 %v2961
        %v3038 = vpop.f32.mrb[0].mxu0
        %v3039 = vadd.f32 %v2942, %v3038
        %v3040 = vpop.f32.mrb[0].mxu0
        %v3041 = vadd.f32 %v2942, %v3040
        %3042 = vmatprep.mubr.f32.mxu0 0.0
        %3043 = vmatmul.mubr.f32.gmra.mrb[0].mxu0 %v2964
        %v3044 = vpop.f32.mrb[0].mxu0
        %v3045 = vadd.f32 %v2947, %v3044
        %v3046 = vpop.f32.mrb[0].mxu0
        %v3047 = vadd.f32 %v2947, %v3046
        %3048 = vmatprep.mubr.f32.mxu0 0.0
        %3049 = vmatmul.mubr.f32.gmra.mrb[0].mxu0 %v2967
        %v3050 = vpop.f32.mrb[0].mxu0
        %v3051 = vadd.f32 %v2952, %v3050
        %v3052 = vpop.f32.mrb[0].mxu0
        %v3053 = vadd.f32 %v2952, %v3052
        %3054 = vmatprep.mubr.f32.mxu0 0.0
        %3055 = vmatmul.mubr.f32.gmra.mrb[0].mxu0 %v2970
        %v3056 = vpop.f32.mrb[0].mxu0
        %v3057 = vadd.f32 %v2957, %v3056
        %v3058 = vpop.f32.mrb[0].mxu0
        %v3059 = vadd.f32 %v2957, %v3058
        %3060 = vdwg.mxu0
        %3061 = vmatprep.subr.mxu0 %v1266
        %3062 = vmatpush1.msra.mxu0 %v1162
        %3063 = vmatprep.subr.mxu0 %v1682
        %3064 = vmatpush1.msra.mxu0 %v1578
        %3065 = vmatprep.subr.mxu0 %v2098
        %3066 = vmatpush1.msra.mxu0 %v1994
        %3067 = vmatprep.subr.mxu0 %v2514
        %3068 = vmatpush1.msra.mxu0 %v2410
        %3069 = vmatprep.subr.mxu0 %v2930
        %3070 = vmatpush1.msra.mxu0 %v2826
        %3071 = vmatprep.subr.mxu0 0.0
        %3072 = vmatpush1.msra.mxu0 0.0
        %3073 = vmatprep.subr.mxu0 0.0
        %3074 = vmatpush1.msra.mxu0 0.0
        %3075 = vmatprep.subr.mxu0 0.0
        %3076 = vmatpush1.msra.mxu0 0.0
        %3077 = vmatprep.subr.mxu0 0.0
        %3078 = vmatpush1.msra.mxu0 0.0
        %3079 = vmatprep.subr.mxu0 0.0
        %3080 = vmatpush1.msra.mxu0 0.0
        %3081 = vmatprep.subr.mxu0 0.0
        %3082 = vmatpush1.msra.mxu0 0.0
        %3083 = vmatprep.subr.mxu0 0.0
        %3084 = vmatpush1.msra.mxu0 0.0
        %3085 = vmatprep.subr.mxu0 0.0
        %3086 = vmatpush1.msra.mxu0 0.0
        %3087 = vmatprep.subr.mxu0 0.0
        %3088 = vmatpush1.msra.mxu0 0.0
        %3089 = vmatprep.subr.mxu0 0.0
        %3090 = vmatpush1.msra.mxu0 0.0
        %3091 = vmatprep.subr.mxu0 0.0
        %3092 = vmatpush1.msra.mxu0 0.0
        %3093 = vmatprep.subr.mxu0 0.0
        %3094 = vmatpush1.msra.mxu0 0.0
        %3095 = vmatprep.subr.mxu0 0.0
        %3096 = vmatpush1.msra.mxu0 0.0
        %3097 = vmatprep.subr.mxu0 0.0
        %3098 = vmatpush1.msra.mxu0 0.0
        %3099 = vmatprep.subr.mxu0 0.0
        %3100 = vmatpush1.msra.mxu0 0.0
        %3101 = vmatprep.subr.mxu0 0.0
        %3102 = vmatpush1.msra.mxu0 0.0
        %3103 = vmatprep.subr.mxu0 0.0
        %3104 = vmatpush1.msra.mxu0 0.0
        %3105 = vmatprep.subr.mxu0 0.0
        %3106 = vmatpush1.msra.mxu0 0.0
        %3107 = vmatprep.subr.mxu0 0.0
        %3108 = vmatpush1.msra.mxu0 0.0
        %3109 = vmatprep.subr.mxu0 0.0
        %3110 = vmatpush1.msra.mxu0 0.0
        %3111 = vmatprep.subr.mxu0 0.0
        %3112 = vmatpush1.msra.mxu0 0.0
        %3113 = vmatprep.subr.mxu0 0.0
        %3114 = vmatpush1.msra.mxu0 0.0
        %3115 = vmatprep.subr.mxu0 0.0
        %3116 = vmatpush1.msra.mxu0 0.0
        %3117 = vmatprep.subr.mxu0 0.0
        %3118 = vmatpush1.msra.mxu0 0.0
        %3119 = vmatprep.subr.mxu0 0.0
        %3120 = vmatpush1.msra.mxu0 0.0
        %3121 = vmatprep.subr.mxu0 0.0
        %3122 = vmatpush1.msra.mxu0 0.0
        %3123 = vmatprep.subr.mxu0 0.0
        %3124 = vmatpush1.msra.mxu0 0.0
        %3125 = vmatprep.mubr.f32.mxu0 0.0
        %3126 = vmatmul.mubr.f32.gmra.mrb[0].mxu0 %v2961
        %v3127 = vpop.f32.mrb[0].mxu0
        %v3128 = vadd.f32 %v2942, %v3127
        %v3129 = vpop.f32.mrb[0].mxu0
        %v3130 = vadd.f32 %v2942, %v3129
        %3131 = vmatprep.mubr.f32.mxu0 0.0
        %3132 = vmatmul.mubr.f32.gmra.mrb[0].mxu0 %v2964
        %v3133 = vpop.f32.mrb[0].mxu0
        %v3134 = vadd.f32 %v2947, %v3133
        %v3135 = vpop.f32.mrb[0].mxu0
        %v3136 = vadd.f32 %v2947, %v3135
        %3137 = vmatprep.mubr.f32.mxu0 0.0
        %3138 = vmatmul.mubr.f32.gmra.mrb[0].mxu0 %v2967
        %v3139 = vpop.f32.mrb[0].mxu0
        %v3140 = vadd.f32 %v2952, %v3139
        %v3141 = vpop.f32.mrb[0].mxu0
        %v3142 = vadd.f32 %v2952, %v3141
        %3143 = vmatprep.mubr.f32.mxu0 0.0
        %3144 = vmatmul.mubr.f32.gmra.mrb[0].mxu0 %v2970
        %v3145 = vpop.f32.mrb[0].mxu0
        %v3146 = vadd.f32 %v2957, %v3145
        %v3147 = vpop.f32.mrb[0].mxu0
        %v3148 = vadd.f32 %v2957, %v3147
        %3149 = vdwg.mxu0
        %v3150 = vmax.f32 %v3039, 0.0
        %v3151 = vmax.f32 %v3041, 0.0
        %v3152 = vmax.f32 %v3128, 0.0
        %v3153 = vmax.f32 %v3130, 0.0
        %v3154 = vmax.f32 %v3045, 0.0
        %v3155 = vmax.f32 %v3047, 0.0
        %v3156 = vmax.f32 %v3134, 0.0
        %v3157 = vmax.f32 %v3136, 0.0
        %v3158 = vmax.f32 %v3051, 0.0
        %v3159 = vmax.f32 %v3053, 0.0
        %v3160 = vmax.f32 %v3140, 0.0
        %v3161 = vmax.f32 %v3142, 0.0
        %v3162 = vmax.f32 %v3057, 0.0
        %v3163 = vmax.f32 %v3059, 0.0
        %v3164 = vmax.f32 %v3146, 0.0
        %v3165 = vmax.f32 %v3148, 0.0
        %v3166 = vld [vmem:[%s5] sm:$0xff]
        %v3167 = vld [vmem:[%s5 + $0x8] sm:$0xff]
        %v3168 = vld [vmem:[%s5 + $0x10] sm:$0xff]
        %v3169 = vld [vmem:[%s5 + $0x18] sm:$0xff]
        %v3170 = vld [vmem:[%s6] sm:$0xff]
        %v3171 = vld [vmem:[%s6 + $0x8] sm:$0xff]
        %v3172 = vld [vmem:[%s6 + $0x10] sm:$0xff]
        %v3173 = vld [vmem:[%s6 + $0x18] sm:$0xff]
        %3175 = vset.pattern.permute.xlu0 0
        %3176 = vperm.xlu0 %3175, %v3170
        %v3177 = vpop.permute.xlu0 %3176
        %3180 = vset.pattern.permute.xlu0 0
        %3181 = vperm.xlu0 %3180, %v3171
        %v3182 = vpop.permute.xlu0 %3181
        %3185 = vset.pattern.permute.xlu0 0
        %3186 = vperm.xlu0 %3185, %v3172
        %v3187 = vpop.permute.xlu0 %3186
        %3190 = vset.pattern.permute.xlu0 0
        %3191 = vperm.xlu0 %3190, %v3173
        %v3192 = vpop.permute.xlu0 %3191
        %vm3194 = vcmask 261120
        %v3196 = vsel %vm3194, %v3166, 0
        %v3199 = vsel %vm3194, %v3167, 0
        %v3202 = vsel %vm3194, %v3168, 0
        %v3205 = vsel %vm3194, %v3169, 0
        %3207 = vmatprep.subr.mxu0 %v3151
        %3208 = vmatpush1.msra.mxu0 %v3150
        %3209 = vmatprep.subr.mxu0 %v3155
        %3210 = vmatpush1.msra.mxu0 %v3154
        %3211 = vmatprep.subr.mxu0 %v3159
        %3212 = vmatpush1.msra.mxu0 %v3158
        %3213 = vmatprep.subr.mxu0 %v3163
        %3214 = vmatpush1.msra.mxu0 %v3162
        %3215 = vmatprep.subr.mxu0 0.0
        %3216 = vmatpush1.msra.mxu0 0.0
        %3217 = vmatprep.subr.mxu0 0.0
        %3218 = vmatpush1.msra.mxu0 0.0
        %3219 = vmatprep.subr.mxu0 0.0
        %3220 = vmatpush1.msra.mxu0 0.0
        %3221 = vmatprep.subr.mxu0 0.0
        %3222 = vmatpush1.msra.mxu0 0.0
        %3223 = vmatprep.subr.mxu0 0.0
        %3224 = vmatpush1.msra.mxu0 0.0
        %3225 = vmatprep.subr.mxu0 0.0
        %3226 = vmatpush1.msra.mxu0 0.0
        %3227 = vmatprep.subr.mxu0 0.0
        %3228 = vmatpush1.msra.mxu0 0.0
        %3229 = vmatprep.subr.mxu0 0.0
        %3230 = vmatpush1.msra.mxu0 0.0
        %3231 = vmatprep.subr.mxu0 0.0
        %3232 = vmatpush1.msra.mxu0 0.0
        %3233 = vmatprep.subr.mxu0 0.0
        %3234 = vmatpush1.msra.mxu0 0.0
        %3235 = vmatprep.subr.mxu0 0.0
        %3236 = vmatpush1.msra.mxu0 0.0
        %3237 = vmatprep.subr.mxu0 0.0
        %3238 = vmatpush1.msra.mxu0 0.0
        %3239 = vmatprep.subr.mxu0 0.0
        %3240 = vmatpush1.msra.mxu0 0.0
        %3241 = vmatprep.subr.mxu0 0.0
        %3242 = vmatpush1.msra.mxu0 0.0
        %3243 = vmatprep.subr.mxu0 0.0
        %3244 = vmatpush1.msra.mxu0 0.0
        %3245 = vmatprep.subr.mxu0 0.0
        %3246 = vmatpush1.msra.mxu0 0.0
        %3247 = vmatprep.subr.mxu0 0.0
        %3248 = vmatpush1.msra.mxu0 0.0
        %3249 = vmatprep.subr.mxu0 0.0
        %3250 = vmatpush1.msra.mxu0 0.0
        %3251 = vmatprep.subr.mxu0 0.0
        %3252 = vmatpush1.msra.mxu0 0.0
        %3253 = vmatprep.subr.mxu0 0.0
        %3254 = vmatpush1.msra.mxu0 0.0
        %3255 = vmatprep.subr.mxu0 0.0
        %3256 = vmatpush1.msra.mxu0 0.0
        %3257 = vmatprep.subr.mxu0 0.0
        %3258 = vmatpush1.msra.mxu0 0.0
        %3259 = vmatprep.subr.mxu0 0.0
        %3260 = vmatpush1.msra.mxu0 0.0
        %3261 = vmatprep.subr.mxu0 0.0
        %3262 = vmatpush1.msra.mxu0 0.0
        %3263 = vmatprep.subr.mxu0 0.0
        %3264 = vmatpush1.msra.mxu0 0.0
        %3265 = vmatprep.subr.mxu0 0.0
        %3266 = vmatpush1.msra.mxu0 0.0
        %3267 = vmatprep.subr.mxu0 0.0
        %3268 = vmatpush1.msra.mxu0 0.0
        %3269 = vmatprep.subr.mxu0 0.0
        %3270 = vmatpush1.msra.mxu0 0.0
        %3271 = vmatprep.mubr.f32.mxu0 0.0
        %3272 = vmatmul.mubr.f32.gmra.mrb[0].mxu0 %v3196
        %v3273 = vpop.f32.mrb[0].mxu0
        %v3274 = vadd.f32 %v3177, %v3273
        %v3275 = vpop.f32.mrb[0].mxu0
        %v3276 = vadd.f32 %v3177, %v3275
        %3277 = vmatprep.mubr.f32.mxu0 0.0
        %3278 = vmatmul.mubr.f32.gmra.mrb[0].mxu0 %v3199
        %v3279 = vpop.f32.mrb[0].mxu0
        %v3280 = vadd.f32 %v3182, %v3279
        %v3281 = vpop.f32.mrb[0].mxu0
        %v3282 = vadd.f32 %v3182, %v3281
        %3283 = vmatprep.mubr.f32.mxu0 0.0
        %3284 = vmatmul.mubr.f32.gmra.mrb[0].mxu0 %v3202
        %v3285 = vpop.f32.mrb[0].mxu0
        %v3286 = vadd.f32 %v3187, %v3285
        %v3287 = vpop.f32.mrb[0].mxu0
        %v3288 = vadd.f32 %v3187, %v3287
        %3289 = vmatprep.mubr.f32.mxu0 0.0
        %3290 = vmatmul.mubr.f32.gmra.mrb[0].mxu0 %v3205
        %v3291 = vpop.f32.mrb[0].mxu0
        %v3292 = vadd.f32 %v3192, %v3291
        %v3293 = vpop.f32.mrb[0].mxu0
        %v3294 = vadd.f32 %v3192, %v3293
        %3295 = vdwg.mxu0
        %3296 = vmatprep.subr.mxu0 %v3153
        %3297 = vmatpush1.msra.mxu0 %v3152
        %3298 = vmatprep.subr.mxu0 %v3157
        %3299 = vmatpush1.msra.mxu0 %v3156
        %3300 = vmatprep.subr.mxu0 %v3161
        %3301 = vmatpush1.msra.mxu0 %v3160
        %3302 = vmatprep.subr.mxu0 %v3165
        %3303 = vmatpush1.msra.mxu0 %v3164
        %3304 = vmatprep.subr.mxu0 0.0
        %3305 = vmatpush1.msra.mxu0 0.0
        %3306 = vmatprep.subr.mxu0 0.0
        %3307 = vmatpush1.msra.mxu0 0.0
        %3308 = vmatprep.subr.mxu0 0.0
        %3309 = vmatpush1.msra.mxu0 0.0
        %3310 = vmatprep.subr.mxu0 0.0
        %3311 = vmatpush1.msra.mxu0 0.0
        %3312 = vmatprep.subr.mxu0 0.0
        %3313 = vmatpush1.msra.mxu0 0.0
        %3314 = vmatprep.subr.mxu0 0.0
        %3315 = vmatpush1.msra.mxu0 0.0
        %3316 = vmatprep.subr.mxu0 0.0
        %3317 = vmatpush1.msra.mxu0 0.0
        %3318 = vmatprep.subr.mxu0 0.0
        %3319 = vmatpush1.msra.mxu0 0.0
        %3320 = vmatprep.subr.mxu0 0.0
        %3321 = vmatpush1.msra.mxu0 0.0
        %3322 = vmatprep.subr.mxu0 0.0
        %3323 = vmatpush1.msra.mxu0 0.0
        %3324 = vmatprep.subr.mxu0 0.0
        %3325 = vmatpush1.msra.mxu0 0.0
        %3326 = vmatprep.subr.mxu0 0.0
        %3327 = vmatpush1.msra.mxu0 0.0
        %3328 = vmatprep.subr.mxu0 0.0
        %3329 = vmatpush1.msra.mxu0 0.0
        %3330 = vmatprep.subr.mxu0 0.0
        %3331 = vmatpush1.msra.mxu0 0.0
        %3332 = vmatprep.subr.mxu0 0.0
        %3333 = vmatpush1.msra.mxu0 0.0
        %3334 = vmatprep.subr.mxu0 0.0
        %3335 = vmatpush1.msra.mxu0 0.0
        %3336 = vmatprep.subr.mxu0 0.0
        %3337 = vmatpush1.msra.mxu0 0.0
        %3338 = vmatprep.subr.mxu0 0.0
        %3339 = vmatpush1.msra.mxu0 0.0
        %3340 = vmatprep.subr.mxu0 0.0
        %3341 = vmatpush1.msra.mxu0 0.0
        %3342 = vmatprep.subr.mxu0 0.0
        %3343 = vmatpush1.msra.mxu0 0.0
        %3344 = vmatprep.subr.mxu0 0.0
        %3345 = vmatpush1.msra.mxu0 0.0
        %3346 = vmatprep.subr.mxu0 0.0
        %3347 = vmatpush1.msra.mxu0 0.0
        %3348 = vmatprep.subr.mxu0 0.0
        %3349 = vmatpush1.msra.mxu0 0.0
        %3350 = vmatprep.subr.mxu0 0.0
        %3351 = vmatpush1.msra.mxu0 0.0
        %3352 = vmatprep.subr.mxu0 0.0
        %3353 = vmatpush1.msra.mxu0 0.0
        %3354 = vmatprep.subr.mxu0 0.0
        %3355 = vmatpush1.msra.mxu0 0.0
        %3356 = vmatprep.subr.mxu0 0.0
        %3357 = vmatpush1.msra.mxu0 0.0
        %3358 = vmatprep.subr.mxu0 0.0
        %3359 = vmatpush1.msra.mxu0 0.0
        %3360 = vmatprep.mubr.f32.mxu0 0.0
        %3361 = vmatmul.mubr.f32.gmra.mrb[0].mxu0 %v3196
        %v3362 = vpop.f32.mrb[0].mxu0
        %v3363 = vadd.f32 %v3177, %v3362
        %v3364 = vpop.f32.mrb[0].mxu0
        %v3365 = vadd.f32 %v3177, %v3364
        %3366 = vmatprep.mubr.f32.mxu0 0.0
        %3367 = vmatmul.mubr.f32.gmra.mrb[0].mxu0 %v3199
        %v3368 = vpop.f32.mrb[0].mxu0
        %v3369 = vadd.f32 %v3182, %v3368
        %v3370 = vpop.f32.mrb[0].mxu0
        %v3371 = vadd.f32 %v3182, %v3370
        %3372 = vmatprep.mubr.f32.mxu0 0.0
        %3373 = vmatmul.mubr.f32.gmra.mrb[0].mxu0 %v3202
        %v3374 = vpop.f32.mrb[0].mxu0
        %v3375 = vadd.f32 %v3187, %v3374
        %v3376 = vpop.f32.mrb[0].mxu0
        %v3377 = vadd.f32 %v3187, %v3376
        %3378 = vmatprep.mubr.f32.mxu0 0.0
        %3379 = vmatmul.mubr.f32.gmra.mrb[0].mxu0 %v3205
        %v3380 = vpop.f32.mrb[0].mxu0
        %v3381 = vadd.f32 %v3192, %v3380
        %v3382 = vpop.f32.mrb[0].mxu0
        %v3383 = vadd.f32 %v3192, %v3382
        %3384 = vdwg.mxu0
        %v3385 = vmax.f32 %v3274, 0.0
        %v3386 = vmax.f32 %v3276, 0.0
        %v3387 = vmax.f32 %v3363, 0.0
        %v3388 = vmax.f32 %v3365, 0.0
        %v3389 = vmax.f32 %v3280, 0.0
        %v3390 = vmax.f32 %v3282, 0.0
        %v3391 = vmax.f32 %v3369, 0.0
        %v3392 = vmax.f32 %v3371, 0.0
        %v3393 = vmax.f32 %v3286, 0.0
        %v3394 = vmax.f32 %v3288, 0.0
        %v3395 = vmax.f32 %v3375, 0.0
        %v3396 = vmax.f32 %v3377, 0.0
        %v3397 = vmax.f32 %v3292, 0.0
        %v3398 = vmax.f32 %v3294, 0.0
        %v3399 = vmax.f32 %v3381, 0.0
        %v3400 = vmax.f32 %v3383, 0.0
        %v3401 = vld [vmem:[%s7] sm:$0xff]
        %v3402 = vld [vmem:[%s7 + $0x8] sm:$0xff]
        %v3403 = vld [vmem:[%s7 + $0x10] sm:$0xff]
        %v3404 = vld [vmem:[%s7 + $0x18] sm:$0xff]
        %v3405 = vld [vmem:[%s8] sm:$0xff]
        %v3406 = vld [vmem:[%s8 + $0x8] sm:$0xff]
        %v3407 = vld [vmem:[%s8 + $0x10] sm:$0xff]
        %v3408 = vld [vmem:[%s8 + $0x18] sm:$0xff]
        %v3410 = vsel %vm2959, %v3405, 0
        %v3413 = vsel %vm2959, %v3406, 0
        %v3416 = vsel %vm2959, %v3407, 0
        %v3419 = vsel %vm2959, %v3408, 0
        %3421 = vmatprep.subr.mxu0 %v1058
        %3422 = vmatpush1.msra.mxu0 %v954
        %3423 = vmatprep.subr.mxu0 %v1474
        %3424 = vmatpush1.msra.mxu0 %v1370
        %3425 = vmatprep.subr.mxu0 %v1890
        %3426 = vmatpush1.msra.mxu0 %v1786
        %3427 = vmatprep.subr.mxu0 %v2306
        %3428 = vmatpush1.msra.mxu0 %v2202
        %3429 = vmatprep.subr.mxu0 %v2722
        %3430 = vmatpush1.msra.mxu0 %v2618
        %3431 = vmatprep.subr.mxu0 0.0
        %3432 = vmatpush1.msra.mxu0 0.0
        %3433 = vmatprep.subr.mxu0 0.0
        %3434 = vmatpush1.msra.mxu0 0.0
        %3435 = vmatprep.subr.mxu0 0.0
        %3436 = vmatpush1.msra.mxu0 0.0
        %3437 = vmatprep.subr.mxu0 0.0
        %3438 = vmatpush1.msra.mxu0 0.0
        %3439 = vmatprep.subr.mxu0 0.0
        %3440 = vmatpush1.msra.mxu0 0.0
        %3441 = vmatprep.subr.mxu0 0.0
        %3442 = vmatpush1.msra.mxu0 0.0
        %3443 = vmatprep.subr.mxu0 0.0
        %3444 = vmatpush1.msra.mxu0 0.0
        %3445 = vmatprep.subr.mxu0 0.0
        %3446 = vmatpush1.msra.mxu0 0.0
        %3447 = vmatprep.subr.mxu0 0.0
        %3448 = vmatpush1.msra.mxu0 0.0
        %3449 = vmatprep.subr.mxu0 0.0
        %3450 = vmatpush1.msra.mxu0 0.0
        %3451 = vmatprep.subr.mxu0 0.0
        %3452 = vmatpush1.msra.mxu0 0.0
        %3453 = vmatprep.subr.mxu0 0.0
        %3454 = vmatpush1.msra.mxu0 0.0
        %3455 = vmatprep.subr.mxu0 0.0
        %3456 = vmatpush1.msra.mxu0 0.0
        %3457 = vmatprep.subr.mxu0 0.0
        %3458 = vmatpush1.msra.mxu0 0.0
        %3459 = vmatprep.subr.mxu0 0.0
        %3460 = vmatpush1.msra.mxu0 0.0
        %3461 = vmatprep.subr.mxu0 0.0
        %3462 = vmatpush1.msra.mxu0 0.0
        %3463 = vmatprep.subr.mxu0 0.0
        %3464 = vmatpush1.msra.mxu0 0.0
        %3465 = vmatprep.subr.mxu0 0.0
        %3466 = vmatpush1.msra.mxu0 0.0
        %3467 = vmatprep.subr.mxu0 0.0
        %3468 = vmatpush1.msra.mxu0 0.0
        %3469 = vmatprep.subr.mxu0 0.0
        %3470 = vmatpush1.msra.mxu0 0.0
        %3471 = vmatprep.subr.mxu0 0.0
        %3472 = vmatpush1.msra.mxu0 0.0
        %3473 = vmatprep.subr.mxu0 0.0
        %3474 = vmatpush1.msra.mxu0 0.0
        %3475 = vmatprep.subr.mxu0 0.0
        %3476 = vmatpush1.msra.mxu0 0.0
        %3477 = vmatprep.subr.mxu0 0.0
        %3478 = vmatpush1.msra.mxu0 0.0
        %3479 = vmatprep.subr.mxu0 0.0
        %3480 = vmatpush1.msra.mxu0 0.0
        %3481 = vmatprep.subr.mxu0 0.0
        %3482 = vmatpush1.msra.mxu0 0.0
        %3483 = vmatprep.subr.mxu0 0.0
        %3484 = vmatpush1.msra.mxu0 0.0
        %3485 = vmatprep.mubr.f32.mxu0 0.0
        %3486 = vmatmul.mubr.f32.gmra.mrb[0].mxu0 %v3410
        %v3487 = vpop.f32.mrb[0].mxu0
        %v3488 = vadd.f32 0.0, %v3487
        %v3489 = vpop.f32.mrb[0].mxu0
        %v3490 = vadd.f32 0.0, %v3489
        %3491 = vmatprep.mubr.f32.mxu0 0.0
        %3492 = vmatmul.mubr.f32.gmra.mrb[0].mxu0 %v3413
        %v3493 = vpop.f32.mrb[0].mxu0
        %v3494 = vadd.f32 0.0, %v3493
        %v3495 = vpop.f32.mrb[0].mxu0
        %v3496 = vadd.f32 0.0, %v3495
        %3497 = vmatprep.mubr.f32.mxu0 0.0
        %3498 = vmatmul.mubr.f32.gmra.mrb[0].mxu0 %v3416
        %v3499 = vpop.f32.mrb[0].mxu0
        %v3500 = vadd.f32 0.0, %v3499
        %v3501 = vpop.f32.mrb[0].mxu0
        %v3502 = vadd.f32 0.0, %v3501
        %3503 = vmatprep.mubr.f32.mxu0 0.0
        %3504 = vmatmul.mubr.f32.gmra.mrb[0].mxu0 %v3419
        %v3505 = vpop.f32.mrb[0].mxu0
        %v3506 = vadd.f32 0.0, %v3505
        %v3507 = vpop.f32.mrb[0].mxu0
        %v3508 = vadd.f32 0.0, %v3507
        %3509 = vdwg.mxu0
        %3510 = vmatprep.subr.mxu0 %v1266
        %3511 = vmatpush1.msra.mxu0 %v1162
        %3512 = vmatprep.subr.mxu0 %v1682
        %3513 = vmatpush1.msra.mxu0 %v1578
        %3514 = vmatprep.subr.mxu0 %v2098
        %3515 = vmatpush1.msra.mxu0 %v1994
        %3516 = vmatprep.subr.mxu0 %v2514
        %3517 = vmatpush1.msra.mxu0 %v2410
        %3518 = vmatprep.subr.mxu0 %v2930
        %3519 = vmatpush1.msra.mxu0 %v2826
        %3520 = vmatprep.subr.mxu0 0.0
        %3521 = vmatpush1.msra.mxu0 0.0
        %3522 = vmatprep.subr.mxu0 0.0
        %3523 = vmatpush1.msra.mxu0 0.0
        %3524 = vmatprep.subr.mxu0 0.0
        %3525 = vmatpush1.msra.mxu0 0.0
        %3526 = vmatprep.subr.mxu0 0.0
        %3527 = vmatpush1.msra.mxu0 0.0
        %3528 = vmatprep.subr.mxu0 0.0
        %3529 = vmatpush1.msra.mxu0 0.0
        %3530 = vmatprep.subr.mxu0 0.0
        %3531 = vmatpush1.msra.mxu0 0.0
        %3532 = vmatprep.subr.mxu0 0.0
        %3533 = vmatpush1.msra.mxu0 0.0
        %3534 = vmatprep.subr.mxu0 0.0
        %3535 = vmatpush1.msra.mxu0 0.0
        %3536 = vmatprep.subr.mxu0 0.0
        %3537 = vmatpush1.msra.mxu0 0.0
        %3538 = vmatprep.subr.mxu0 0.0
        %3539 = vmatpush1.msra.mxu0 0.0
        %3540 = vmatprep.subr.mxu0 0.0
        %3541 = vmatpush1.msra.mxu0 0.0
        %3542 = vmatprep.subr.mxu0 0.0
        %3543 = vmatpush1.msra.mxu0 0.0
        %3544 = vmatprep.subr.mxu0 0.0
        %3545 = vmatpush1.msra.mxu0 0.0
        %3546 = vmatprep.subr.mxu0 0.0
        %3547 = vmatpush1.msra.mxu0 0.0
        %3548 = vmatprep.subr.mxu0 0.0
        %3549 = vmatpush1.msra.mxu0 0.0
        %3550 = vmatprep.subr.mxu0 0.0
        %3551 = vmatpush1.msra.mxu0 0.0
        %3552 = vmatprep.subr.mxu0 0.0
        %3553 = vmatpush1.msra.mxu0 0.0
        %3554 = vmatprep.subr.mxu0 0.0
        %3555 = vmatpush1.msra.mxu0 0.0
        %3556 = vmatprep.subr.mxu0 0.0
        %3557 = vmatpush1.msra.mxu0 0.0
        %3558 = vmatprep.subr.mxu0 0.0
        %3559 = vmatpush1.msra.mxu0 0.0
        %3560 = vmatprep.subr.mxu0 0.0
        %3561 = vmatpush1.msra.mxu0 0.0
        %3562 = vmatprep.subr.mxu0 0.0
        %3563 = vmatpush1.msra.mxu0 0.0
        %3564 = vmatprep.subr.mxu0 0.0
        %3565 = vmatpush1.msra.mxu0 0.0
        %3566 = vmatprep.subr.mxu0 0.0
        %3567 = vmatpush1.msra.mxu0 0.0
        %3568 = vmatprep.subr.mxu0 0.0
        %3569 = vmatpush1.msra.mxu0 0.0
        %3570 = vmatprep.subr.mxu0 0.0
        %3571 = vmatpush1.msra.mxu0 0.0
        %3572 = vmatprep.subr.mxu0 0.0
        %3573 = vmatpush1.msra.mxu0 0.0
        %3574 = vmatprep.mubr.f32.mxu0 0.0
        %3575 = vmatmul.mubr.f32.gmra.mrb[0].mxu0 %v3410
        %v3576 = vpop.f32.mrb[0].mxu0
        %v3577 = vadd.f32 0.0, %v3576
        %v3578 = vpop.f32.mrb[0].mxu0
        %v3579 = vadd.f32 0.0, %v3578
        %3580 = vmatprep.mubr.f32.mxu0 0.0
        %3581 = vmatmul.mubr.f32.gmra.mrb[0].mxu0 %v3413
        %v3582 = vpop.f32.mrb[0].mxu0
        %v3583 = vadd.f32 0.0, %v3582
        %v3584 = vpop.f32.mrb[0].mxu0
        %v3585 = vadd.f32 0.0, %v3584
        %3586 = vmatprep.mubr.f32.mxu0 0.0
        %3587 = vmatmul.mubr.f32.gmra.mrb[0].mxu0 %v3416
        %v3588 = vpop.f32.mrb[0].mxu0
        %v3589 = vadd.f32 0.0, %v3588
        %v3590 = vpop.f32.mrb[0].mxu0
        %v3591 = vadd.f32 0.0, %v3590
        %3592 = vmatprep.mubr.f32.mxu0 0.0
        %3593 = vmatmul.mubr.f32.gmra.mrb[0].mxu0 %v3419
        %v3594 = vpop.f32.mrb[0].mxu0
        %v3595 = vadd.f32 0.0, %v3594
        %v3596 = vpop.f32.mrb[0].mxu0
        %v3597 = vadd.f32 0.0, %v3596
        %3598 = vdwg.mxu0
        %v3600 = vsel %vm3194, %v3401, 0
        %v3603 = vsel %vm3194, %v3402, 0
        %v3606 = vsel %vm3194, %v3403, 0
        %v3609 = vsel %vm3194, %v3404, 0
        %3611 = vmatprep.subr.mxu0 %v3386
        %3612 = vmatpush1.msra.mxu0 %v3385
        %3613 = vmatprep.subr.mxu0 %v3390
        %3614 = vmatpush1.msra.mxu0 %v3389
        %3615 = vmatprep.subr.mxu0 %v3394
        %3616 = vmatpush1.msra.mxu0 %v3393
        %3617 = vmatprep.subr.mxu0 %v3398
        %3618 = vmatpush1.msra.mxu0 %v3397
        %3619 = vmatprep.subr.mxu0 0.0
        %3620 = vmatpush1.msra.mxu0 0.0
        %3621 = vmatprep.subr.mxu0 0.0
        %3622 = vmatpush1.msra.mxu0 0.0
        %3623 = vmatprep.subr.mxu0 0.0
        %3624 = vmatpush1.msra.mxu0 0.0
        %3625 = vmatprep.subr.mxu0 0.0
        %3626 = vmatpush1.msra.mxu0 0.0
        %3627 = vmatprep.subr.mxu0 0.0
        %3628 = vmatpush1.msra.mxu0 0.0
        %3629 = vmatprep.subr.mxu0 0.0
        %3630 = vmatpush1.msra.mxu0 0.0
        %3631 = vmatprep.subr.mxu0 0.0
        %3632 = vmatpush1.msra.mxu0 0.0
        %3633 = vmatprep.subr.mxu0 0.0
        %3634 = vmatpush1.msra.mxu0 0.0
        %3635 = vmatprep.subr.mxu0 0.0
        %3636 = vmatpush1.msra.mxu0 0.0
        %3637 = vmatprep.subr.mxu0 0.0
        %3638 = vmatpush1.msra.mxu0 0.0
        %3639 = vmatprep.subr.mxu0 0.0
        %3640 = vmatpush1.msra.mxu0 0.0
        %3641 = vmatprep.subr.mxu0 0.0
        %3642 = vmatpush1.msra.mxu0 0.0
        %3643 = vmatprep.subr.mxu0 0.0
        %3644 = vmatpush1.msra.mxu0 0.0
        %3645 = vmatprep.subr.mxu0 0.0
        %3646 = vmatpush1.msra.mxu0 0.0
        %3647 = vmatprep.subr.mxu0 0.0
        %3648 = vmatpush1.msra.mxu0 0.0
        %3649 = vmatprep.subr.mxu0 0.0
        %3650 = vmatpush1.msra.mxu0 0.0
        %3651 = vmatprep.subr.mxu0 0.0
        %3652 = vmatpush1.msra.mxu0 0.0
        %3653 = vmatprep.subr.mxu0 0.0
        %3654 = vmatpush1.msra.mxu0 0.0
        %3655 = vmatprep.subr.mxu0 0.0
        %3656 = vmatpush1.msra.mxu0 0.0
        %3657 = vmatprep.subr.mxu0 0.0
        %3658 = vmatpush1.msra.mxu0 0.0
        %3659 = vmatprep.subr.mxu0 0.0
        %3660 = vmatpush1.msra.mxu0 0.0
        %3661 = vmatprep.subr.mxu0 0.0
        %3662 = vmatpush1.msra.mxu0 0.0
        %3663 = vmatprep.subr.mxu0 0.0
        %3664 = vmatpush1.msra.mxu0 0.0
        %3665 = vmatprep.subr.mxu0 0.0
        %3666 = vmatpush1.msra.mxu0 0.0
        %3667 = vmatprep.subr.mxu0 0.0
        %3668 = vmatpush1.msra.mxu0 0.0
        %3669 = vmatprep.subr.mxu0 0.0
        %3670 = vmatpush1.msra.mxu0 0.0
        %3671 = vmatprep.subr.mxu0 0.0
        %3672 = vmatpush1.msra.mxu0 0.0
        %3673 = vmatprep.subr.mxu0 0.0
        %3674 = vmatpush1.msra.mxu0 0.0
        %3675 = vmatprep.mubr.f32.mxu0 0.0
        %3676 = vmatmul.mubr.f32.gmra.mrb[0].mxu0 %v3600
        %v3677 = vpop.f32.mrb[0].mxu0
        %v3678 = vadd.f32 %v3488, %v3677
        %v3679 = vpop.f32.mrb[0].mxu0
        %v3680 = vadd.f32 %v3490, %v3679
        %3681 = vmatprep.mubr.f32.mxu0 0.0
        %3682 = vmatmul.mubr.f32.gmra.mrb[0].mxu0 %v3603
        %v3683 = vpop.f32.mrb[0].mxu0
        %v3684 = vadd.f32 %v3494, %v3683
        %v3685 = vpop.f32.mrb[0].mxu0
        %v3686 = vadd.f32 %v3496, %v3685
        %3687 = vmatprep.mubr.f32.mxu0 0.0
        %3688 = vmatmul.mubr.f32.gmra.mrb[0].mxu0 %v3606
        %v3689 = vpop.f32.mrb[0].mxu0
        %v3690 = vadd.f32 %v3500, %v3689
        %v3691 = vpop.f32.mrb[0].mxu0
        %v3692 = vadd.f32 %v3502, %v3691
        %3693 = vmatprep.mubr.f32.mxu0 0.0
        %3694 = vmatmul.mubr.f32.gmra.mrb[0].mxu0 %v3609
        %v3695 = vpop.f32.mrb[0].mxu0
        %v3696 = vadd.f32 %v3506, %v3695
        %v3697 = vpop.f32.mrb[0].mxu0
        %v3698 = vadd.f32 %v3508, %v3697
        %3699 = vdwg.mxu0
        %3700 = vmatprep.subr.mxu0 %v3388
        %3701 = vmatpush1.msra.mxu0 %v3387
        %3702 = vmatprep.subr.mxu0 %v3392
        %3703 = vmatpush1.msra.mxu0 %v3391
        %3704 = vmatprep.subr.mxu0 %v3396
        %3705 = vmatpush1.msra.mxu0 %v3395
        %3706 = vmatprep.subr.mxu0 %v3400
        %3707 = vmatpush1.msra.mxu0 %v3399
        %3708 = vmatprep.subr.mxu0 0.0
        %3709 = vmatpush1.msra.mxu0 0.0
        %3710 = vmatprep.subr.mxu0 0.0
        %3711 = vmatpush1.msra.mxu0 0.0
        %3712 = vmatprep.subr.mxu0 0.0
        %3713 = vmatpush1.msra.mxu0 0.0
        %3714 = vmatprep.subr.mxu0 0.0
        %3715 = vmatpush1.msra.mxu0 0.0
        %3716 = vmatprep.subr.mxu0 0.0
        %3717 = vmatpush1.msra.mxu0 0.0
        %3718 = vmatprep.subr.mxu0 0.0
        %3719 = vmatpush1.msra.mxu0 0.0
        %3720 = vmatprep.subr.mxu0 0.0
        %3721 = vmatpush1.msra.mxu0 0.0
        %3722 = vmatprep.subr.mxu0 0.0
        %3723 = vmatpush1.msra.mxu0 0.0
        %3724 = vmatprep.subr.mxu0 0.0
        %3725 = vmatpush1.msra.mxu0 0.0
        %3726 = vmatprep.subr.mxu0 0.0
        %3727 = vmatpush1.msra.mxu0 0.0
        %3728 = vmatprep.subr.mxu0 0.0
        %3729 = vmatpush1.msra.mxu0 0.0
        %3730 = vmatprep.subr.mxu0 0.0
        %3731 = vmatpush1.msra.mxu0 0.0
        %3732 = vmatprep.subr.mxu0 0.0
        %3733 = vmatpush1.msra.mxu0 0.0
        %3734 = vmatprep.subr.mxu0 0.0
        %3735 = vmatpush1.msra.mxu0 0.0
        %3736 = vmatprep.subr.mxu0 0.0
        %3737 = vmatpush1.msra.mxu0 0.0
        %3738 = vmatprep.subr.mxu0 0.0
        %3739 = vmatpush1.msra.mxu0 0.0
        %3740 = vmatprep.subr.mxu0 0.0
        %3741 = vmatpush1.msra.mxu0 0.0
        %3742 = vmatprep.subr.mxu0 0.0
        %3743 = vmatpush1.msra.mxu0 0.0
        %3744 = vmatprep.subr.mxu0 0.0
        %3745 = vmatpush1.msra.mxu0 0.0
        %3746 = vmatprep.subr.mxu0 0.0
        %3747 = vmatpush1.msra.mxu0 0.0
        %3748 = vmatprep.subr.mxu0 0.0
        %3749 = vmatpush1.msra.mxu0 0.0
        %3750 = vmatprep.subr.mxu0 0.0
        %3751 = vmatpush1.msra.mxu0 0.0
        %3752 = vmatprep.subr.mxu0 0.0
        %3753 = vmatpush1.msra.mxu0 0.0
        %3754 = vmatprep.subr.mxu0 0.0
        %3755 = vmatpush1.msra.mxu0 0.0
        %3756 = vmatprep.subr.mxu0 0.0
        %3757 = vmatpush1.msra.mxu0 0.0
        %3758 = vmatprep.subr.mxu0 0.0
        %3759 = vmatpush1.msra.mxu0 0.0
        %3760 = vmatprep.subr.mxu0 0.0
        %3761 = vmatpush1.msra.mxu0 0.0
        %3762 = vmatprep.subr.mxu0 0.0
        %3763 = vmatpush1.msra.mxu0 0.0
        %3764 = vmatprep.mubr.f32.mxu0 0.0
        %3765 = vmatmul.mubr.f32.gmra.mrb[0].mxu0 %v3600
        %v3766 = vpop.f32.mrb[0].mxu0
        %v3767 = vadd.f32 %v3577, %v3766
        %v3768 = vpop.f32.mrb[0].mxu0
        %v3769 = vadd.f32 %v3579, %v3768
        %3770 = vmatprep.mubr.f32.mxu0 0.0
        %3771 = vmatmul.mubr.f32.gmra.mrb[0].mxu0 %v3603
        %v3772 = vpop.f32.mrb[0].mxu0
        %v3773 = vadd.f32 %v3583, %v3772
        %v3774 = vpop.f32.mrb[0].mxu0
        %v3775 = vadd.f32 %v3585, %v3774
        %3776 = vmatprep.mubr.f32.mxu0 0.0
        %3777 = vmatmul.mubr.f32.gmra.mrb[0].mxu0 %v3606
        %v3778 = vpop.f32.mrb[0].mxu0
        %v3779 = vadd.f32 %v3589, %v3778
        %v3780 = vpop.f32.mrb[0].mxu0
        %v3781 = vadd.f32 %v3591, %v3780
        %3782 = vmatprep.mubr.f32.mxu0 0.0
        %3783 = vmatmul.mubr.f32.gmra.mrb[0].mxu0 %v3609
        %v3784 = vpop.f32.mrb[0].mxu0
        %v3785 = vadd.f32 %v3595, %v3784
        %v3786 = vpop.f32.mrb[0].mxu0
        %v3787 = vadd.f32 %v3597, %v3786
        %3788 = vdwg.mxu0
        %v3789 = vld [vmem:[%s9] sm:$0xff]
        %v3790 = vld [vmem:[%s9 + $0x8] sm:$0xff]
        %v3791 = vld [vmem:[%s9 + $0x10] sm:$0xff]
        %v3792 = vld [vmem:[%s9 + $0x18] sm:$0xff]
        %3794 = vset.pattern.permute.xlu0 0
        %3795 = vperm.xlu0 %3794, %v3789
        %v3796 = vpop.permute.xlu0 %3795
        %3799 = vset.pattern.permute.xlu0 0
        %3800 = vperm.xlu0 %3799, %v3790
        %v3801 = vpop.permute.xlu0 %3800
        %3804 = vset.pattern.permute.xlu0 0
        %3805 = vperm.xlu0 %3804, %v3791
        %v3806 = vpop.permute.xlu0 %3805
        %3809 = vset.pattern.permute.xlu0 0
        %3810 = vperm.xlu0 %3809, %v3792
        %v3811 = vpop.permute.xlu0 %3810
        %v3813 = vadd.f32 %v3678, %v3796
        %v3814 = vadd.f32 %v3680, %v3796
        %v3815 = vadd.f32 %v3767, %v3796
        %v3816 = vadd.f32 %v3769, %v3796
        %v3817 = vadd.f32 %v3684, %v3801
        %v3818 = vadd.f32 %v3686, %v3801
        %v3819 = vadd.f32 %v3773, %v3801
        %v3820 = vadd.f32 %v3775, %v3801
        %v3821 = vadd.f32 %v3690, %v3806
        %v3822 = vadd.f32 %v3692, %v3806
        %v3823 = vadd.f32 %v3779, %v3806
        %v3824 = vadd.f32 %v3781, %v3806
        %v3825 = vadd.f32 %v3696, %v3811
        %v3826 = vadd.f32 %v3698, %v3811
        %v3827 = vadd.f32 %v3785, %v3811
        %v3828 = vadd.f32 %v3787, %v3811
        %v3829 = vmax.f32 %v3813, 0.0
        %v3830 = vmax.f32 %v3814, 0.0
        %v3831 = vmax.f32 %v3815, 0.0
        %v3832 = vmax.f32 %v3816, 0.0
        %v3833 = vmax.f32 %v3817, 0.0
        %v3834 = vmax.f32 %v3818, 0.0
        %v3835 = vmax.f32 %v3819, 0.0
        %v3836 = vmax.f32 %v3820, 0.0
        %v3837 = vmax.f32 %v3821, 0.0
        %v3838 = vmax.f32 %v3822, 0.0
        %v3839 = vmax.f32 %v3823, 0.0
        %v3840 = vmax.f32 %v3824, 0.0
        %v3841 = vmax.f32 %v3825, 0.0
        %v3842 = vmax.f32 %v3826, 0.0
        %v3843 = vmax.f32 %v3827, 0.0
        %v3844 = vmax.f32 %v3828, 0.0
        %v3845 = vld [vmem:[%s10] sm:$0xff]
        %v3846 = vld [vmem:[%s10 + $0x8] sm:$0xff]
        %v3847 = vld [vmem:[%s10 + $0x10] sm:$0xff]
        %v3848 = vld [vmem:[%s10 + $0x18] sm:$0xff]
        %v3849 = vld [vmem:[%s11] sm:$0xff]
        %v3850 = vld [vmem:[%s11 + $0x8] sm:$0xff]
        %v3851 = vld [vmem:[%s11 + $0x10] sm:$0xff]
        %v3852 = vld [vmem:[%s11 + $0x18] sm:$0xff]
        %3854 = vset.pattern.permute.xlu0 0
        %3855 = vperm.xlu0 %3854, %v3849
        %v3856 = vpop.permute.xlu0 %3855
        %3859 = vset.pattern.permute.xlu0 0
        %3860 = vperm.xlu0 %3859, %v3850
        %v3861 = vpop.permute.xlu0 %3860
        %3864 = vset.pattern.permute.xlu0 0
        %3865 = vperm.xlu0 %3864, %v3851
        %v3866 = vpop.permute.xlu0 %3865
        %3869 = vset.pattern.permute.xlu0 0
        %3870 = vperm.xlu0 %3869, %v3852
        %v3871 = vpop.permute.xlu0 %3870
        %v3874 = vsel %vm3194, %v3845, 0
        %v3877 = vsel %vm3194, %v3846, 0
        %v3880 = vsel %vm3194, %v3847, 0
        %v3883 = vsel %vm3194, %v3848, 0
        %3885 = vmatprep.subr.mxu0 %v3830
        %3886 = vmatpush1.msra.mxu0 %v3829
        %3887 = vmatprep.subr.mxu0 %v3834
        %3888 = vmatpush1.msra.mxu0 %v3833
        %3889 = vmatprep.subr.mxu0 %v3838
        %3890 = vmatpush1.msra.mxu0 %v3837
        %3891 = vmatprep.subr.mxu0 %v3842
        %3892 = vmatpush1.msra.mxu0 %v3841
        %3893 = vmatprep.subr.mxu0 0.0
        %3894 = vmatpush1.msra.mxu0 0.0
        %3895 = vmatprep.subr.mxu0 0.0
        %3896 = vmatpush1.msra.mxu0 0.0
        %3897 = vmatprep.subr.mxu0 0.0
        %3898 = vmatpush1.msra.mxu0 0.0
        %3899 = vmatprep.subr.mxu0 0.0
        %3900 = vmatpush1.msra.mxu0 0.0
        %3901 = vmatprep.subr.mxu0 0.0
        %3902 = vmatpush1.msra.mxu0 0.0
        %3903 = vmatprep.subr.mxu0 0.0
        %3904 = vmatpush1.msra.mxu0 0.0
        %3905 = vmatprep.subr.mxu0 0.0
        %3906 = vmatpush1.msra.mxu0 0.0
        %3907 = vmatprep.subr.mxu0 0.0
        %3908 = vmatpush1.msra.mxu0 0.0
        %3909 = vmatprep.subr.mxu0 0.0
        %3910 = vmatpush1.msra.mxu0 0.0
        %3911 = vmatprep.subr.mxu0 0.0
        %3912 = vmatpush1.msra.mxu0 0.0
        %3913 = vmatprep.subr.mxu0 0.0
        %3914 = vmatpush1.msra.mxu0 0.0
        %3915 = vmatprep.subr.mxu0 0.0
        %3916 = vmatpush1.msra.mxu0 0.0
        %3917 = vmatprep.subr.mxu0 0.0
        %3918 = vmatpush1.msra.mxu0 0.0
        %3919 = vmatprep.subr.mxu0 0.0
        %3920 = vmatpush1.msra.mxu0 0.0
        %3921 = vmatprep.subr.mxu0 0.0
        %3922 = vmatpush1.msra.mxu0 0.0
        %3923 = vmatprep.subr.mxu0 0.0
        %3924 = vmatpush1.msra.mxu0 0.0
        %3925 = vmatprep.subr.mxu0 0.0
        %3926 = vmatpush1.msra.mxu0 0.0
        %3927 = vmatprep.subr.mxu0 0.0
        %3928 = vmatpush1.msra.mxu0 0.0
        %3929 = vmatprep.subr.mxu0 0.0
        %3930 = vmatpush1.msra.mxu0 0.0
        %3931 = vmatprep.subr.mxu0 0.0
        %3932 = vmatpush1.msra.mxu0 0.0
        %3933 = vmatprep.subr.mxu0 0.0
        %3934 = vmatpush1.msra.mxu0 0.0
        %3935 = vmatprep.subr.mxu0 0.0
        %3936 = vmatpush1.msra.mxu0 0.0
        %3937 = vmatprep.subr.mxu0 0.0
        %3938 = vmatpush1.msra.mxu0 0.0
        %3939 = vmatprep.subr.mxu0 0.0
        %3940 = vmatpush1.msra.mxu0 0.0
        %3941 = vmatprep.subr.mxu0 0.0
        %3942 = vmatpush1.msra.mxu0 0.0
        %3943 = vmatprep.subr.mxu0 0.0
        %3944 = vmatpush1.msra.mxu0 0.0
        %3945 = vmatprep.subr.mxu0 0.0
        %3946 = vmatpush1.msra.mxu0 0.0
        %3947 = vmatprep.subr.mxu0 0.0
        %3948 = vmatpush1.msra.mxu0 0.0
        %3949 = vmatprep.mubr.f32.mxu0 0.0
        %3950 = vmatmul.mubr.f32.gmra.mrb[0].mxu0 %v3874
        %v3951 = vpop.f32.mrb[0].mxu0
        %v3952 = vadd.f32 %v3856, %v3951
        %v3953 = vpop.f32.mrb[0].mxu0
        %v3954 = vadd.f32 %v3856, %v3953
        %3955 = vmatprep.mubr.f32.mxu0 0.0
        %3956 = vmatmul.mubr.f32.gmra.mrb[0].mxu0 %v3877
        %v3957 = vpop.f32.mrb[0].mxu0
        %v3958 = vadd.f32 %v3861, %v3957
        %v3959 = vpop.f32.mrb[0].mxu0
        %v3960 = vadd.f32 %v3861, %v3959
        %3961 = vmatprep.mubr.f32.mxu0 0.0
        %3962 = vmatmul.mubr.f32.gmra.mrb[0].mxu0 %v3880
        %v3963 = vpop.f32.mrb[0].mxu0
        %v3964 = vadd.f32 %v3866, %v3963
        %v3965 = vpop.f32.mrb[0].mxu0
        %v3966 = vadd.f32 %v3866, %v3965
        %3967 = vmatprep.mubr.f32.mxu0 0.0
        %3968 = vmatmul.mubr.f32.gmra.mrb[0].mxu0 %v3883
        %v3969 = vpop.f32.mrb[0].mxu0
        %v3970 = vadd.f32 %v3871, %v3969
        %v3971 = vpop.f32.mrb[0].mxu0
        %v3972 = vadd.f32 %v3871, %v3971
        %3973 = vdwg.mxu0
        %3974 = vmatprep.subr.mxu0 %v3832
        %3975 = vmatpush1.msra.mxu0 %v3831
        %3976 = vmatprep.subr.mxu0 %v3836
        %3977 = vmatpush1.msra.mxu0 %v3835
        %3978 = vmatprep.subr.mxu0 %v3840
        %3979 = vmatpush1.msra.mxu0 %v3839
        %3980 = vmatprep.subr.mxu0 %v3844
        %3981 = vmatpush1.msra.mxu0 %v3843
        %3982 = vmatprep.subr.mxu0 0.0
        %3983 = vmatpush1.msra.mxu0 0.0
        %3984 = vmatprep.subr.mxu0 0.0
        %3985 = vmatpush1.msra.mxu0 0.0
        %3986 = vmatprep.subr.mxu0 0.0
        %3987 = vmatpush1.msra.mxu0 0.0
        %3988 = vmatprep.subr.mxu0 0.0
        %3989 = vmatpush1.msra.mxu0 0.0
        %3990 = vmatprep.subr.mxu0 0.0
        %3991 = vmatpush1.msra.mxu0 0.0
        %3992 = vmatprep.subr.mxu0 0.0
        %3993 = vmatpush1.msra.mxu0 0.0
        %3994 = vmatprep.subr.mxu0 0.0
        %3995 = vmatpush1.msra.mxu0 0.0
        %3996 = vmatprep.subr.mxu0 0.0
        %3997 = vmatpush1.msra.mxu0 0.0
        %3998 = vmatprep.subr.mxu0 0.0
        %3999 = vmatpush1.msra.mxu0 0.0
        %4000 = vmatprep.subr.mxu0 0.0
        %4001 = vmatpush1.msra.mxu0 0.0
        %4002 = vmatprep.subr.mxu0 0.0
        %4003 = vmatpush1.msra.mxu0 0.0
        %4004 = vmatprep.subr.mxu0 0.0
        %4005 = vmatpush1.msra.mxu0 0.0
        %4006 = vmatprep.subr.mxu0 0.0
        %4007 = vmatpush1.msra.mxu0 0.0
        %4008 = vmatprep.subr.mxu0 0.0
        %4009 = vmatpush1.msra.mxu0 0.0
        %4010 = vmatprep.subr.mxu0 0.0
        %4011 = vmatpush1.msra.mxu0 0.0
        %4012 = vmatprep.subr.mxu0 0.0
        %4013 = vmatpush1.msra.mxu0 0.0
        %4014 = vmatprep.subr.mxu0 0.0
        %4015 = vmatpush1.msra.mxu0 0.0
        %4016 = vmatprep.subr.mxu0 0.0
        %4017 = vmatpush1.msra.mxu0 0.0
        %4018 = vmatprep.subr.mxu0 0.0
        %4019 = vmatpush1.msra.mxu0 0.0
        %4020 = vmatprep.subr.mxu0 0.0
        %4021 = vmatpush1.msra.mxu0 0.0
        %4022 = vmatprep.subr.mxu0 0.0
        %4023 = vmatpush1.msra.mxu0 0.0
        %4024 = vmatprep.subr.mxu0 0.0
        %4025 = vmatpush1.msra.mxu0 0.0
        %4026 = vmatprep.subr.mxu0 0.0
        %4027 = vmatpush1.msra.mxu0 0.0
        %4028 = vmatprep.subr.mxu0 0.0
        %4029 = vmatpush1.msra.mxu0 0.0
        %4030 = vmatprep.subr.mxu0 0.0
        %4031 = vmatpush1.msra.mxu0 0.0
        %4032 = vmatprep.subr.mxu0 0.0
        %4033 = vmatpush1.msra.mxu0 0.0
        %4034 = vmatprep.subr.mxu0 0.0
        %4035 = vmatpush1.msra.mxu0 0.0
        %4036 = vmatprep.subr.mxu0 0.0
        %4037 = vmatpush1.msra.mxu0 0.0
        %4038 = vmatprep.mubr.f32.mxu0 0.0
        %4039 = vmatmul.mubr.f32.gmra.mrb[0].mxu0 %v3874
        %v4040 = vpop.f32.mrb[0].mxu0
        %v4041 = vadd.f32 %v3856, %v4040
        %v4042 = vpop.f32.mrb[0].mxu0
        %v4043 = vadd.f32 %v3856, %v4042
        %4044 = vmatprep.mubr.f32.mxu0 0.0
        %4045 = vmatmul.mubr.f32.gmra.mrb[0].mxu0 %v3877
        %v4046 = vpop.f32.mrb[0].mxu0
        %v4047 = vadd.f32 %v3861, %v4046
        %v4048 = vpop.f32.mrb[0].mxu0
        %v4049 = vadd.f32 %v3861, %v4048
        %4050 = vmatprep.mubr.f32.mxu0 0.0
        %4051 = vmatmul.mubr.f32.gmra.mrb[0].mxu0 %v3880
        %v4052 = vpop.f32.mrb[0].mxu0
        %v4053 = vadd.f32 %v3866, %v4052
        %v4054 = vpop.f32.mrb[0].mxu0
        %v4055 = vadd.f32 %v3866, %v4054
        %4056 = vmatprep.mubr.f32.mxu0 0.0
        %4057 = vmatmul.mubr.f32.gmra.mrb[0].mxu0 %v3883
        %v4058 = vpop.f32.mrb[0].mxu0
        %v4059 = vadd.f32 %v3871, %v4058
        %v4060 = vpop.f32.mrb[0].mxu0
        %v4061 = vadd.f32 %v3871, %v4060
        %4062 = vdwg.mxu0
        %v4063 = vmax.f32 %v3952, 0.0
        %v4064 = vmax.f32 %v3954, 0.0
        %v4065 = vmax.f32 %v4041, 0.0
        %v4066 = vmax.f32 %v4043, 0.0
        %v4067 = vmax.f32 %v3958, 0.0
        %v4068 = vmax.f32 %v3960, 0.0
        %v4069 = vmax.f32 %v4047, 0.0
        %v4070 = vmax.f32 %v4049, 0.0
        %v4071 = vmax.f32 %v3964, 0.0
        %v4072 = vmax.f32 %v3966, 0.0
        %v4073 = vmax.f32 %v4053, 0.0
        %v4074 = vmax.f32 %v4055, 0.0
        %v4075 = vmax.f32 %v3970, 0.0
        %v4076 = vmax.f32 %v3972, 0.0
        %v4077 = vmax.f32 %v4059, 0.0
        %v4078 = vmax.f32 %v4061, 0.0
        %v4079 = vld [vmem:[%s12] sm:$0xff]
        %v4080 = vld [vmem:[%s12 + $0x8] sm:$0xff]
        %v4081 = vld [vmem:[%s12 + $0x10] sm:$0xff]
        %v4082 = vld [vmem:[%s12 + $0x18] sm:$0xff]
        %v4083 = vld [vmem:[%s13] sm:$0xff]
        %v4084 = vld [vmem:[%s13 + $0x8] sm:$0xff]
        %v4085 = vld [vmem:[%s13 + $0x10] sm:$0xff]
        %v4086 = vld [vmem:[%s13 + $0x18] sm:$0xff]
        %v4088 = vsel %vm2959, %v4083, 0
        %v4091 = vsel %vm2959, %v4084, 0
        %v4094 = vsel %vm2959, %v4085, 0
        %v4097 = vsel %vm2959, %v4086, 0
        %4099 = vmatprep.subr.mxu0 %v1058
        %4100 = vmatpush1.msra.mxu0 %v954
        %4101 = vmatprep.subr.mxu0 %v1474
        %4102 = vmatpush1.msra.mxu0 %v1370
        %4103 = vmatprep.subr.mxu0 %v1890
        %4104 = vmatpush1.msra.mxu0 %v1786
        %4105 = vmatprep.subr.mxu0 %v2306
        %4106 = vmatpush1.msra.mxu0 %v2202
        %4107 = vmatprep.subr.mxu0 %v2722
        %4108 = vmatpush1.msra.mxu0 %v2618
        %4109 = vmatprep.subr.mxu0 0.0
        %4110 = vmatpush1.msra.mxu0 0.0
        %4111 = vmatprep.subr.mxu0 0.0
        %4112 = vmatpush1.msra.mxu0 0.0
        %4113 = vmatprep.subr.mxu0 0.0
        %4114 = vmatpush1.msra.mxu0 0.0
        %4115 = vmatprep.subr.mxu0 0.0
        %4116 = vmatpush1.msra.mxu0 0.0
        %4117 = vmatprep.subr.mxu0 0.0
        %4118 = vmatpush1.msra.mxu0 0.0
        %4119 = vmatprep.subr.mxu0 0.0
        %4120 = vmatpush1.msra.mxu0 0.0
        %4121 = vmatprep.subr.mxu0 0.0
        %4122 = vmatpush1.msra.mxu0 0.0
        %4123 = vmatprep.subr.mxu0 0.0
        %4124 = vmatpush1.msra.mxu0 0.0
        %4125 = vmatprep.subr.mxu0 0.0
        %4126 = vmatpush1.msra.mxu0 0.0
        %4127 = vmatprep.subr.mxu0 0.0
        %4128 = vmatpush1.msra.mxu0 0.0
        %4129 = vmatprep.subr.mxu0 0.0
        %4130 = vmatpush1.msra.mxu0 0.0
        %4131 = vmatprep.subr.mxu0 0.0
        %4132 = vmatpush1.msra.mxu0 0.0
        %4133 = vmatprep.subr.mxu0 0.0
        %4134 = vmatpush1.msra.mxu0 0.0
        %4135 = vmatprep.subr.mxu0 0.0
        %4136 = vmatpush1.msra.mxu0 0.0
        %4137 = vmatprep.subr.mxu0 0.0
        %4138 = vmatpush1.msra.mxu0 0.0
        %4139 = vmatprep.subr.mxu0 0.0
        %4140 = vmatpush1.msra.mxu0 0.0
        %4141 = vmatprep.subr.mxu0 0.0
        %4142 = vmatpush1.msra.mxu0 0.0
        %4143 = vmatprep.subr.mxu0 0.0
        %4144 = vmatpush1.msra.mxu0 0.0
        %4145 = vmatprep.subr.mxu0 0.0
        %4146 = vmatpush1.msra.mxu0 0.0
        %4147 = vmatprep.subr.mxu0 0.0
        %4148 = vmatpush1.msra.mxu0 0.0
        %4149 = vmatprep.subr.mxu0 0.0
        %4150 = vmatpush1.msra.mxu0 0.0
        %4151 = vmatprep.subr.mxu0 0.0
        %4152 = vmatpush1.msra.mxu0 0.0
        %4153 = vmatprep.subr.mxu0 0.0
        %4154 = vmatpush1.msra.mxu0 0.0
        %4155 = vmatprep.subr.mxu0 0.0
        %4156 = vmatpush1.msra.mxu0 0.0
        %4157 = vmatprep.subr.mxu0 0.0
        %4158 = vmatpush1.msra.mxu0 0.0
        %4159 = vmatprep.subr.mxu0 0.0
        %4160 = vmatpush1.msra.mxu0 0.0
        %4161 = vmatprep.subr.mxu0 0.0
        %4162 = vmatpush1.msra.mxu0 0.0
        %4163 = vmatprep.mubr.f32.mxu0 0.0
        %4164 = vmatmul.mubr.f32.gmra.mrb[0].mxu0 %v4088
        %v4165 = vpop.f32.mrb[0].mxu0
        %v4166 = vadd.f32 0.0, %v4165
        %v4167 = vpop.f32.mrb[0].mxu0
        %v4168 = vadd.f32 0.0, %v4167
        %4169 = vmatprep.mubr.f32.mxu0 0.0
        %4170 = vmatmul.mubr.f32.gmra.mrb[0].mxu0 %v4091
        %v4171 = vpop.f32.mrb[0].mxu0
        %v4172 = vadd.f32 0.0, %v4171
        %v4173 = vpop.f32.mrb[0].mxu0
        %v4174 = vadd.f32 0.0, %v4173
        %4175 = vmatprep.mubr.f32.mxu0 0.0
        %4176 = vmatmul.mubr.f32.gmra.mrb[0].mxu0 %v4094
        %v4177 = vpop.f32.mrb[0].mxu0
        %v4178 = vadd.f32 0.0, %v4177
        %v4179 = vpop.f32.mrb[0].mxu0
        %v4180 = vadd.f32 0.0, %v4179
        %4181 = vmatprep.mubr.f32.mxu0 0.0
        %4182 = vmatmul.mubr.f32.gmra.mrb[0].mxu0 %v4097
        %v4183 = vpop.f32.mrb[0].mxu0
        %v4184 = vadd.f32 0.0, %v4183
        %v4185 = vpop.f32.mrb[0].mxu0
        %v4186 = vadd.f32 0.0, %v4185
        %4187 = vdwg.mxu0
        %4188 = vmatprep.subr.mxu0 %v1266
        %4189 = vmatpush1.msra.mxu0 %v1162
        %4190 = vmatprep.subr.mxu0 %v1682
        %4191 = vmatpush1.msra.mxu0 %v1578
        %4192 = vmatprep.subr.mxu0 %v2098
        %4193 = vmatpush1.msra.mxu0 %v1994
        %4194 = vmatprep.subr.mxu0 %v2514
        %4195 = vmatpush1.msra.mxu0 %v2410
        %4196 = vmatprep.subr.mxu0 %v2930
        %4197 = vmatpush1.msra.mxu0 %v2826
        %4198 = vmatprep.subr.mxu0 0.0
        %4199 = vmatpush1.msra.mxu0 0.0
        %4200 = vmatprep.subr.mxu0 0.0
        %4201 = vmatpush1.msra.mxu0 0.0
        %4202 = vmatprep.subr.mxu0 0.0
        %4203 = vmatpush1.msra.mxu0 0.0
        %4204 = vmatprep.subr.mxu0 0.0
        %4205 = vmatpush1.msra.mxu0 0.0
        %4206 = vmatprep.subr.mxu0 0.0
        %4207 = vmatpush1.msra.mxu0 0.0
        %4208 = vmatprep.subr.mxu0 0.0
        %4209 = vmatpush1.msra.mxu0 0.0
        %4210 = vmatprep.subr.mxu0 0.0
        %4211 = vmatpush1.msra.mxu0 0.0
        %4212 = vmatprep.subr.mxu0 0.0
        %4213 = vmatpush1.msra.mxu0 0.0
        %4214 = vmatprep.subr.mxu0 0.0
        %4215 = vmatpush1.msra.mxu0 0.0
        %4216 = vmatprep.subr.mxu0 0.0
        %4217 = vmatpush1.msra.mxu0 0.0
        %4218 = vmatprep.subr.mxu0 0.0
        %4219 = vmatpush1.msra.mxu0 0.0
        %4220 = vmatprep.subr.mxu0 0.0
        %4221 = vmatpush1.msra.mxu0 0.0
        %4222 = vmatprep.subr.mxu0 0.0
        %4223 = vmatpush1.msra.mxu0 0.0
        %4224 = vmatprep.subr.mxu0 0.0
        %4225 = vmatpush1.msra.mxu0 0.0
        %4226 = vmatprep.subr.mxu0 0.0
        %4227 = vmatpush1.msra.mxu0 0.0
        %4228 = vmatprep.subr.mxu0 0.0
        %4229 = vmatpush1.msra.mxu0 0.0
        %4230 = vmatprep.subr.mxu0 0.0
        %4231 = vmatpush1.msra.mxu0 0.0
        %4232 = vmatprep.subr.mxu0 0.0
        %4233 = vmatpush1.msra.mxu0 0.0
        %4234 = vmatprep.subr.mxu0 0.0
        %4235 = vmatpush1.msra.mxu0 0.0
        %4236 = vmatprep.subr.mxu0 0.0
        %4237 = vmatpush1.msra.mxu0 0.0
        %4238 = vmatprep.subr.mxu0 0.0
        %4239 = vmatpush1.msra.mxu0 0.0
        %4240 = vmatprep.subr.mxu0 0.0
        %4241 = vmatpush1.msra.mxu0 0.0
        %4242 = vmatprep.subr.mxu0 0.0
        %4243 = vmatpush1.msra.mxu0 0.0
        %4244 = vmatprep.subr.mxu0 0.0
        %4245 = vmatpush1.msra.mxu0 0.0
        %4246 = vmatprep.subr.mxu0 0.0
        %4247 = vmatpush1.msra.mxu0 0.0
        %4248 = vmatprep.subr.mxu0 0.0
        %4249 = vmatpush1.msra.mxu0 0.0
        %4250 = vmatprep.subr.mxu0 0.0
        %4251 = vmatpush1.msra.mxu0 0.0
        %4252 = vmatprep.mubr.f32.mxu0 0.0
        %4253 = vmatmul.mubr.f32.gmra.mrb[0].mxu0 %v4088
        %v4254 = vpop.f32.mrb[0].mxu0
        %v4255 = vadd.f32 0.0, %v4254
        %v4256 = vpop.f32.mrb[0].mxu0
        %v4257 = vadd.f32 0.0, %v4256
        %4258 = vmatprep.mubr.f32.mxu0 0.0
        %4259 = vmatmul.mubr.f32.gmra.mrb[0].mxu0 %v4091
        %v4260 = vpop.f32.mrb[0].mxu0
        %v4261 = vadd.f32 0.0, %v4260
        %v4262 = vpop.f32.mrb[0].mxu0
        %v4263 = vadd.f32 0.0, %v4262
        %4264 = vmatprep.mubr.f32.mxu0 0.0
        %4265 = vmatmul.mubr.f32.gmra.mrb[0].mxu0 %v4094
        %v4266 = vpop.f32.mrb[0].mxu0
        %v4267 = vadd.f32 0.0, %v4266
        %v4268 = vpop.f32.mrb[0].mxu0
        %v4269 = vadd.f32 0.0, %v4268
        %4270 = vmatprep.mubr.f32.mxu0 0.0
        %4271 = vmatmul.mubr.f32.gmra.mrb[0].mxu0 %v4097
        %v4272 = vpop.f32.mrb[0].mxu0
        %v4273 = vadd.f32 0.0, %v4272
        %v4274 = vpop.f32.mrb[0].mxu0
        %v4275 = vadd.f32 0.0, %v4274
        %4276 = vdwg.mxu0
        %v4278 = vsel %vm3194, %v4079, 0
        %v4281 = vsel %vm3194, %v4080, 0
        %v4284 = vsel %vm3194, %v4081, 0
        %v4287 = vsel %vm3194, %v4082, 0
        %4289 = vmatprep.subr.mxu0 %v4064
        %4290 = vmatpush1.msra.mxu0 %v4063
        %4291 = vmatprep.subr.mxu0 %v4068
        %4292 = vmatpush1.msra.mxu0 %v4067
        %4293 = vmatprep.subr.mxu0 %v4072
        %4294 = vmatpush1.msra.mxu0 %v4071
        %4295 = vmatprep.subr.mxu0 %v4076
        %4296 = vmatpush1.msra.mxu0 %v4075
        %4297 = vmatprep.subr.mxu0 0.0
        %4298 = vmatpush1.msra.mxu0 0.0
        %4299 = vmatprep.subr.mxu0 0.0
        %4300 = vmatpush1.msra.mxu0 0.0
        %4301 = vmatprep.subr.mxu0 0.0
        %4302 = vmatpush1.msra.mxu0 0.0
        %4303 = vmatprep.subr.mxu0 0.0
        %4304 = vmatpush1.msra.mxu0 0.0
        %4305 = vmatprep.subr.mxu0 0.0
        %4306 = vmatpush1.msra.mxu0 0.0
        %4307 = vmatprep.subr.mxu0 0.0
        %4308 = vmatpush1.msra.mxu0 0.0
        %4309 = vmatprep.subr.mxu0 0.0
        %4310 = vmatpush1.msra.mxu0 0.0
        %4311 = vmatprep.subr.mxu0 0.0
        %4312 = vmatpush1.msra.mxu0 0.0
        %4313 = vmatprep.subr.mxu0 0.0
        %4314 = vmatpush1.msra.mxu0 0.0
        %4315 = vmatprep.subr.mxu0 0.0
        %4316 = vmatpush1.msra.mxu0 0.0
        %4317 = vmatprep.subr.mxu0 0.0
        %4318 = vmatpush1.msra.mxu0 0.0
        %4319 = vmatprep.subr.mxu0 0.0
        %4320 = vmatpush1.msra.mxu0 0.0
        %4321 = vmatprep.subr.mxu0 0.0
        %4322 = vmatpush1.msra.mxu0 0.0
        %4323 = vmatprep.subr.mxu0 0.0
        %4324 = vmatpush1.msra.mxu0 0.0
        %4325 = vmatprep.subr.mxu0 0.0
        %4326 = vmatpush1.msra.mxu0 0.0
        %4327 = vmatprep.subr.mxu0 0.0
        %4328 = vmatpush1.msra.mxu0 0.0
        %4329 = vmatprep.subr.mxu0 0.0
        %4330 = vmatpush1.msra.mxu0 0.0
        %4331 = vmatprep.subr.mxu0 0.0
        %4332 = vmatpush1.msra.mxu0 0.0
        %4333 = vmatprep.subr.mxu0 0.0
        %4334 = vmatpush1.msra.mxu0 0.0
        %4335 = vmatprep.subr.mxu0 0.0
        %4336 = vmatpush1.msra.mxu0 0.0
        %4337 = vmatprep.subr.mxu0 0.0
        %4338 = vmatpush1.msra.mxu0 0.0
        %4339 = vmatprep.subr.mxu0 0.0
        %4340 = vmatpush1.msra.mxu0 0.0
        %4341 = vmatprep.subr.mxu0 0.0
        %4342 = vmatpush1.msra.mxu0 0.0
        %4343 = vmatprep.subr.mxu0 0.0
        %4344 = vmatpush1.msra.mxu0 0.0
        %4345 = vmatprep.subr.mxu0 0.0
        %4346 = vmatpush1.msra.mxu0 0.0
        %4347 = vmatprep.subr.mxu0 0.0
        %4348 = vmatpush1.msra.mxu0 0.0
        %4349 = vmatprep.subr.mxu0 0.0
        %4350 = vmatpush1.msra.mxu0 0.0
        %4351 = vmatprep.subr.mxu0 0.0
        %4352 = vmatpush1.msra.mxu0 0.0
        %4353 = vmatprep.mubr.f32.mxu0 0.0
        %4354 = vmatmul.mubr.f32.gmra.mrb[0].mxu0 %v4278
        %v4355 = vpop.f32.mrb[0].mxu0
        %v4356 = vadd.f32 %v4166, %v4355
        %v4357 = vpop.f32.mrb[0].mxu0
        %v4358 = vadd.f32 %v4168, %v4357
        %4359 = vmatprep.mubr.f32.mxu0 0.0
        %4360 = vmatmul.mubr.f32.gmra.mrb[0].mxu0 %v4281
        %v4361 = vpop.f32.mrb[0].mxu0
        %v4362 = vadd.f32 %v4172, %v4361
        %v4363 = vpop.f32.mrb[0].mxu0
        %v4364 = vadd.f32 %v4174, %v4363
        %4365 = vmatprep.mubr.f32.mxu0 0.0
        %4366 = vmatmul.mubr.f32.gmra.mrb[0].mxu0 %v4284
        %v4367 = vpop.f32.mrb[0].mxu0
        %v4368 = vadd.f32 %v4178, %v4367
        %v4369 = vpop.f32.mrb[0].mxu0
        %v4370 = vadd.f32 %v4180, %v4369
        %4371 = vmatprep.mubr.f32.mxu0 0.0
        %4372 = vmatmul.mubr.f32.gmra.mrb[0].mxu0 %v4287
        %v4373 = vpop.f32.mrb[0].mxu0
        %v4374 = vadd.f32 %v4184, %v4373
        %v4375 = vpop.f32.mrb[0].mxu0
        %v4376 = vadd.f32 %v4186, %v4375
        %4377 = vdwg.mxu0
        %4378 = vmatprep.subr.mxu0 %v4066
        %4379 = vmatpush1.msra.mxu0 %v4065
        %4380 = vmatprep.subr.mxu0 %v4070
        %4381 = vmatpush1.msra.mxu0 %v4069
        %4382 = vmatprep.subr.mxu0 %v4074
        %4383 = vmatpush1.msra.mxu0 %v4073
        %4384 = vmatprep.subr.mxu0 %v4078
        %4385 = vmatpush1.msra.mxu0 %v4077
        %4386 = vmatprep.subr.mxu0 0.0
        %4387 = vmatpush1.msra.mxu0 0.0
        %4388 = vmatprep.subr.mxu0 0.0
        %4389 = vmatpush1.msra.mxu0 0.0
        %4390 = vmatprep.subr.mxu0 0.0
        %4391 = vmatpush1.msra.mxu0 0.0
        %4392 = vmatprep.subr.mxu0 0.0
        %4393 = vmatpush1.msra.mxu0 0.0
        %4394 = vmatprep.subr.mxu0 0.0
        %4395 = vmatpush1.msra.mxu0 0.0
        %4396 = vmatprep.subr.mxu0 0.0
        %4397 = vmatpush1.msra.mxu0 0.0
        %4398 = vmatprep.subr.mxu0 0.0
        %4399 = vmatpush1.msra.mxu0 0.0
        %4400 = vmatprep.subr.mxu0 0.0
        %4401 = vmatpush1.msra.mxu0 0.0
        %4402 = vmatprep.subr.mxu0 0.0
        %4403 = vmatpush1.msra.mxu0 0.0
        %4404 = vmatprep.subr.mxu0 0.0
        %4405 = vmatpush1.msra.mxu0 0.0
        %4406 = vmatprep.subr.mxu0 0.0
        %4407 = vmatpush1.msra.mxu0 0.0
        %4408 = vmatprep.subr.mxu0 0.0
        %4409 = vmatpush1.msra.mxu0 0.0
        %4410 = vmatprep.subr.mxu0 0.0
        %4411 = vmatpush1.msra.mxu0 0.0
        %4412 = vmatprep.subr.mxu0 0.0
        %4413 = vmatpush1.msra.mxu0 0.0
        %4414 = vmatprep.subr.mxu0 0.0
        %4415 = vmatpush1.msra.mxu0 0.0
        %4416 = vmatprep.subr.mxu0 0.0
        %4417 = vmatpush1.msra.mxu0 0.0
        %4418 = vmatprep.subr.mxu0 0.0
        %4419 = vmatpush1.msra.mxu0 0.0
        %4420 = vmatprep.subr.mxu0 0.0
        %4421 = vmatpush1.msra.mxu0 0.0
        %4422 = vmatprep.subr.mxu0 0.0
        %4423 = vmatpush1.msra.mxu0 0.0
        %4424 = vmatprep.subr.mxu0 0.0
        %4425 = vmatpush1.msra.mxu0 0.0
        %4426 = vmatprep.subr.mxu0 0.0
        %4427 = vmatpush1.msra.mxu0 0.0
        %4428 = vmatprep.subr.mxu0 0.0
        %4429 = vmatpush1.msra.mxu0 0.0
        %4430 = vmatprep.subr.mxu0 0.0
        %4431 = vmatpush1.msra.mxu0 0.0
        %4432 = vmatprep.subr.mxu0 0.0
        %4433 = vmatpush1.msra.mxu0 0.0
        %4434 = vmatprep.subr.mxu0 0.0
        %4435 = vmatpush1.msra.mxu0 0.0
        %4436 = vmatprep.subr.mxu0 0.0
        %4437 = vmatpush1.msra.mxu0 0.0
        %4438 = vmatprep.subr.mxu0 0.0
        %4439 = vmatpush1.msra.mxu0 0.0
        %4440 = vmatprep.subr.mxu0 0.0
        %4441 = vmatpush1.msra.mxu0 0.0
        %4442 = vmatprep.mubr.f32.mxu0 0.0
        %4443 = vmatmul.mubr.f32.gmra.mrb[0].mxu0 %v4278
        %v4444 = vpop.f32.mrb[0].mxu0
        %v4445 = vadd.f32 %v4255, %v4444
        %v4446 = vpop.f32.mrb[0].mxu0
        %v4447 = vadd.f32 %v4257, %v4446
        %4448 = vmatprep.mubr.f32.mxu0 0.0
        %4449 = vmatmul.mubr.f32.gmra.mrb[0].mxu0 %v4281
        %v4450 = vpop.f32.mrb[0].mxu0
        %v4451 = vadd.f32 %v4261, %v4450
        %v4452 = vpop.f32.mrb[0].mxu0
        %v4453 = vadd.f32 %v4263, %v4452
        %4454 = vmatprep.mubr.f32.mxu0 0.0
        %4455 = vmatmul.mubr.f32.gmra.mrb[0].mxu0 %v4284
        %v4456 = vpop.f32.mrb[0].mxu0
        %v4457 = vadd.f32 %v4267, %v4456
        %v4458 = vpop.f32.mrb[0].mxu0
        %v4459 = vadd.f32 %v4269, %v4458
        %4460 = vmatprep.mubr.f32.mxu0 0.0
        %4461 = vmatmul.mubr.f32.gmra.mrb[0].mxu0 %v4287
        %v4462 = vpop.f32.mrb[0].mxu0
        %v4463 = vadd.f32 %v4273, %v4462
        %v4464 = vpop.f32.mrb[0].mxu0
        %v4465 = vadd.f32 %v4275, %v4464
        %4466 = vdwg.mxu0
        %v4467 = vld [vmem:[%s14] sm:$0xff]
        %v4468 = vld [vmem:[%s14 + $0x8] sm:$0xff]
        %v4469 = vld [vmem:[%s14 + $0x10] sm:$0xff]
        %v4470 = vld [vmem:[%s14 + $0x18] sm:$0xff]
        %4472 = vset.pattern.permute.xlu0 0
        %4473 = vperm.xlu0 %4472, %v4467
        %v4474 = vpop.permute.xlu0 %4473
        %4477 = vset.pattern.permute.xlu0 0
        %4478 = vperm.xlu0 %4477, %v4468
        %v4479 = vpop.permute.xlu0 %4478
        %4482 = vset.pattern.permute.xlu0 0
        %4483 = vperm.xlu0 %4482, %v4469
        %v4484 = vpop.permute.xlu0 %4483
        %4487 = vset.pattern.permute.xlu0 0
        %4488 = vperm.xlu0 %4487, %v4470
        %v4489 = vpop.permute.xlu0 %4488
        %v4491 = vadd.f32 %v4356, %v4474
        %v4492 = vadd.f32 %v4358, %v4474
        %v4493 = vadd.f32 %v4445, %v4474
        %v4494 = vadd.f32 %v4447, %v4474
        %v4495 = vadd.f32 %v4362, %v4479
        %v4496 = vadd.f32 %v4364, %v4479
        %v4497 = vadd.f32 %v4451, %v4479
        %v4498 = vadd.f32 %v4453, %v4479
        %v4499 = vadd.f32 %v4368, %v4484
        %v4500 = vadd.f32 %v4370, %v4484
        %v4501 = vadd.f32 %v4457, %v4484
        %v4502 = vadd.f32 %v4459, %v4484
        %v4503 = vadd.f32 %v4374, %v4489
        %v4504 = vadd.f32 %v4376, %v4489
        %v4505 = vadd.f32 %v4463, %v4489
        %v4506 = vadd.f32 %v4465, %v4489
        %v4507 = vmax.f32 %v4491, 0.0
        %v4508 = vmax.f32 %v4492, 0.0
        %v4509 = vmax.f32 %v4493, 0.0
        %v4510 = vmax.f32 %v4494, 0.0
        %v4511 = vmax.f32 %v4495, 0.0
        %v4512 = vmax.f32 %v4496, 0.0
        %v4513 = vmax.f32 %v4497, 0.0
        %v4514 = vmax.f32 %v4498, 0.0
        %v4515 = vmax.f32 %v4499, 0.0
        %v4516 = vmax.f32 %v4500, 0.0
        %v4517 = vmax.f32 %v4501, 0.0
        %v4518 = vmax.f32 %v4502, 0.0
        %v4519 = vmax.f32 %v4503, 0.0
        %v4520 = vmax.f32 %v4504, 0.0
        %v4521 = vmax.f32 %v4505, 0.0
        %v4522 = vmax.f32 %v4506, 0.0
        %v4523 = vld [vmem:[%s15] sm:$0xff]
        %v4524 = vld [vmem:[%s15 + $0x8] sm:$0xff]
        %v4525 = vld [vmem:[%s16] sm:$0xff]
        %v4526 = vld [vmem:[%s16 + $0x8] sm:$0xff]
        %4528 = vset.pattern.permute.xlu0 0
        %4529 = vperm.xlu0 %4528, %v4525
        %v4530 = vpop.permute.xlu0 %4529
        %4533 = vset.pattern.permute.xlu0 0
        %4534 = vperm.xlu0 %4533, %v4526
        %v4535 = vpop.permute.xlu0 %4534
        %v4538 = vsel %vm3194, %v4523, 0
        %v4541 = vsel %vm3194, %v4524, 0
        %4543 = vmatprep.subr.mxu0 %v4508
        %4544 = vmatpush1.msra.mxu0 %v4507
        %4545 = vmatprep.subr.mxu0 %v4512
        %4546 = vmatpush1.msra.mxu0 %v4511
        %4547 = vmatprep.subr.mxu0 %v4516
        %4548 = vmatpush1.msra.mxu0 %v4515
        %4549 = vmatprep.subr.mxu0 %v4520
        %4550 = vmatpush1.msra.mxu0 %v4519
        %4551 = vmatprep.subr.mxu0 0.0
        %4552 = vmatpush1.msra.mxu0 0.0
        %4553 = vmatprep.subr.mxu0 0.0
        %4554 = vmatpush1.msra.mxu0 0.0
        %4555 = vmatprep.subr.mxu0 0.0
        %4556 = vmatpush1.msra.mxu0 0.0
        %4557 = vmatprep.subr.mxu0 0.0
        %4558 = vmatpush1.msra.mxu0 0.0
        %4559 = vmatprep.subr.mxu0 0.0
        %4560 = vmatpush1.msra.mxu0 0.0
        %4561 = vmatprep.subr.mxu0 0.0
        %4562 = vmatpush1.msra.mxu0 0.0
        %4563 = vmatprep.subr.mxu0 0.0
        %4564 = vmatpush1.msra.mxu0 0.0
        %4565 = vmatprep.subr.mxu0 0.0
        %4566 = vmatpush1.msra.mxu0 0.0
        %4567 = vmatprep.subr.mxu0 0.0
        %4568 = vmatpush1.msra.mxu0 0.0
        %4569 = vmatprep.subr.mxu0 0.0
        %4570 = vmatpush1.msra.mxu0 0.0
        %4571 = vmatprep.subr.mxu0 0.0
        %4572 = vmatpush1.msra.mxu0 0.0
        %4573 = vmatprep.subr.mxu0 0.0
        %4574 = vmatpush1.msra.mxu0 0.0
        %4575 = vmatprep.subr.mxu0 0.0
        %4576 = vmatpush1.msra.mxu0 0.0
        %4577 = vmatprep.subr.mxu0 0.0
        %4578 = vmatpush1.msra.mxu0 0.0
        %4579 = vmatprep.subr.mxu0 0.0
        %4580 = vmatpush1.msra.mxu0 0.0
        %4581 = vmatprep.subr.mxu0 0.0
        %4582 = vmatpush1.msra.mxu0 0.0
        %4583 = vmatprep.subr.mxu0 0.0
        %4584 = vmatpush1.msra.mxu0 0.0
        %4585 = vmatprep.subr.mxu0 0.0
        %4586 = vmatpush1.msra.mxu0 0.0
        %4587 = vmatprep.subr.mxu0 0.0
        %4588 = vmatpush1.msra.mxu0 0.0
        %4589 = vmatprep.subr.mxu0 0.0
        %4590 = vmatpush1.msra.mxu0 0.0
        %4591 = vmatprep.subr.mxu0 0.0
        %4592 = vmatpush1.msra.mxu0 0.0
        %4593 = vmatprep.subr.mxu0 0.0
        %4594 = vmatpush1.msra.mxu0 0.0
        %4595 = vmatprep.subr.mxu0 0.0
        %4596 = vmatpush1.msra.mxu0 0.0
        %4597 = vmatprep.subr.mxu0 0.0
        %4598 = vmatpush1.msra.mxu0 0.0
        %4599 = vmatprep.subr.mxu0 0.0
        %4600 = vmatpush1.msra.mxu0 0.0
        %4601 = vmatprep.subr.mxu0 0.0
        %4602 = vmatpush1.msra.mxu0 0.0
        %4603 = vmatprep.subr.mxu0 0.0
        %4604 = vmatpush1.msra.mxu0 0.0
        %4605 = vmatprep.subr.mxu0 0.0
        %4606 = vmatpush1.msra.mxu0 0.0
        %4607 = vmatprep.mubr.f32.mxu0 0.0
        %4608 = vmatmul.mubr.f32.gmra.mrb[0].mxu0 %v4538
        %v4609 = vpop.f32.mrb[0].mxu0
        %v4610 = vadd.f32 %v4530, %v4609
        %v4611 = vpop.f32.mrb[0].mxu0
        %v4612 = vadd.f32 %v4530, %v4611
        %4613 = vmatprep.mubr.f32.mxu0 0.0
        %4614 = vmatmul.mubr.f32.gmra.mrb[0].mxu0 %v4541
        %v4615 = vpop.f32.mrb[0].mxu0
        %v4616 = vadd.f32 %v4535, %v4615
        %v4617 = vpop.f32.mrb[0].mxu0
        %v4618 = vadd.f32 %v4535, %v4617
        %4619 = vdwg.mxu0
        %4620 = vmatprep.subr.mxu0 %v4510
        %4621 = vmatpush1.msra.mxu0 %v4509
        %4622 = vmatprep.subr.mxu0 %v4514
        %4623 = vmatpush1.msra.mxu0 %v4513
        %4624 = vmatprep.subr.mxu0 %v4518
        %4625 = vmatpush1.msra.mxu0 %v4517
        %4626 = vmatprep.subr.mxu0 %v4522
        %4627 = vmatpush1.msra.mxu0 %v4521
        %4628 = vmatprep.subr.mxu0 0.0
        %4629 = vmatpush1.msra.mxu0 0.0
        %4630 = vmatprep.subr.mxu0 0.0
        %4631 = vmatpush1.msra.mxu0 0.0
        %4632 = vmatprep.subr.mxu0 0.0
        %4633 = vmatpush1.msra.mxu0 0.0
        %4634 = vmatprep.subr.mxu0 0.0
        %4635 = vmatpush1.msra.mxu0 0.0
        %4636 = vmatprep.subr.mxu0 0.0
        %4637 = vmatpush1.msra.mxu0 0.0
        %4638 = vmatprep.subr.mxu0 0.0
        %4639 = vmatpush1.msra.mxu0 0.0
        %4640 = vmatprep.subr.mxu0 0.0
        %4641 = vmatpush1.msra.mxu0 0.0
        %4642 = vmatprep.subr.mxu0 0.0
        %4643 = vmatpush1.msra.mxu0 0.0
        %4644 = vmatprep.subr.mxu0 0.0
        %4645 = vmatpush1.msra.mxu0 0.0
        %4646 = vmatprep.subr.mxu0 0.0
        %4647 = vmatpush1.msra.mxu0 0.0
        %4648 = vmatprep.subr.mxu0 0.0
        %4649 = vmatpush1.msra.mxu0 0.0
        %4650 = vmatprep.subr.mxu0 0.0
        %4651 = vmatpush1.msra.mxu0 0.0
        %4652 = vmatprep.subr.mxu0 0.0
        %4653 = vmatpush1.msra.mxu0 0.0
        %4654 = vmatprep.subr.mxu0 0.0
        %4655 = vmatpush1.msra.mxu0 0.0
        %4656 = vmatprep.subr.mxu0 0.0
        %4657 = vmatpush1.msra.mxu0 0.0
        %4658 = vmatprep.subr.mxu0 0.0
        %4659 = vmatpush1.msra.mxu0 0.0
        %4660 = vmatprep.subr.mxu0 0.0
        %4661 = vmatpush1.msra.mxu0 0.0
        %4662 = vmatprep.subr.mxu0 0.0
        %4663 = vmatpush1.msra.mxu0 0.0
        %4664 = vmatprep.subr.mxu0 0.0
        %4665 = vmatpush1.msra.mxu0 0.0
        %4666 = vmatprep.subr.mxu0 0.0
        %4667 = vmatpush1.msra.mxu0 0.0
        %4668 = vmatprep.subr.mxu0 0.0
        %4669 = vmatpush1.msra.mxu0 0.0
        %4670 = vmatprep.subr.mxu0 0.0
        %4671 = vmatpush1.msra.mxu0 0.0
        %4672 = vmatprep.subr.mxu0 0.0
        %4673 = vmatpush1.msra.mxu0 0.0
        %4674 = vmatprep.subr.mxu0 0.0
        %4675 = vmatpush1.msra.mxu0 0.0
        %4676 = vmatprep.subr.mxu0 0.0
        %4677 = vmatpush1.msra.mxu0 0.0
        %4678 = vmatprep.subr.mxu0 0.0
        %4679 = vmatpush1.msra.mxu0 0.0
        %4680 = vmatprep.subr.mxu0 0.0
        %4681 = vmatpush1.msra.mxu0 0.0
        %4682 = vmatprep.subr.mxu0 0.0
        %4683 = vmatpush1.msra.mxu0 0.0
        %4684 = vmatprep.mubr.f32.mxu0 0.0
        %4685 = vmatmul.mubr.f32.gmra.mrb[0].mxu0 %v4538
        %v4686 = vpop.f32.mrb[0].mxu0
        %v4687 = vadd.f32 %v4530, %v4686
        %v4688 = vpop.f32.mrb[0].mxu0
        %v4689 = vadd.f32 %v4530, %v4688
        %4690 = vmatprep.mubr.f32.mxu0 0.0
        %4691 = vmatmul.mubr.f32.gmra.mrb[0].mxu0 %v4541
        %v4692 = vpop.f32.mrb[0].mxu0
        %v4693 = vadd.f32 %v4535, %v4692
        %v4694 = vpop.f32.mrb[0].mxu0
        %v4695 = vadd.f32 %v4535, %v4694
        %4696 = vdwg.mxu0
        %v4697 = vmax.f32 %v4610, 0.0
        %v4698 = vmax.f32 %v4612, 0.0
        %v4699 = vmax.f32 %v4687, 0.0
        %v4700 = vmax.f32 %v4689, 0.0
        %v4701 = vmax.f32 %v4616, 0.0
        %v4702 = vmax.f32 %v4618, 0.0
        %v4703 = vmax.f32 %v4693, 0.0
        %v4704 = vmax.f32 %v4695, 0.0
        %v4705 = vld [vmem:[%s17] sm:$0x1]
        %v4706 = vld [vmem:[#allocation2] sm:$0x1]
        %4708 = vset.pattern.permute.xlu0 0
        %4709 = vperm.xlu0 %4708, %v4706
        %v4710 = vpop.permute.xlu0 %4709
        %v4712 = vlaneseq
        %v4713 = vshrl.u32 %v4712, 7
        %v4714 = vsub.s32 0, %v4713
        %v4715 = vrot.slane %v4710, %v4714
        %vm4716 = vcmask 130048
        %v4718 = vsel %vm4716, %v4705, 0
        %4720 = vmatprep.subr.mxu0 %v4698
        %4721 = vmatpush1.msra.mxu0 %v4697
        %4722 = vmatprep.subr.mxu0 %v4702
        %4723 = vmatpush1.msra.mxu0 %v4701
        %4724 = vmatprep.subr.mxu0 0.0
        %4725 = vmatpush1.msra.mxu0 0.0
        %4726 = vmatprep.subr.mxu0 0.0
        %4727 = vmatpush1.msra.mxu0 0.0
        %4728 = vmatprep.subr.mxu0 0.0
        %4729 = vmatpush1.msra.mxu0 0.0
        %4730 = vmatprep.subr.mxu0 0.0
        %4731 = vmatpush1.msra.mxu0 0.0
        %4732 = vmatprep.subr.mxu0 0.0
        %4733 = vmatpush1.msra.mxu0 0.0
        %4734 = vmatprep.subr.mxu0 0.0
        %4735 = vmatpush1.msra.mxu0 0.0
        %4736 = vmatprep.subr.mxu0 0.0
        %4737 = vmatpush1.msra.mxu0 0.0
        %4738 = vmatprep.subr.mxu0 0.0
        %4739 = vmatpush1.msra.mxu0 0.0
        %4740 = vmatprep.subr.mxu0 0.0
        %4741 = vmatpush1.msra.mxu0 0.0
        %4742 = vmatprep.subr.mxu0 0.0
        %4743 = vmatpush1.msra.mxu0 0.0
        %4744 = vmatprep.subr.mxu0 0.0
        %4745 = vmatpush1.msra.mxu0 0.0
        %4746 = vmatprep.subr.mxu0 0.0
        %4747 = vmatpush1.msra.mxu0 0.0
        %4748 = vmatprep.subr.mxu0 0.0
        %4749 = vmatpush1.msra.mxu0 0.0
        %4750 = vmatprep.subr.mxu0 0.0
        %4751 = vmatpush1.msra.mxu0 0.0
        %4752 = vmatprep.subr.mxu0 0.0
        %4753 = vmatpush1.msra.mxu0 0.0
        %4754 = vmatprep.subr.mxu0 0.0
        %4755 = vmatpush1.msra.mxu0 0.0
        %4756 = vmatprep.subr.mxu0 0.0
        %4757 = vmatpush1.msra.mxu0 0.0
        %4758 = vmatprep.subr.mxu0 0.0
        %4759 = vmatpush1.msra.mxu0 0.0
        %4760 = vmatprep.subr.mxu0 0.0
        %4761 = vmatpush1.msra.mxu0 0.0
        %4762 = vmatprep.subr.mxu0 0.0
        %4763 = vmatpush1.msra.mxu0 0.0
        %4764 = vmatprep.subr.mxu0 0.0
        %4765 = vmatpush1.msra.mxu0 0.0
        %4766 = vmatprep.subr.mxu0 0.0
        %4767 = vmatpush1.msra.mxu0 0.0
        %4768 = vmatprep.subr.mxu0 0.0
        %4769 = vmatpush1.msra.mxu0 0.0
        %4770 = vmatprep.subr.mxu0 0.0
        %4771 = vmatpush1.msra.mxu0 0.0
        %4772 = vmatprep.subr.mxu0 0.0
        %4773 = vmatpush1.msra.mxu0 0.0
        %4774 = vmatprep.subr.mxu0 0.0
        %4775 = vmatpush1.msra.mxu0 0.0
        %4776 = vmatprep.subr.mxu0 0.0
        %4777 = vmatpush1.msra.mxu0 0.0
        %4778 = vmatprep.subr.mxu0 0.0
        %4779 = vmatpush1.msra.mxu0 0.0
        %4780 = vmatprep.subr.mxu0 0.0
        %4781 = vmatpush1.msra.mxu0 0.0
        %4782 = vmatprep.subr.mxu0 0.0
        %4783 = vmatpush1.msra.mxu0 0.0
        %4784 = vmatprep.mubr.f32.mxu0 0.0
        %4785 = vmatmul.mubr.f32.gmra.mrb[0].mxu0 %v4718
        %v4786 = vpop.f32.mrb[0].mxu0
        %v4787 = vadd.f32 %v4715, %v4786
        %v4788 = vpop.f32.mrb[0].mxu0
        %v4789 = vadd.f32 %v4715, %v4788
        %4790 = vdwg.mxu0
        %4791 = vmatprep.subr.mxu0 %v4700
        %4792 = vmatpush1.msra.mxu0 %v4699
        %4793 = vmatprep.subr.mxu0 %v4704
        %4794 = vmatpush1.msra.mxu0 %v4703
        %4795 = vmatprep.subr.mxu0 0.0
        %4796 = vmatpush1.msra.mxu0 0.0
        %4797 = vmatprep.subr.mxu0 0.0
        %4798 = vmatpush1.msra.mxu0 0.0
        %4799 = vmatprep.subr.mxu0 0.0
        %4800 = vmatpush1.msra.mxu0 0.0
        %4801 = vmatprep.subr.mxu0 0.0
        %4802 = vmatpush1.msra.mxu0 0.0
        %4803 = vmatprep.subr.mxu0 0.0
        %4804 = vmatpush1.msra.mxu0 0.0
        %4805 = vmatprep.subr.mxu0 0.0
        %4806 = vmatpush1.msra.mxu0 0.0
        %4807 = vmatprep.subr.mxu0 0.0
        %4808 = vmatpush1.msra.mxu0 0.0
        %4809 = vmatprep.subr.mxu0 0.0
        %4810 = vmatpush1.msra.mxu0 0.0
        %4811 = vmatprep.subr.mxu0 0.0
        %4812 = vmatpush1.msra.mxu0 0.0
        %4813 = vmatprep.subr.mxu0 0.0
        %4814 = vmatpush1.msra.mxu0 0.0
        %4815 = vmatprep.subr.mxu0 0.0
        %4816 = vmatpush1.msra.mxu0 0.0
        %4817 = vmatprep.subr.mxu0 0.0
        %4818 = vmatpush1.msra.mxu0 0.0
        %4819 = vmatprep.subr.mxu0 0.0
        %4820 = vmatpush1.msra.mxu0 0.0
        %4821 = vmatprep.subr.mxu0 0.0
        %4822 = vmatpush1.msra.mxu0 0.0
        %4823 = vmatprep.subr.mxu0 0.0
        %4824 = vmatpush1.msra.mxu0 0.0
        %4825 = vmatprep.subr.mxu0 0.0
        %4826 = vmatpush1.msra.mxu0 0.0
        %4827 = vmatprep.subr.mxu0 0.0
        %4828 = vmatpush1.msra.mxu0 0.0
        %4829 = vmatprep.subr.mxu0 0.0
        %4830 = vmatpush1.msra.mxu0 0.0
        %4831 = vmatprep.subr.mxu0 0.0
        %4832 = vmatpush1.msra.mxu0 0.0
        %4833 = vmatprep.subr.mxu0 0.0
        %4834 = vmatpush1.msra.mxu0 0.0
        %4835 = vmatprep.subr.mxu0 0.0
        %4836 = vmatpush1.msra.mxu0 0.0
        %4837 = vmatprep.subr.mxu0 0.0
        %4838 = vmatpush1.msra.mxu0 0.0
        %4839 = vmatprep.subr.mxu0 0.0
        %4840 = vmatpush1.msra.mxu0 0.0
        %4841 = vmatprep.subr.mxu0 0.0
        %4842 = vmatpush1.msra.mxu0 0.0
        %4843 = vmatprep.subr.mxu0 0.0
        %4844 = vmatpush1.msra.mxu0 0.0
        %4845 = vmatprep.subr.mxu0 0.0
        %4846 = vmatpush1.msra.mxu0 0.0
        %4847 = vmatprep.subr.mxu0 0.0
        %4848 = vmatpush1.msra.mxu0 0.0
        %4849 = vmatprep.subr.mxu0 0.0
        %4850 = vmatpush1.msra.mxu0 0.0
        %4851 = vmatprep.subr.mxu0 0.0
        %4852 = vmatpush1.msra.mxu0 0.0
        %4853 = vmatprep.subr.mxu0 0.0
        %4854 = vmatpush1.msra.mxu0 0.0
        %4855 = vmatprep.mubr.f32.mxu0 0.0
        %4856 = vmatmul.mubr.f32.gmra.mrb[0].mxu0 %v4718
        %v4857 = vpop.f32.mrb[0].mxu0
        %v4858 = vadd.f32 %v4715, %v4857
        %v4859 = vpop.f32.mrb[0].mxu0
        %v4860 = vadd.f32 %v4715, %v4859
        %4861 = vdwg.mxu0
        %v4866 = vcombine.low %v4787, %v4789
        %v4867 = vcombine.low %v4858, %v4860
        %v4869 = vunpack.c.l.s4 1966171168
        %v4870 = vunpack.c.0.s8 %v4869
        %v4871 = vlaneseq
        %v4872 = vshrl.u32 %v4871, 7
        %v4873 = vsub.s32 %v4870, %v4872
        %v4874 = vrot.slane %v4866, %v4873
        %v4876 = vunpack.c.l.s4 1966171168
        %v4877 = vunpack.c.0.s8 %v4876
        %v4878 = vlaneseq
        %v4879 = vshrl.u32 %v4878, 7
        %v4880 = vsub.s32 %v4877, %v4879
        %v4881 = vrot.slane %v4867, %v4880
        %v4882 = vcombine.low %v4874, %v4881
        %v4884 = vunpack.c.l.s4 1966171168
        %v4885 = vunpack.c.0.s8 %v4884
        %v4886 = vlaneseq
        %v4887 = vshrl.u32 %v4886, 7
        %v4888 = vsub.s32 %v4885, %v4887
        %v4889 = vrot.slane %v4882, %v4888
        %v4891 = vlaneseq
        %vm4892 = vcmp.ge.s32.totalorder %v4891, 0
        %vm4893 = vcmp.lt.s32.totalorder %v4891, 512
        %vm4894 = vmand %vm4892, %vm4893
        %4895 = vst.msk [vmem:[%s598] sm:$0xf] %vm4894, %v4889
        %s4896 = sand.u32 %s447, 1
        %s4897 = scalar_lea.sflag [#allocation4], %s4896
        %s4898 = sand.u32 %s447, 1
        %s4899 = smul.addr %s4898, 4
        %s4900 = scalar_lea.vmem [#allocation3], %s4899
        // Predicated region
        $region97: #{tpu_custom_call.1} parent=95 // pred_check
          %p4901 = pneg %p457
        $region98: #{tpu_custom_call.1} parent=95 // pred_check_branch
          %4903 = sbr.rel (%p4901) target = $region100
        $region99: #{tpu_custom_call.1} parent=95 // pred_region
          %s4904 = smul.u32 4, %s35
          %s4906 = ssub.s32 64, 64
          %4907 = vsyncadd %s4897, %s4906
          %s4908 = smul.addr %s4904, 16
          %s4909 = scalar_lea.hbm %s19, %s4908
          %s4911 = sshll.u32 %s4900, 4
          %s4912 = int_to_ptr.vmem [resolvable:$true] %s4911
          %4914 = dma.vmem_to_hbm [thread:$0]  %s4912, 64, %s4909, %s4897
        $region100: #{tpu_custom_call.1} parent=95 // pred_fallthru
          _
      $region96: #{tpu_custom_call.1} parent=5 // pred_fallthru
        _
      %p4915 = scmp.le.s32.totalorder 2, %s30
      // Predicated region
      $region101: #{tpu_custom_call.1} parent=5 // pred_check
        %p4916 = pneg %p4915
      $region102: #{tpu_custom_call.1} parent=5 // pred_check_branch
        %4918 = sbr.rel (%p4916) target = $region104
      $region103: #{tpu_custom_call.1} parent=5 // pred_region
        %s4919 = ssub.s32 %s30, 2
        // Predicated region
        $region105: #{tpu_custom_call.1} parent=103 // pred_check
          %p4920 = pneg %p463
        $region106: #{tpu_custom_call.1} parent=103 // pred_check_branch
          %4922 = sbr.rel (%p4920) target = $region108
        $region107: #{tpu_custom_call.1} parent=103 // pred_region
          %s4923 = sand.u32 %s448, 1
          %s4924 = scalar_lea.sflag [#allocation4], %s4923
          %s4925 = sand.u32 %s448, 1
          %s4926 = smul.addr %s4925, 4
          %s4927 = scalar_lea.vmem [#allocation3], %s4926
          %4928 = dma.done %s4924, 64
        $region108: #{tpu_custom_call.1} parent=103 // pred_fallthru
          _
      $region104: #{tpu_custom_call.1} parent=5 // pred_fallthru
        _
    $region6: #{tpu_custom_call.1} parent=1 // loop_footer
      %s34 = sadd.s32 1, %s30
    $region7: #{tpu_custom_call.1} parent=1 // loop_footer_branch
      %29 = sbr.rel target = $region3
    $region8: #{tpu_custom_call.1} parent=1 // loop_exit
      _
    %4929 = vsyncpa [#allocation4], 1
    %s4930 = scalar_lea.sflag [#allocation4], 1
    %4931 = vsyncpa %s4930, 1

</llo_original>
